<compile_context>
chip_gen: v5e
topology: v5e:2x2
jax: 0.10.0
libtpu: 0.0.40
codegen_flags: <defaults>
</compile_context>

<pallas_src>
import jax
import jax.numpy as jnp
from jax.experimental import pallas as pl
from jax.experimental.pallas import tpu as pltpu

CIN = 3        # RGB input channels
CIN_PAD = 8    # zero-pad input channels to a sublane-friendly count (exact: extra weight rows are 0)
C = 64         # encoder width


# ----------------------------------------------------------------------------- kernel

def _encoder_kernel(x_ref, w0_ref, b0_ref, w1_ref, b1_ref, w2_ref, b2_ref,
                    feat_ref, hm_ref, pad_ref):
    """Fused per-image encoder: conv3x3+BN+ReLU -> maxpool2x2 -> BasicBlock -> GAP.

    x_ref   : [H+2, W+2, CIN_PAD] f32     spatially pre-padded image (NHWC)
    w*_ref  : [9, Cin, C]        bf16     per-tap conv weights, BN scale pre-folded
    b*_ref  : [1, C]             f32      folded BN bias
    feat_ref: [1, C]             f32      pooled feature for this image
    hm_ref  : [H/2, W, C]        f32      scratch: row-pooled stem activations
    pad_ref : [H/2+2, W/2+2, C]  f32      scratch: zero-padded block input (reused for both convs)
    """
    H = x_ref.shape[0] - 2
    W = x_ref.shape[1] - 2
    Hp, Wp = H // 2, W // 2
    Cout = w0_ref.shape[2]

    def conv3x3(src_ref, w_ref, h, w):
        """3x3 'SAME' conv over a spatially pre-padded [h+2, w+2, cin] ref.

        Shift-and-accumulate matmuls: each kj-shifted window is loaded once
        (one sublane shift per column tap), the 3 ki taps are free leading-dim
        slices of that value.  bf16 MXU operands, f32 accumulation.
        """
        cin = src_ref.shape[2]
        rows = h * w
        acc = None
        for kj in range(3):
            col = src_ref[:, kj:kj + w, :]                       # [h+2, w, cin]
            for ki in range(3):
                p = col[ki:ki + h].reshape(rows, cin).astype(jnp.bfloat16)
                d = jnp.dot(p, w_ref[3 * ki + kj],
                            preferred_element_type=jnp.float32)
                acc = d if acc is None else acc + d
        return acc                                               # [rows, Cout] f32

    # ---- stem: conv3x3 (pad=1) + folded-BN bias + ReLU -------------------------------
    stem = conv3x3(x_ref, w0_ref, H, W)
    stem = jnp.maximum(stem + b0_ref[...], 0.0)                  # [H*W, C] f32

    # ---- maxpool 2x2 stride 2 (VPU max chains, no cross-lane reduce) ------------------
    s4 = stem.reshape(Hp, 2, W, Cout)                            # (hp, dy, w, C)
    hm_ref[...] = jnp.maximum(s4[:, 0], s4[:, 1])                # pool along H -> [Hp, W, C]
    pooled = jnp.maximum(hm_ref[:, pl.ds(0, Wp, stride=2), :],   # pool along W
                         hm_ref[:, pl.ds(1, Wp, stride=2), :])   # [Hp, Wp, C]

    # ---- BasicBlock conv1: zero-pad -> conv -> BN bias -> ReLU ------------------------
    pad_ref[...] = jnp.zeros_like(pad_ref)
    pad_ref[1:Hp + 1, 1:Wp + 1, :] = pooled
    z = conv3x3(pad_ref, w1_ref, Hp, Wp)
    z = jnp.maximum(z + b1_ref[...], 0.0)                        # [Hp*Wp, C]

    # ---- BasicBlock conv2: zero-pad -> conv -> BN bias -> +identity -> ReLU -----------
    pad_ref[1:Hp + 1, 1:Wp + 1, :] = z.reshape(Hp, Wp, Cout)     # border stays zero
    z2 = conv3x3(pad_ref, w2_ref, Hp, Wp)
    z2 = jnp.maximum(z2 + b2_ref[...] + pooled.reshape(Hp * Wp, Cout), 0.0)

    # ---- global average pool (flatten happens in the wrapper) -------------------------
    feat_ref[...] = jnp.mean(z2, axis=0, keepdims=True)


# ----------------------------------------------------------------------------- wrapper

def encoder_forward(x_nchw, params):
    """NCHW input -> [N, C] pooled feature (== Net.forward's feature.view(N, -1))."""
    x = jnp.transpose(x_nchw, (0, 2, 3, 1)).astype(jnp.float32)  # NHWC
    N, H, W, cin = x.shape
    # spatial pad=1 for the stem conv, channel pad 3 -> 8 (matching weight rows are zero)
    xp = jnp.pad(x, ((0, 0), (1, 1), (1, 1), (0, CIN_PAD - cin)))
    Hp, Wp = H // 2, W // 2

    feat = pl.pallas_call(
        _encoder_kernel,
        out_shape=jax.ShapeDtypeStruct((N, 1, C), jnp.float32),
        grid=(N,),
        in_specs=[
            pl.BlockSpec((None, H + 2, W + 2, CIN_PAD), lambda n: (n, 0, 0, 0)),
            # weights / biases: constant index_map -> resident in VMEM across grid steps
            pl.BlockSpec((9, CIN_PAD, C), lambda n: (0, 0, 0)),
            pl.BlockSpec((1, C), lambda n: (0, 0)),
            pl.BlockSpec((9, C, C), lambda n: (0, 0, 0)),
            pl.BlockSpec((1, C), lambda n: (0, 0)),
            pl.BlockSpec((9, C, C), lambda n: (0, 0, 0)),
            pl.BlockSpec((1, C), lambda n: (0, 0)),
        ],
        out_specs=pl.BlockSpec((None, 1, C), lambda n: (n, 0, 0)),
        scratch_shapes=[
            pltpu.VMEM((Hp, W, C), jnp.float32),                 # hm_ref
            pltpu.VMEM((Hp + 2, Wp + 2, C), jnp.float32),        # pad_ref
        ],
        compiler_params=pltpu.CompilerParams(
            dimension_semantics=("parallel",)),                  # batch across TCs (v7x)
    )(xp, params["w0"], params["b0"], params["w1"], params["b1"],
      params["w2"], params["b2"])
    return feat.reshape(N, C)


# ----------------------------------------------------------------------------- params

def init_params(key, cin=CIN, c=C, eps=1e-5):
    ks = jax.random.split(key, 6)

    def conv_taps(k, cout, cin_):
        w = 0.1 * jax.random.normal(k, (cout, cin_, 3, 3), jnp.float32)   # PyTorch layout
        return jnp.transpose(w, (2, 3, 1, 0)).reshape(9, cin_, cout)      # [9, Cin, Cout], t = 3*kh+kw

    def bn(k, cout):
        k1, k2, k3, k4 = jax.random.split(k, 4)
        gamma = 1.0 + 0.1 * jax.random.normal(k1, (cout,), jnp.float32)
        beta = 0.1 * jax.random.normal(k2, (cout,), jnp.float32)
        mean = 0.1 * jax.random.normal(k3, (cout,), jnp.float32)
        var = 1.0 + 0.1 * jnp.abs(jax.random.normal(k4, (cout,), jnp.float32))
        scale = gamma / jnp.sqrt(var + eps)
        return scale, beta - mean * scale

    def fold(w_taps, scale, cin_pad):
        w = w_taps * scale.reshape(1, 1, -1)          # fold BN scale into weights (f32)
        if cin_pad > w.shape[1]:
            w = jnp.pad(w, ((0, 0), (0, cin_pad - w.shape[1]), (0, 0)))
        return w.astype(jnp.bfloat16), w              # kernel copy (bf16), reference copy (f32)

    p = {}
    s0, b0 = bn(ks[1], c)
    p["w0"], p["w0_f32"] = fold(conv_taps(ks[0], c, cin), s0, CIN_PAD)
    p["b0"] = b0.reshape(1, c)
    s1, b1 = bn(ks[3], c)
    p["w1"], p["w1_f32"] = fold(conv_taps(ks[2], c, c), s1, c)
    p["b1"] = b1.reshape(1, c)
    s2, b2 = bn(ks[5], c)
    p["w2"], p["w2_f32"] = fold(conv_taps(ks[4], c, c), s2, c)
    p["b2"] = b2.reshape(1, c)
    return p


# ----------------------------------------------------------------------------- reference

def reference_forward(x_nchw, params):
    """Pure-JAX f32 reference for correctness checking."""
    x = jnp.transpose(x_nchw, (0, 2, 3, 1)).astype(jnp.float32)
    x = jnp.pad(x, ((0, 0), (0, 0), (0, 0), (0, CIN_PAD - x.shape[-1])))

    def conv_bn(x_, w_taps, bias):
        w = w_taps.reshape(3, 3, w_taps.shape[1], w_taps.shape[2])  # HWIO
        y = jax.lax.conv_general_dilated(
            x_, w, window_strides=(1, 1), padding="SAME",
            dimension_numbers=("NHWC", "HWIO", "NHWC"))
        return y + bias.reshape(1, 1, 1, -1)

    y = jax.nn.relu(conv_bn(x, params["w0_f32"], params["b0"]))
    n, h, w, c = y.shape
    y = y.reshape(n, h // 2, 2, w // 2, 2, c).max(axis=(2, 4))      # maxpool 2x2
    identity = y
    y = jax.nn.relu(conv_bn(y, params["w1_f32"], params["b1"]))
    y = jax.nn.relu(conv_bn(y, params["w2_f32"], params["b2"]) + identity)
    return jnp.mean(y, axis=(1, 2))                                  # GAP -> [N, C]


# ----------------------------------------------------------------------------- main

if __name__ == "__main__":
    key = jax.random.PRNGKey(0)
    kx, kp = jax.random.split(key)
    x = jax.random.normal(kx, (2, CIN, 16, 16), jnp.float32)        # NCHW, batch=2, 16x16 RGB
    params = init_params(kp)

    feature = jax.jit(encoder_forward)(x, params)
    feature = jax.block_until_ready(feature)
    assert feature.shape == (2, C) and feature.dtype == jnp.float32

    ref = reference_forward(x, params)
    rel_err = jnp.linalg.norm(feature - ref) / jnp.linalg.norm(ref)
    assert float(rel_err) < 5e-2, float(rel_err)                    # bf16-matmul tolerance
    print("KERNEL_OK")
</pallas_src>

<mosaic_0001>
module attributes {stable_mosaic.version = 11 : i64} {
  func.func @_encoder_kernel(%arg0: i32, %arg1: memref<1x18x18x8xf32, #tpu.memory_space<vmem>>, %arg2: memref<9x8x64xbf16, #tpu.memory_space<vmem>>, %arg3: memref<1x64xf32, #tpu.memory_space<vmem>>, %arg4: memref<9x64x64xbf16, #tpu.memory_space<vmem>>, %arg5: memref<1x64xf32, #tpu.memory_space<vmem>>, %arg6: memref<9x64x64xbf16, #tpu.memory_space<vmem>>, %arg7: memref<1x64xf32, #tpu.memory_space<vmem>>, %arg8: memref<1x1x64xf32, #tpu.memory_space<vmem>>, %arg9: memref<8x16x64xf32, #tpu.memory_space<vmem>>, %arg10: memref<10x10x64xf32, #tpu.memory_space<vmem>>) attributes {dimension_semantics = [#tpu.dimension_semantics<parallel>], iteration_bounds = array<i64: 2>, scalar_prefetch = 0 : i64, scratch_operands = 2 : i64, tpu.core_type = #tpu.core_type<tc>, window_params = [{transform_indices = @transform_0, window_bounds = array<i64: 1, 18, 18, 8>}, {pipeline_mode = #tpu.pipeline_mode<synchronous>, transform_indices = @transform_1, window_bounds = array<i64: 9, 8, 64>}, {pipeline_mode = #tpu.pipeline_mode<synchronous>, transform_indices = @transform_2, window_bounds = array<i64: 1, 64>}, {pipeline_mode = #tpu.pipeline_mode<synchronous>, transform_indices = @transform_3, window_bounds = array<i64: 9, 64, 64>}, {pipeline_mode = #tpu.pipeline_mode<synchronous>, transform_indices = @transform_4, window_bounds = array<i64: 1, 64>}, {pipeline_mode = #tpu.pipeline_mode<synchronous>, transform_indices = @transform_5, window_bounds = array<i64: 9, 64, 64>}, {pipeline_mode = #tpu.pipeline_mode<synchronous>, transform_indices = @transform_6, window_bounds = array<i64: 1, 64>}, {transform_indices = @transform_7, window_bounds = array<i64: 1, 1, 64>}]} {
    %c0 = arith.constant 0 : index
    %c0_0 = arith.constant 0 : index
    %c0_1 = arith.constant 0 : index
    %c0_2 = arith.constant 0 : index
    %0 = vector.load %arg1[%c0, %c0_0, %c0_1, %c0_2] : memref<1x18x18x8xf32, #tpu.memory_space<vmem>>, vector<1x18x16x8xf32>
    %1 = vector.shape_cast %0 : vector<1x18x16x8xf32> to vector<18x16x8xf32>
    %2 = vector.extract_strided_slice %1 {offsets = [0, 0, 0], sizes = [16, 16, 8], strides = [1, 1, 1]} : vector<18x16x8xf32> to vector<16x16x8xf32>
    %3 = vector.shape_cast %2 : vector<16x16x8xf32> to vector<256x8xf32>
    %4 = arith.truncf %3 : vector<256x8xf32> to vector<256x8xbf16>
    %c0_3 = arith.constant 0 : index
    %c0_4 = arith.constant 0 : index
    %c0_5 = arith.constant 0 : index
    %5 = vector.load %arg2[%c0_3, %c0_4, %c0_5] : memref<9x8x64xbf16, #tpu.memory_space<vmem>>, vector<1x8x64xbf16>
    %6 = vector.shape_cast %5 : vector<1x8x64xbf16> to vector<8x64xbf16>
    %cst = arith.constant dense<0.000000e+00> : vector<256x64xf32>
    %7 = tpu.matmul %4, %6, %cst {dimension_numbers = #tpu.dot_dimension_numbers<[1], [0], [0], [1], [0, 0, 1, 1], [], []>} : vector<256x8xbf16>, vector<8x64xbf16>, vector<256x64xf32> -> vector<256x64xf32>
    %8 = vector.extract_strided_slice %1 {offsets = [1, 0, 0], sizes = [16, 16, 8], strides = [1, 1, 1]} : vector<18x16x8xf32> to vector<16x16x8xf32>
    %9 = vector.shape_cast %8 : vector<16x16x8xf32> to vector<256x8xf32>
    %10 = arith.truncf %9 : vector<256x8xf32> to vector<256x8xbf16>
    %c3 = arith.constant 3 : index
    %c0_6 = arith.constant 0 : index
    %c0_7 = arith.constant 0 : index
    %11 = vector.load %arg2[%c3, %c0_6, %c0_7] : memref<9x8x64xbf16, #tpu.memory_space<vmem>>, vector<1x8x64xbf16>
    %12 = vector.shape_cast %11 : vector<1x8x64xbf16> to vector<8x64xbf16>
    %cst_8 = arith.constant dense<0.000000e+00> : vector<256x64xf32>
    %13 = tpu.matmul %10, %12, %cst_8 {dimension_numbers = #tpu.dot_dimension_numbers<[1], [0], [0], [1], [0, 0, 1, 1], [], []>} : vector<256x8xbf16>, vector<8x64xbf16>, vector<256x64xf32> -> vector<256x64xf32>
    %14 = arith.addf %7, %13 : vector<256x64xf32>
    %15 = vector.extract_strided_slice %1 {offsets = [2, 0, 0], sizes = [16, 16, 8], strides = [1, 1, 1]} : vector<18x16x8xf32> to vector<16x16x8xf32>
    %16 = vector.shape_cast %15 : vector<16x16x8xf32> to vector<256x8xf32>
    %17 = arith.truncf %16 : vector<256x8xf32> to vector<256x8xbf16>
    %c6 = arith.constant 6 : index
    %c0_9 = arith.constant 0 : index
    %c0_10 = arith.constant 0 : index
    %18 = vector.load %arg2[%c6, %c0_9, %c0_10] : memref<9x8x64xbf16, #tpu.memory_space<vmem>>, vector<1x8x64xbf16>
    %19 = vector.shape_cast %18 : vector<1x8x64xbf16> to vector<8x64xbf16>
    %cst_11 = arith.constant dense<0.000000e+00> : vector<256x64xf32>
    %20 = tpu.matmul %17, %19, %cst_11 {dimension_numbers = #tpu.dot_dimension_numbers<[1], [0], [0], [1], [0, 0, 1, 1], [], []>} : vector<256x8xbf16>, vector<8x64xbf16>, vector<256x64xf32> -> vector<256x64xf32>
    %21 = arith.addf %14, %20 : vector<256x64xf32>
    %c0_12 = arith.constant 0 : index
    %c0_13 = arith.constant 0 : index
    %c1 = arith.constant 1 : index
    %c0_14 = arith.constant 0 : index
    %22 = vector.load %arg1[%c0_12, %c0_13, %c1, %c0_14] : memref<1x18x18x8xf32, #tpu.memory_space<vmem>>, vector<1x18x16x8xf32>
    %23 = vector.shape_cast %22 : vector<1x18x16x8xf32> to vector<18x16x8xf32>
    %24 = vector.extract_strided_slice %23 {offsets = [0, 0, 0], sizes = [16, 16, 8], strides = [1, 1, 1]} : vector<18x16x8xf32> to vector<16x16x8xf32>
    %25 = vector.shape_cast %24 : vector<16x16x8xf32> to vector<256x8xf32>
    %26 = arith.truncf %25 : vector<256x8xf32> to vector<256x8xbf16>
    %c1_15 = arith.constant 1 : index
    %c0_16 = arith.constant 0 : index
    %c0_17 = arith.constant 0 : index
    %27 = vector.load %arg2[%c1_15, %c0_16, %c0_17] : memref<9x8x64xbf16, #tpu.memory_space<vmem>>, vector<1x8x64xbf16>
    %28 = vector.shape_cast %27 : vector<1x8x64xbf16> to vector<8x64xbf16>
    %cst_18 = arith.constant dense<0.000000e+00> : vector<256x64xf32>
    %29 = tpu.matmul %26, %28, %cst_18 {dimension_numbers = #tpu.dot_dimension_numbers<[1], [0], [0], [1], [0, 0, 1, 1], [], []>} : vector<256x8xbf16>, vector<8x64xbf16>, vector<256x64xf32> -> vector<256x64xf32>
    %30 = arith.addf %21, %29 : vector<256x64xf32>
    %31 = vector.extract_strided_slice %23 {offsets = [1, 0, 0], sizes = [16, 16, 8], strides = [1, 1, 1]} : vector<18x16x8xf32> to vector<16x16x8xf32>
    %32 = vector.shape_cast %31 : vector<16x16x8xf32> to vector<256x8xf32>
    %33 = arith.truncf %32 : vector<256x8xf32> to vector<256x8xbf16>
    %c4 = arith.constant 4 : index
    %c0_19 = arith.constant 0 : index
    %c0_20 = arith.constant 0 : index
    %34 = vector.load %arg2[%c4, %c0_19, %c0_20] : memref<9x8x64xbf16, #tpu.memory_space<vmem>>, vector<1x8x64xbf16>
    %35 = vector.shape_cast %34 : vector<1x8x64xbf16> to vector<8x64xbf16>
    %cst_21 = arith.constant dense<0.000000e+00> : vector<256x64xf32>
    %36 = tpu.matmul %33, %35, %cst_21 {dimension_numbers = #tpu.dot_dimension_numbers<[1], [0], [0], [1], [0, 0, 1, 1], [], []>} : vector<256x8xbf16>, vector<8x64xbf16>, vector<256x64xf32> -> vector<256x64xf32>
    %37 = arith.addf %30, %36 : vector<256x64xf32>
    %38 = vector.extract_strided_slice %23 {offsets = [2, 0, 0], sizes = [16, 16, 8], strides = [1, 1, 1]} : vector<18x16x8xf32> to vector<16x16x8xf32>
    %39 = vector.shape_cast %38 : vector<16x16x8xf32> to vector<256x8xf32>
    %40 = arith.truncf %39 : vector<256x8xf32> to vector<256x8xbf16>
    %c7 = arith.constant 7 : index
    %c0_22 = arith.constant 0 : index
    %c0_23 = arith.constant 0 : index
    %41 = vector.load %arg2[%c7, %c0_22, %c0_23] : memref<9x8x64xbf16, #tpu.memory_space<vmem>>, vector<1x8x64xbf16>
    %42 = vector.shape_cast %41 : vector<1x8x64xbf16> to vector<8x64xbf16>
    %cst_24 = arith.constant dense<0.000000e+00> : vector<256x64xf32>
    %43 = tpu.matmul %40, %42, %cst_24 {dimension_numbers = #tpu.dot_dimension_numbers<[1], [0], [0], [1], [0, 0, 1, 1], [], []>} : vector<256x8xbf16>, vector<8x64xbf16>, vector<256x64xf32> -> vector<256x64xf32>
    %44 = arith.addf %37, %43 : vector<256x64xf32>
    %c0_25 = arith.constant 0 : index
    %c0_26 = arith.constant 0 : index
    %c2 = arith.constant 2 : index
    %c0_27 = arith.constant 0 : index
    %45 = vector.load %arg1[%c0_25, %c0_26, %c2, %c0_27] : memref<1x18x18x8xf32, #tpu.memory_space<vmem>>, vector<1x18x16x8xf32>
    %46 = vector.shape_cast %45 : vector<1x18x16x8xf32> to vector<18x16x8xf32>
    %47 = vector.extract_strided_slice %46 {offsets = [0, 0, 0], sizes = [16, 16, 8], strides = [1, 1, 1]} : vector<18x16x8xf32> to vector<16x16x8xf32>
    %48 = vector.shape_cast %47 : vector<16x16x8xf32> to vector<256x8xf32>
    %49 = arith.truncf %48 : vector<256x8xf32> to vector<256x8xbf16>
    %c2_28 = arith.constant 2 : index
    %c0_29 = arith.constant 0 : index
    %c0_30 = arith.constant 0 : index
    %50 = vector.load %arg2[%c2_28, %c0_29, %c0_30] : memref<9x8x64xbf16, #tpu.memory_space<vmem>>, vector<1x8x64xbf16>
    %51 = vector.shape_cast %50 : vector<1x8x64xbf16> to vector<8x64xbf16>
    %cst_31 = arith.constant dense<0.000000e+00> : vector<256x64xf32>
    %52 = tpu.matmul %49, %51, %cst_31 {dimension_numbers = #tpu.dot_dimension_numbers<[1], [0], [0], [1], [0, 0, 1, 1], [], []>} : vector<256x8xbf16>, vector<8x64xbf16>, vector<256x64xf32> -> vector<256x64xf32>
    %53 = arith.addf %44, %52 : vector<256x64xf32>
    %54 = vector.extract_strided_slice %46 {offsets = [1, 0, 0], sizes = [16, 16, 8], strides = [1, 1, 1]} : vector<18x16x8xf32> to vector<16x16x8xf32>
    %55 = vector.shape_cast %54 : vector<16x16x8xf32> to vector<256x8xf32>
    %56 = arith.truncf %55 : vector<256x8xf32> to vector<256x8xbf16>
    %c5 = arith.constant 5 : index
    %c0_32 = arith.constant 0 : index
    %c0_33 = arith.constant 0 : index
    %57 = vector.load %arg2[%c5, %c0_32, %c0_33] : memref<9x8x64xbf16, #tpu.memory_space<vmem>>, vector<1x8x64xbf16>
    %58 = vector.shape_cast %57 : vector<1x8x64xbf16> to vector<8x64xbf16>
    %cst_34 = arith.constant dense<0.000000e+00> : vector<256x64xf32>
    %59 = tpu.matmul %56, %58, %cst_34 {dimension_numbers = #tpu.dot_dimension_numbers<[1], [0], [0], [1], [0, 0, 1, 1], [], []>} : vector<256x8xbf16>, vector<8x64xbf16>, vector<256x64xf32> -> vector<256x64xf32>
    %60 = arith.addf %53, %59 : vector<256x64xf32>
    %61 = vector.extract_strided_slice %46 {offsets = [2, 0, 0], sizes = [16, 16, 8], strides = [1, 1, 1]} : vector<18x16x8xf32> to vector<16x16x8xf32>
    %62 = vector.shape_cast %61 : vector<16x16x8xf32> to vector<256x8xf32>
    %63 = arith.truncf %62 : vector<256x8xf32> to vector<256x8xbf16>
    %c8 = arith.constant 8 : index
    %c0_35 = arith.constant 0 : index
    %c0_36 = arith.constant 0 : index
    %64 = vector.load %arg2[%c8, %c0_35, %c0_36] : memref<9x8x64xbf16, #tpu.memory_space<vmem>>, vector<1x8x64xbf16>
    %65 = vector.shape_cast %64 : vector<1x8x64xbf16> to vector<8x64xbf16>
    %cst_37 = arith.constant dense<0.000000e+00> : vector<256x64xf32>
    %66 = tpu.matmul %63, %65, %cst_37 {dimension_numbers = #tpu.dot_dimension_numbers<[1], [0], [0], [1], [0, 0, 1, 1], [], []>} : vector<256x8xbf16>, vector<8x64xbf16>, vector<256x64xf32> -> vector<256x64xf32>
    %67 = arith.addf %60, %66 : vector<256x64xf32>
    %c0_38 = arith.constant 0 : index
    %c0_39 = arith.constant 0 : index
    %68 = vector.load %arg3[%c0_38, %c0_39] : memref<1x64xf32, #tpu.memory_space<vmem>>, vector<1x64xf32>
    %69 = vector.broadcast %68 : vector<1x64xf32> to vector<256x64xf32>
    %70 = arith.addf %67, %69 : vector<256x64xf32>
    %cst_40 = arith.constant 0.000000e+00 : f32
    %71 = vector.broadcast %cst_40 : f32 to vector<256x64xf32>
    %72 = arith.maximumf %70, %71 : vector<256x64xf32>
    %73 = vector.shape_cast %72 : vector<256x64xf32> to vector<8x2x16x64xf32>
    %74 = vector.extract_strided_slice %73 {offsets = [0, 0, 0, 0], sizes = [8, 1, 16, 64], strides = [1, 1, 1, 1]} : vector<8x2x16x64xf32> to vector<8x1x16x64xf32>
    %75 = vector.shape_cast %74 : vector<8x1x16x64xf32> to vector<8x16x64xf32>
    %76 = vector.extract_strided_slice %73 {offsets = [0, 1, 0, 0], sizes = [8, 1, 16, 64], strides = [1, 1, 1, 1]} : vector<8x2x16x64xf32> to vector<8x1x16x64xf32>
    %77 = vector.shape_cast %76 : vector<8x1x16x64xf32> to vector<8x16x64xf32>
    %78 = arith.maximumf %75, %77 : vector<8x16x64xf32>
    %c0_41 = arith.constant 0 : index
    %c0_42 = arith.constant 0 : index
    %c0_43 = arith.constant 0 : index
    %79 = vector.load %arg9[%c0_41, %c0_42, %c0_43] : memref<8x16x64xf32, #tpu.memory_space<vmem>>, vector<8x16x64xf32>
    tpu.vector_store %arg9[%c0_41, %c0_42, %c0_43], %78 {strides = array<i32>} : memref<8x16x64xf32, #tpu.memory_space<vmem>>, vector<8x16x64xf32>,
    %c0_44 = arith.constant 0 : index
    %c0_45 = arith.constant 0 : index
    %c0_46 = arith.constant 0 : index
    %80 = tpu.strided_load %arg9[%c0_44, %c0_45, %c0_46] {strides = array<i32: 1, 2, 1>} : memref<8x16x64xf32, #tpu.memory_space<vmem>>, vector<8x8x64xf32>
    %c0_47 = arith.constant 0 : index
    %c1_48 = arith.constant 1 : index
    %c0_49 = arith.constant 0 : index
    %81 = tpu.strided_load %arg9[%c0_47, %c1_48, %c0_49] {strides = array<i32: 1, 2, 1>} : memref<8x16x64xf32, #tpu.memory_space<vmem>>, vector<8x8x64xf32>
    %82 = arith.maximumf %80, %81 : vector<8x8x64xf32>
    %cst_50 = arith.constant 0.000000e+00 : f32
    %83 = vector.broadcast %cst_50 : f32 to vector<10x10x64xf32>
    %c0_51 = arith.constant 0 : index
    %c0_52 = arith.constant 0 : index
    %c0_53 = arith.constant 0 : index
    %84 = vector.load %arg10[%c0_51, %c0_52, %c0_53] : memref<10x10x64xf32, #tpu.memory_space<vmem>>, vector<10x10x64xf32>
    tpu.vector_store %arg10[%c0_51, %c0_52, %c0_53], %83 {strides = array<i32>} : memref<10x10x64xf32, #tpu.memory_space<vmem>>, vector<10x10x64xf32>,
    %c1_54 = arith.constant 1 : index
    %c1_55 = arith.constant 1 : index
    %c0_56 = arith.constant 0 : index
    %85 = vector.load %arg10[%c1_54, %c1_55, %c0_56] : memref<10x10x64xf32, #tpu.memory_space<vmem>>, vector<8x8x64xf32>
    tpu.vector_store %arg10[%c1_54, %c1_55, %c0_56], %82 {strides = array<i32>} : memref<10x10x64xf32, #tpu.memory_space<vmem>>, vector<8x8x64xf32>,
    %c0_57 = arith.constant 0 : index
    %c0_58 = arith.constant 0 : index
    %c0_59 = arith.constant 0 : index
    %86 = vector.load %arg10[%c0_57, %c0_58, %c0_59] : memref<10x10x64xf32, #tpu.memory_space<vmem>>, vector<10x8x64xf32>
    %87 = vector.extract_strided_slice %86 {offsets = [0, 0, 0], sizes = [8, 8, 64], strides = [1, 1, 1]} : vector<10x8x64xf32> to vector<8x8x64xf32>
    %88 = vector.shape_cast %87 : vector<8x8x64xf32> to vector<64x64xf32>
    %89 = arith.truncf %88 : vector<64x64xf32> to vector<64x64xbf16>
    %c0_60 = arith.constant 0 : index
    %c0_61 = arith.constant 0 : index
    %c0_62 = arith.constant 0 : index
    %90 = vector.load %arg4[%c0_60, %c0_61, %c0_62] : memref<9x64x64xbf16, #tpu.memory_space<vmem>>, vector<1x64x64xbf16>
    %91 = vector.shape_cast %90 : vector<1x64x64xbf16> to vector<64x64xbf16>
    %cst_63 = arith.constant dense<0.000000e+00> : vector<64x64xf32>
    %92 = tpu.matmul %89, %91, %cst_63 {dimension_numbers = #tpu.dot_dimension_numbers<[1], [0], [0], [1], [0, 0, 1, 1], [], []>} : vector<64x64xbf16>, vector<64x64xbf16>, vector<64x64xf32> -> vector<64x64xf32>
    %93 = vector.extract_strided_slice %86 {offsets = [1, 0, 0], sizes = [8, 8, 64], strides = [1, 1, 1]} : vector<10x8x64xf32> to vector<8x8x64xf32>
    %94 = vector.shape_cast %93 : vector<8x8x64xf32> to vector<64x64xf32>
    %95 = arith.truncf %94 : vector<64x64xf32> to vector<64x64xbf16>
    %c3_64 = arith.constant 3 : index
    %c0_65 = arith.constant 0 : index
    %c0_66 = arith.constant 0 : index
    %96 = vector.load %arg4[%c3_64, %c0_65, %c0_66] : memref<9x64x64xbf16, #tpu.memory_space<vmem>>, vector<1x64x64xbf16>
    %97 = vector.shape_cast %96 : vector<1x64x64xbf16> to vector<64x64xbf16>
    %cst_67 = arith.constant dense<0.000000e+00> : vector<64x64xf32>
    %98 = tpu.matmul %95, %97, %cst_67 {dimension_numbers = #tpu.dot_dimension_numbers<[1], [0], [0], [1], [0, 0, 1, 1], [], []>} : vector<64x64xbf16>, vector<64x64xbf16>, vector<64x64xf32> -> vector<64x64xf32>
    %99 = arith.addf %92, %98 : vector<64x64xf32>
    %100 = vector.extract_strided_slice %86 {offsets = [2, 0, 0], sizes = [8, 8, 64], strides = [1, 1, 1]} : vector<10x8x64xf32> to vector<8x8x64xf32>
    %101 = vector.shape_cast %100 : vector<8x8x64xf32> to vector<64x64xf32>
    %102 = arith.truncf %101 : vector<64x64xf32> to vector<64x64xbf16>
    %c6_68 = arith.constant 6 : index
    %c0_69 = arith.constant 0 : index
    %c0_70 = arith.constant 0 : index
    %103 = vector.load %arg4[%c6_68, %c0_69, %c0_70] : memref<9x64x64xbf16, #tpu.memory_space<vmem>>, vector<1x64x64xbf16>
    %104 = vector.shape_cast %103 : vector<1x64x64xbf16> to vector<64x64xbf16>
    %cst_71 = arith.constant dense<0.000000e+00> : vector<64x64xf32>
    %105 = tpu.matmul %102, %104, %cst_71 {dimension_numbers = #tpu.dot_dimension_numbers<[1], [0], [0], [1], [0, 0, 1, 1], [], []>} : vector<64x64xbf16>, vector<64x64xbf16>, vector<64x64xf32> -> vector<64x64xf32>
    %106 = arith.addf %99, %105 : vector<64x64xf32>
    %c0_72 = arith.constant 0 : index
    %c1_73 = arith.constant 1 : index
    %c0_74 = arith.constant 0 : index
    %107 = vector.load %arg10[%c0_72, %c1_73, %c0_74] : memref<10x10x64xf32, #tpu.memory_space<vmem>>, vector<10x8x64xf32>
    %108 = vector.extract_strided_slice %107 {offsets = [0, 0, 0], sizes = [8, 8, 64], strides = [1, 1, 1]} : vector<10x8x64xf32> to vector<8x8x64xf32>
    %109 = vector.shape_cast %108 : vector<8x8x64xf32> to vector<64x64xf32>
    %110 = arith.truncf %109 : vector<64x64xf32> to vector<64x64xbf16>
    %c1_75 = arith.constant 1 : index
    %c0_76 = arith.constant 0 : index
    %c0_77 = arith.constant 0 : index
    %111 = vector.load %arg4[%c1_75, %c0_76, %c0_77] : memref<9x64x64xbf16, #tpu.memory_space<vmem>>, vector<1x64x64xbf16>
    %112 = vector.shape_cast %111 : vector<1x64x64xbf16> to vector<64x64xbf16>
    %cst_78 = arith.constant dense<0.000000e+00> : vector<64x64xf32>
    %113 = tpu.matmul %110, %112, %cst_78 {dimension_numbers = #tpu.dot_dimension_numbers<[1], [0], [0], [1], [0, 0, 1, 1], [], []>} : vector<64x64xbf16>, vector<64x64xbf16>, vector<64x64xf32> -> vector<64x64xf32>
    %114 = arith.addf %106, %113 : vector<64x64xf32>
    %115 = vector.extract_strided_slice %107 {offsets = [1, 0, 0], sizes = [8, 8, 64], strides = [1, 1, 1]} : vector<10x8x64xf32> to vector<8x8x64xf32>
    %116 = vector.shape_cast %115 : vector<8x8x64xf32> to vector<64x64xf32>
    %117 = arith.truncf %116 : vector<64x64xf32> to vector<64x64xbf16>
    %c4_79 = arith.constant 4 : index
    %c0_80 = arith.constant 0 : index
    %c0_81 = arith.constant 0 : index
    %118 = vector.load %arg4[%c4_79, %c0_80, %c0_81] : memref<9x64x64xbf16, #tpu.memory_space<vmem>>, vector<1x64x64xbf16>
    %119 = vector.shape_cast %118 : vector<1x64x64xbf16> to vector<64x64xbf16>
    %cst_82 = arith.constant dense<0.000000e+00> : vector<64x64xf32>
    %120 = tpu.matmul %117, %119, %cst_82 {dimension_numbers = #tpu.dot_dimension_numbers<[1], [0], [0], [1], [0, 0, 1, 1], [], []>} : vector<64x64xbf16>, vector<64x64xbf16>, vector<64x64xf32> -> vector<64x64xf32>
    %121 = arith.addf %114, %120 : vector<64x64xf32>
    %122 = vector.extract_strided_slice %107 {offsets = [2, 0, 0], sizes = [8, 8, 64], strides = [1, 1, 1]} : vector<10x8x64xf32> to vector<8x8x64xf32>
    %123 = vector.shape_cast %122 : vector<8x8x64xf32> to vector<64x64xf32>
    %124 = arith.truncf %123 : vector<64x64xf32> to vector<64x64xbf16>
    %c7_83 = arith.constant 7 : index
    %c0_84 = arith.constant 0 : index
    %c0_85 = arith.constant 0 : index
    %125 = vector.load %arg4[%c7_83, %c0_84, %c0_85] : memref<9x64x64xbf16, #tpu.memory_space<vmem>>, vector<1x64x64xbf16>
    %126 = vector.shape_cast %125 : vector<1x64x64xbf16> to vector<64x64xbf16>
    %cst_86 = arith.constant dense<0.000000e+00> : vector<64x64xf32>
    %127 = tpu.matmul %124, %126, %cst_86 {dimension_numbers = #tpu.dot_dimension_numbers<[1], [0], [0], [1], [0, 0, 1, 1], [], []>} : vector<64x64xbf16>, vector<64x64xbf16>, vector<64x64xf32> -> vector<64x64xf32>
    %128 = arith.addf %121, %127 : vector<64x64xf32>
    %c0_87 = arith.constant 0 : index
    %c2_88 = arith.constant 2 : index
    %c0_89 = arith.constant 0 : index
    %129 = vector.load %arg10[%c0_87, %c2_88, %c0_89] : memref<10x10x64xf32, #tpu.memory_space<vmem>>, vector<10x8x64xf32>
    %130 = vector.extract_strided_slice %129 {offsets = [0, 0, 0], sizes = [8, 8, 64], strides = [1, 1, 1]} : vector<10x8x64xf32> to vector<8x8x64xf32>
    %131 = vector.shape_cast %130 : vector<8x8x64xf32> to vector<64x64xf32>
    %132 = arith.truncf %131 : vector<64x64xf32> to vector<64x64xbf16>
    %c2_90 = arith.constant 2 : index
    %c0_91 = arith.constant 0 : index
    %c0_92 = arith.constant 0 : index
    %133 = vector.load %arg4[%c2_90, %c0_91, %c0_92] : memref<9x64x64xbf16, #tpu.memory_space<vmem>>, vector<1x64x64xbf16>
    %134 = vector.shape_cast %133 : vector<1x64x64xbf16> to vector<64x64xbf16>
    %cst_93 = arith.constant dense<0.000000e+00> : vector<64x64xf32>
    %135 = tpu.matmul %132, %134, %cst_93 {dimension_numbers = #tpu.dot_dimension_numbers<[1], [0], [0], [1], [0, 0, 1, 1], [], []>} : vector<64x64xbf16>, vector<64x64xbf16>, vector<64x64xf32> -> vector<64x64xf32>
    %136 = arith.addf %128, %135 : vector<64x64xf32>
    %137 = vector.extract_strided_slice %129 {offsets = [1, 0, 0], sizes = [8, 8, 64], strides = [1, 1, 1]} : vector<10x8x64xf32> to vector<8x8x64xf32>
    %138 = vector.shape_cast %137 : vector<8x8x64xf32> to vector<64x64xf32>
    %139 = arith.truncf %138 : vector<64x64xf32> to vector<64x64xbf16>
    %c5_94 = arith.constant 5 : index
    %c0_95 = arith.constant 0 : index
    %c0_96 = arith.constant 0 : index
    %140 = vector.load %arg4[%c5_94, %c0_95, %c0_96] : memref<9x64x64xbf16, #tpu.memory_space<vmem>>, vector<1x64x64xbf16>
    %141 = vector.shape_cast %140 : vector<1x64x64xbf16> to vector<64x64xbf16>
    %cst_97 = arith.constant dense<0.000000e+00> : vector<64x64xf32>
    %142 = tpu.matmul %139, %141, %cst_97 {dimension_numbers = #tpu.dot_dimension_numbers<[1], [0], [0], [1], [0, 0, 1, 1], [], []>} : vector<64x64xbf16>, vector<64x64xbf16>, vector<64x64xf32> -> vector<64x64xf32>
    %143 = arith.addf %136, %142 : vector<64x64xf32>
    %144 = vector.extract_strided_slice %129 {offsets = [2, 0, 0], sizes = [8, 8, 64], strides = [1, 1, 1]} : vector<10x8x64xf32> to vector<8x8x64xf32>
    %145 = vector.shape_cast %144 : vector<8x8x64xf32> to vector<64x64xf32>
    %146 = arith.truncf %145 : vector<64x64xf32> to vector<64x64xbf16>
    %c8_98 = arith.constant 8 : index
    %c0_99 = arith.constant 0 : index
    %c0_100 = arith.constant 0 : index
    %147 = vector.load %arg4[%c8_98, %c0_99, %c0_100] : memref<9x64x64xbf16, #tpu.memory_space<vmem>>, vector<1x64x64xbf16>
    %148 = vector.shape_cast %147 : vector<1x64x64xbf16> to vector<64x64xbf16>
    %cst_101 = arith.constant dense<0.000000e+00> : vector<64x64xf32>
    %149 = tpu.matmul %146, %148, %cst_101 {dimension_numbers = #tpu.dot_dimension_numbers<[1], [0], [0], [1], [0, 0, 1, 1], [], []>} : vector<64x64xbf16>, vector<64x64xbf16>, vector<64x64xf32> -> vector<64x64xf32>
    %150 = arith.addf %143, %149 : vector<64x64xf32>
    %c0_102 = arith.constant 0 : index
    %c0_103 = arith.constant 0 : index
    %151 = vector.load %arg5[%c0_102, %c0_103] : memref<1x64xf32, #tpu.memory_space<vmem>>, vector<1x64xf32>
    %152 = vector.broadcast %151 : vector<1x64xf32> to vector<64x64xf32>
    %153 = arith.addf %150, %152 : vector<64x64xf32>
    %cst_104 = arith.constant 0.000000e+00 : f32
    %154 = vector.broadcast %cst_104 : f32 to vector<64x64xf32>
    %155 = arith.maximumf %153, %154 : vector<64x64xf32>
    %156 = vector.shape_cast %155 : vector<64x64xf32> to vector<8x8x64xf32>
    %c1_105 = arith.constant 1 : index
    %c1_106 = arith.constant 1 : index
    %c0_107 = arith.constant 0 : index
    %157 = vector.load %arg10[%c1_105, %c1_106, %c0_107] : memref<10x10x64xf32, #tpu.memory_space<vmem>>, vector<8x8x64xf32>
    tpu.vector_store %arg10[%c1_105, %c1_106, %c0_107], %156 {strides = array<i32>} : memref<10x10x64xf32, #tpu.memory_space<vmem>>, vector<8x8x64xf32>,
    %c0_108 = arith.constant 0 : index
    %c0_109 = arith.constant 0 : index
    %c0_110 = arith.constant 0 : index
    %158 = vector.load %arg10[%c0_108, %c0_109, %c0_110] : memref<10x10x64xf32, #tpu.memory_space<vmem>>, vector<10x8x64xf32>
    %159 = vector.extract_strided_slice %158 {offsets = [0, 0, 0], sizes = [8, 8, 64], strides = [1, 1, 1]} : vector<10x8x64xf32> to vector<8x8x64xf32>
    %160 = vector.shape_cast %159 : vector<8x8x64xf32> to vector<64x64xf32>
    %161 = arith.truncf %160 : vector<64x64xf32> to vector<64x64xbf16>
    %c0_111 = arith.constant 0 : index
    %c0_112 = arith.constant 0 : index
    %c0_113 = arith.constant 0 : index
    %162 = vector.load %arg6[%c0_111, %c0_112, %c0_113] : memref<9x64x64xbf16, #tpu.memory_space<vmem>>, vector<1x64x64xbf16>
    %163 = vector.shape_cast %162 : vector<1x64x64xbf16> to vector<64x64xbf16>
    %cst_114 = arith.constant dense<0.000000e+00> : vector<64x64xf32>
    %164 = tpu.matmul %161, %163, %cst_114 {dimension_numbers = #tpu.dot_dimension_numbers<[1], [0], [0], [1], [0, 0, 1, 1], [], []>} : vector<64x64xbf16>, vector<64x64xbf16>, vector<64x64xf32> -> vector<64x64xf32>
    %165 = vector.extract_strided_slice %158 {offsets = [1, 0, 0], sizes = [8, 8, 64], strides = [1, 1, 1]} : vector<10x8x64xf32> to vector<8x8x64xf32>
    %166 = vector.shape_cast %165 : vector<8x8x64xf32> to vector<64x64xf32>
    %167 = arith.truncf %166 : vector<64x64xf32> to vector<64x64xbf16>
    %c3_115 = arith.constant 3 : index
    %c0_116 = arith.constant 0 : index
    %c0_117 = arith.constant 0 : index
    %168 = vector.load %arg6[%c3_115, %c0_116, %c0_117] : memref<9x64x64xbf16, #tpu.memory_space<vmem>>, vector<1x64x64xbf16>
    %169 = vector.shape_cast %168 : vector<1x64x64xbf16> to vector<64x64xbf16>
    %cst_118 = arith.constant dense<0.000000e+00> : vector<64x64xf32>
    %170 = tpu.matmul %167, %169, %cst_118 {dimension_numbers = #tpu.dot_dimension_numbers<[1], [0], [0], [1], [0, 0, 1, 1], [], []>} : vector<64x64xbf16>, vector<64x64xbf16>, vector<64x64xf32> -> vector<64x64xf32>
    %171 = arith.addf %164, %170 : vector<64x64xf32>
    %172 = vector.extract_strided_slice %158 {offsets = [2, 0, 0], sizes = [8, 8, 64], strides = [1, 1, 1]} : vector<10x8x64xf32> to vector<8x8x64xf32>
    %173 = vector.shape_cast %172 : vector<8x8x64xf32> to vector<64x64xf32>
    %174 = arith.truncf %173 : vector<64x64xf32> to vector<64x64xbf16>
    %c6_119 = arith.constant 6 : index
    %c0_120 = arith.constant 0 : index
    %c0_121 = arith.constant 0 : index
    %175 = vector.load %arg6[%c6_119, %c0_120, %c0_121] : memref<9x64x64xbf16, #tpu.memory_space<vmem>>, vector<1x64x64xbf16>
    %176 = vector.shape_cast %175 : vector<1x64x64xbf16> to vector<64x64xbf16>
    %cst_122 = arith.constant dense<0.000000e+00> : vector<64x64xf32>
    %177 = tpu.matmul %174, %176, %cst_122 {dimension_numbers = #tpu.dot_dimension_numbers<[1], [0], [0], [1], [0, 0, 1, 1], [], []>} : vector<64x64xbf16>, vector<64x64xbf16>, vector<64x64xf32> -> vector<64x64xf32>
    %178 = arith.addf %171, %177 : vector<64x64xf32>
    %c0_123 = arith.constant 0 : index
    %c1_124 = arith.constant 1 : index
    %c0_125 = arith.constant 0 : index
    %179 = vector.load %arg10[%c0_123, %c1_124, %c0_125] : memref<10x10x64xf32, #tpu.memory_space<vmem>>, vector<10x8x64xf32>
    %180 = vector.extract_strided_slice %179 {offsets = [0, 0, 0], sizes = [8, 8, 64], strides = [1, 1, 1]} : vector<10x8x64xf32> to vector<8x8x64xf32>
    %181 = vector.shape_cast %180 : vector<8x8x64xf32> to vector<64x64xf32>
    %182 = arith.truncf %181 : vector<64x64xf32> to vector<64x64xbf16>
    %c1_126 = arith.constant 1 : index
    %c0_127 = arith.constant 0 : index
    %c0_128 = arith.constant 0 : index
    %183 = vector.load %arg6[%c1_126, %c0_127, %c0_128] : memref<9x64x64xbf16, #tpu.memory_space<vmem>>, vector<1x64x64xbf16>
    %184 = vector.shape_cast %183 : vector<1x64x64xbf16> to vector<64x64xbf16>
    %cst_129 = arith.constant dense<0.000000e+00> : vector<64x64xf32>
    %185 = tpu.matmul %182, %184, %cst_129 {dimension_numbers = #tpu.dot_dimension_numbers<[1], [0], [0], [1], [0, 0, 1, 1], [], []>} : vector<64x64xbf16>, vector<64x64xbf16>, vector<64x64xf32> -> vector<64x64xf32>
    %186 = arith.addf %178, %185 : vector<64x64xf32>
    %187 = vector.extract_strided_slice %179 {offsets = [1, 0, 0], sizes = [8, 8, 64], strides = [1, 1, 1]} : vector<10x8x64xf32> to vector<8x8x64xf32>
    %188 = vector.shape_cast %187 : vector<8x8x64xf32> to vector<64x64xf32>
    %189 = arith.truncf %188 : vector<64x64xf32> to vector<64x64xbf16>
    %c4_130 = arith.constant 4 : index
    %c0_131 = arith.constant 0 : index
    %c0_132 = arith.constant 0 : index
    %190 = vector.load %arg6[%c4_130, %c0_131, %c0_132] : memref<9x64x64xbf16, #tpu.memory_space<vmem>>, vector<1x64x64xbf16>
    %191 = vector.shape_cast %190 : vector<1x64x64xbf16> to vector<64x64xbf16>
    %cst_133 = arith.constant dense<0.000000e+00> : vector<64x64xf32>
    %192 = tpu.matmul %189, %191, %cst_133 {dimension_numbers = #tpu.dot_dimension_numbers<[1], [0], [0], [1], [0, 0, 1, 1], [], []>} : vector<64x64xbf16>, vector<64x64xbf16>, vector<64x64xf32> -> vector<64x64xf32>
    %193 = arith.addf %186, %192 : vector<64x64xf32>
    %194 = vector.extract_strided_slice %179 {offsets = [2, 0, 0], sizes = [8, 8, 64], strides = [1, 1, 1]} : vector<10x8x64xf32> to vector<8x8x64xf32>
    %195 = vector.shape_cast %194 : vector<8x8x64xf32> to vector<64x64xf32>
    %196 = arith.truncf %195 : vector<64x64xf32> to vector<64x64xbf16>
    %c7_134 = arith.constant 7 : index
    %c0_135 = arith.constant 0 : index
    %c0_136 = arith.constant 0 : index
    %197 = vector.load %arg6[%c7_134, %c0_135, %c0_136] : memref<9x64x64xbf16, #tpu.memory_space<vmem>>, vector<1x64x64xbf16>
    %198 = vector.shape_cast %197 : vector<1x64x64xbf16> to vector<64x64xbf16>
    %cst_137 = arith.constant dense<0.000000e+00> : vector<64x64xf32>
    %199 = tpu.matmul %196, %198, %cst_137 {dimension_numbers = #tpu.dot_dimension_numbers<[1], [0], [0], [1], [0, 0, 1, 1], [], []>} : vector<64x64xbf16>, vector<64x64xbf16>, vector<64x64xf32> -> vector<64x64xf32>
    %200 = arith.addf %193, %199 : vector<64x64xf32>
    %c0_138 = arith.constant 0 : index
    %c2_139 = arith.constant 2 : index
    %c0_140 = arith.constant 0 : index
    %201 = vector.load %arg10[%c0_138, %c2_139, %c0_140] : memref<10x10x64xf32, #tpu.memory_space<vmem>>, vector<10x8x64xf32>
    %202 = vector.extract_strided_slice %201 {offsets = [0, 0, 0], sizes = [8, 8, 64], strides = [1, 1, 1]} : vector<10x8x64xf32> to vector<8x8x64xf32>
    %203 = vector.shape_cast %202 : vector<8x8x64xf32> to vector<64x64xf32>
    %204 = arith.truncf %203 : vector<64x64xf32> to vector<64x64xbf16>
    %c2_141 = arith.constant 2 : index
    %c0_142 = arith.constant 0 : index
    %c0_143 = arith.constant 0 : index
    %205 = vector.load %arg6[%c2_141, %c0_142, %c0_143] : memref<9x64x64xbf16, #tpu.memory_space<vmem>>, vector<1x64x64xbf16>
    %206 = vector.shape_cast %205 : vector<1x64x64xbf16> to vector<64x64xbf16>
    %cst_144 = arith.constant dense<0.000000e+00> : vector<64x64xf32>
    %207 = tpu.matmul %204, %206, %cst_144 {dimension_numbers = #tpu.dot_dimension_numbers<[1], [0], [0], [1], [0, 0, 1, 1], [], []>} : vector<64x64xbf16>, vector<64x64xbf16>, vector<64x64xf32> -> vector<64x64xf32>
    %208 = arith.addf %200, %207 : vector<64x64xf32>
    %209 = vector.extract_strided_slice %201 {offsets = [1, 0, 0], sizes = [8, 8, 64], strides = [1, 1, 1]} : vector<10x8x64xf32> to vector<8x8x64xf32>
    %210 = vector.shape_cast %209 : vector<8x8x64xf32> to vector<64x64xf32>
    %211 = arith.truncf %210 : vector<64x64xf32> to vector<64x64xbf16>
    %c5_145 = arith.constant 5 : index
    %c0_146 = arith.constant 0 : index
    %c0_147 = arith.constant 0 : index
    %212 = vector.load %arg6[%c5_145, %c0_146, %c0_147] : memref<9x64x64xbf16, #tpu.memory_space<vmem>>, vector<1x64x64xbf16>
    %213 = vector.shape_cast %212 : vector<1x64x64xbf16> to vector<64x64xbf16>
    %cst_148 = arith.constant dense<0.000000e+00> : vector<64x64xf32>
    %214 = tpu.matmul %211, %213, %cst_148 {dimension_numbers = #tpu.dot_dimension_numbers<[1], [0], [0], [1], [0, 0, 1, 1], [], []>} : vector<64x64xbf16>, vector<64x64xbf16>, vector<64x64xf32> -> vector<64x64xf32>
    %215 = arith.addf %208, %214 : vector<64x64xf32>
    %216 = vector.extract_strided_slice %201 {offsets = [2, 0, 0], sizes = [8, 8, 64], strides = [1, 1, 1]} : vector<10x8x64xf32> to vector<8x8x64xf32>
    %217 = vector.shape_cast %216 : vector<8x8x64xf32> to vector<64x64xf32>
    %218 = arith.truncf %217 : vector<64x64xf32> to vector<64x64xbf16>
    %c8_149 = arith.constant 8 : index
    %c0_150 = arith.constant 0 : index
    %c0_151 = arith.constant 0 : index
    %219 = vector.load %arg6[%c8_149, %c0_150, %c0_151] : memref<9x64x64xbf16, #tpu.memory_space<vmem>>, vector<1x64x64xbf16>
    %220 = vector.shape_cast %219 : vector<1x64x64xbf16> to vector<64x64xbf16>
    %cst_152 = arith.constant dense<0.000000e+00> : vector<64x64xf32>
    %221 = tpu.matmul %218, %220, %cst_152 {dimension_numbers = #tpu.dot_dimension_numbers<[1], [0], [0], [1], [0, 0, 1, 1], [], []>} : vector<64x64xbf16>, vector<64x64xbf16>, vector<64x64xf32> -> vector<64x64xf32>
    %222 = arith.addf %215, %221 : vector<64x64xf32>
    %c0_153 = arith.constant 0 : index
    %c0_154 = arith.constant 0 : index
    %223 = vector.load %arg7[%c0_153, %c0_154] : memref<1x64xf32, #tpu.memory_space<vmem>>, vector<1x64xf32>
    %224 = vector.broadcast %223 : vector<1x64xf32> to vector<64x64xf32>
    %225 = arith.addf %222, %224 : vector<64x64xf32>
    %226 = vector.shape_cast %82 : vector<8x8x64xf32> to vector<64x64xf32>
    %227 = arith.addf %225, %226 : vector<64x64xf32>
    %cst_155 = arith.constant 0.000000e+00 : f32
    %228 = vector.broadcast %cst_155 : f32 to vector<64x64xf32>
    %229 = arith.maximumf %227, %228 : vector<64x64xf32>
    %cst_156 = arith.constant dense<0.000000e+00> : vector<64xf32>
    %230 = vector.multi_reduction <add>, %229, %cst_156 [0] : vector<64x64xf32> to vector<64xf32>
    %231 = vector.shape_cast %230 : vector<64xf32> to vector<1x64xf32>
    %cst_157 = arith.constant 6.400000e+01 : f32
    %232 = vector.broadcast %cst_157 : f32 to vector<1x64xf32>
    %233 = arith.divf %231, %232 : vector<1x64xf32>
    %c0_158 = arith.constant 0 : index
    %c0_159 = arith.constant 0 : index
    %c0_160 = arith.constant 0 : index
    %234 = vector.load %arg8[%c0_158, %c0_159, %c0_160] : memref<1x1x64xf32, #tpu.memory_space<vmem>>, vector<1x1x64xf32>
    %235 = vector.shape_cast %234 : vector<1x1x64xf32> to vector<1x64xf32>
    %236 = vector.shape_cast %233 : vector<1x64xf32> to vector<1x1x64xf32>
    tpu.vector_store %arg8[%c0_158, %c0_159, %c0_160], %236 {strides = array<i32>} : memref<1x1x64xf32, #tpu.memory_space<vmem>>, vector<1x1x64xf32>,
    return
  }
  func.func @transform_0(%arg0: i32) -> (i32, i32, i32, i32) {
    %c0_i32 = arith.constant 0 : i32
    %c0_i32_0 = arith.constant 0 : i32
    %c0_i32_1 = arith.constant 0 : i32
    %c0_i32_2 = arith.constant 0 : i32
    return %arg0, %c0_i32, %c0_i32_0, %c0_i32_1 : i32, i32, i32, i32
  }
  func.func @transform_1(%arg0: i32) -> (i32, i32, i32) {
    %c0_i32 = arith.constant 0 : i32
    %c0_i32_0 = arith.constant 0 : i32
    %c0_i32_1 = arith.constant 0 : i32
    %c0_i32_2 = arith.constant 0 : i32
    return %c0_i32, %c0_i32_0, %c0_i32_1 : i32, i32, i32
  }
  func.func @transform_2(%arg0: i32) -> (i32, i32) {
    %c0_i32 = arith.constant 0 : i32
    %c0_i32_0 = arith.constant 0 : i32
    %c0_i32_1 = arith.constant 0 : i32
    return %c0_i32, %c0_i32_0 : i32, i32
  }
  func.func @transform_3(%arg0: i32) -> (i32, i32, i32) {
    %c0_i32 = arith.constant 0 : i32
    %c0_i32_0 = arith.constant 0 : i32
    %c0_i32_1 = arith.constant 0 : i32
    %c0_i32_2 = arith.constant 0 : i32
    return %c0_i32, %c0_i32_0, %c0_i32_1 : i32, i32, i32
  }
  func.func @transform_4(%arg0: i32) -> (i32, i32) {
    %c0_i32 = arith.constant 0 : i32
    %c0_i32_0 = arith.constant 0 : i32
    %c0_i32_1 = arith.constant 0 : i32
    return %c0_i32, %c0_i32_0 : i32, i32
  }
  func.func @transform_5(%arg0: i32) -> (i32, i32, i32) {
    %c0_i32 = arith.constant 0 : i32
    %c0_i32_0 = arith.constant 0 : i32
    %c0_i32_1 = arith.constant 0 : i32
    %c0_i32_2 = arith.constant 0 : i32
    return %c0_i32, %c0_i32_0, %c0_i32_1 : i32, i32, i32
  }
  func.func @transform_6(%arg0: i32) -> (i32, i32) {
    %c0_i32 = arith.constant 0 : i32
    %c0_i32_0 = arith.constant 0 : i32
    %c0_i32_1 = arith.constant 0 : i32
    return %c0_i32, %c0_i32_0 : i32, i32
  }
  func.func @transform_7(%arg0: i32) -> (i32, i32, i32) {
    %c0_i32 = arith.constant 0 : i32
    %c0_i32_0 = arith.constant 0 : i32
    %c0_i32_1 = arith.constant 0 : i32
    return %arg0, %c0_i32, %c0_i32_0 : i32, i32, i32
  }
}

</mosaic_0001>

<llo_original>
// kernel: encoder_forward.1
$region0: #{encoder_forward.1}
  #allocation0 [shape = 'u32[]', space=smem, size = 0x4, offset = 0x4, fixed_abs, tag = 'smem constant byte address 0x4 - core index']
  #allocation1 [shape = 'u32[72,128]{1,0:T(1,128)}', space=vmem, size = 0x9000, scoped, tag = 'internal scratch']
  #allocation2 [shape = 'f32[8,16,64]{2,1,0:T(8,128)}', space=vmem, size = 0x10000, scoped, tag = 'scratch operand']
  #allocation3 [shape = 'f32[10,10,64]{2,1,0:T(8,128)}', space=vmem, size = 0x14000, scoped, tag = 'scratch operand']
  %s0 = inlined_call_operand.vmem [shape: f32[2,18,18,8], index: 0, kind: input, shape index: {}]
  %s1 = inlined_call_operand.vmem [shape: bf16[9,8,64], index: 1, kind: input, shape index: {}]
  %s2 = inlined_call_operand.vmem [shape: f32[1,64], index: 2, kind: input, shape index: {}]
  %s3 = inlined_call_operand.vmem [shape: bf16[9,64,64], index: 3, kind: input, shape index: {}]
  %s4 = inlined_call_operand.vmem [shape: f32[1,64], index: 4, kind: input, shape index: {}]
  %s5 = inlined_call_operand.vmem [shape: bf16[9,64,64], index: 5, kind: input, shape index: {}]
  %s6 = inlined_call_operand.vmem [shape: f32[1,64], index: 6, kind: input, shape index: {}]
  %s7 = inlined_call_operand.hbm [shape: f32[2,1,64], index: 7, kind: output, shape index: {}]
  %s8 = sld [smem:[#allocation0]]
  $region61: #{encoder_forward.1} parent=0
    _
  %s10 = ssub.s32 1, %s8
  %s11 = scalar_select 0, %s10, %s8
  $region1: #{encoder_forward.1} parent=0
    #allocation4 [shape = 'u8[1024]{0}', space=vmem, size = 0x400, scoped, tag = 'output window, operand 0']
    #allocation5 [shape = 's32[2]{0}', space=sflag, size = 0x8, scoped, tag = 'scoped memory for encoder_forward.1']
    %12 = vsyncpa [#allocation5], 0
    %s13 = scalar_lea.sflag [#allocation5], 1
    %14 = vsyncpa %s13, 0
    loop: start=0, step=1, limit=4
    $region2: #{encoder_forward.1} parent=1 // loop_pre_header
      _
    $region3: #{encoder_forward.1} parent=1 // loop_header
      %s16 = sphi 0, %s20
      %p17 = scmp.ge.s32.totalorder %s16, 4
      %s26 = sphi 0, %s28
      %s29 = sphi 0, %s26
      %s30 = sphi 0, %s29
      %s46 = sphi 0, %s30
      %s50 = sphi 0, %s50
      %s52 = sphi 0, %s50
      %s53 = sphi 0, %s52
      %s67 = sphi 0, %s53
      %s71 = sphi 0, %s71
      %s73 = sphi 0, %s71
      %s74 = sphi 0, %s73
      %s88 = sphi 0, %s74
      %s92 = sphi 0, %s92
      %s94 = sphi 0, %s92
      %s95 = sphi 0, %s94
      %s109 = sphi 0, %s95
      %s113 = sphi 0, %s113
      %s115 = sphi 0, %s113
      %s116 = sphi 0, %s115
      %s130 = sphi 0, %s116
      %s134 = sphi 0, %s134
      %s136 = sphi 0, %s134
      %s137 = sphi 0, %s136
      %s151 = sphi 0, %s137
      %s155 = sphi 0, %s155
      %s157 = sphi 0, %s155
      %s158 = sphi 0, %s157
      %s172 = sphi 0, %s158
      %s178 = sphi 0, %s180
      %s181 = sphi 0, %s178
      %s182 = sphi 0, %s181
      %s198 = sphi 0, %s182
    $region4: #{encoder_forward.1} parent=1 // loop_header_branch
      %19 = sbr.rel (%p17) target = $region8
    $region5: #{encoder_forward.1} parent=1 // loop_body
      %s21 = ssub.s32 %s16, 1
      %s22 = ssub.s32 %s16, 2
      %s23 = sadd.s32 %s16, 1
      %s24 = ssub.s32 %s16, %s23
      %p25 = scmp.eq.s32.totalorder %s24, 0
      %s27 = sadd.s32 %s26, 1
      %s28 = scalar_select %p25, %s26, %s27
      %p31 = pneg %p25
      %p32 = scmp.eq.s32.totalorder %s16, 1
      %p33 = por %p31, %p32
      %p34 = scmp.ne.s32.totalorder %s26, %s29
      %p35 = scmp.eq.s32.totalorder %s16, 0
      %p36 = por %p34, %p35
      %p37 = scmp.ne.s32.totalorder %s26, %s29
      %p38 = scmp.eq.s32.totalorder %s21, 1
      %p39 = por %p37, %p38
      %p40 = scmp.ne.s32.totalorder %s29, %s30
      %p41 = scmp.eq.s32.totalorder %s21, 0
      %p42 = por %p40, %p41
      %p43 = scmp.ne.s32.totalorder %s29, %s30
      %p44 = scmp.eq.s32.totalorder %s22, 1
      %p45 = por %p43, %p44
      %p47 = scmp.ne.s32.totalorder %s30, %s46
      %p48 = scmp.eq.s32.totalorder %s22, 0
      %p49 = por %p47, %p48
      %s51 = sadd.s32 %s50, 1
      %p54 = scmp.eq.s32.totalorder %s16, 1
      %p55 = scmp.ne.s32.totalorder %s50, %s52
      %p56 = scmp.eq.s32.totalorder %s16, 0
      %p57 = por %p55, %p56
      %p58 = scmp.ne.s32.totalorder %s50, %s52
      %p59 = scmp.eq.s32.totalorder %s21, 1
      %p60 = por %p58, %p59
      %p61 = scmp.ne.s32.totalorder %s52, %s53
      %p62 = scmp.eq.s32.totalorder %s21, 0
      %p63 = por %p61, %p62
      %p64 = scmp.ne.s32.totalorder %s52, %s53
      %p65 = scmp.eq.s32.totalorder %s22, 1
      %p66 = por %p64, %p65
      %p68 = scmp.ne.s32.totalorder %s53, %s67
      %p69 = scmp.eq.s32.totalorder %s22, 0
      %p70 = por %p68, %p69
      %s72 = sadd.s32 %s71, 1
      %p75 = scmp.eq.s32.totalorder %s16, 1
      %p76 = scmp.ne.s32.totalorder %s71, %s73
      %p77 = scmp.eq.s32.totalorder %s16, 0
      %p78 = por %p76, %p77
      %p79 = scmp.ne.s32.totalorder %s71, %s73
      %p80 = scmp.eq.s32.totalorder %s21, 1
      %p81 = por %p79, %p80
      %p82 = scmp.ne.s32.totalorder %s73, %s74
      %p83 = scmp.eq.s32.totalorder %s21, 0
      %p84 = por %p82, %p83
      %p85 = scmp.ne.s32.totalorder %s73, %s74
      %p86 = scmp.eq.s32.totalorder %s22, 1
      %p87 = por %p85, %p86
      %p89 = scmp.ne.s32.totalorder %s74, %s88
      %p90 = scmp.eq.s32.totalorder %s22, 0
      %p91 = por %p89, %p90
      %s93 = sadd.s32 %s92, 1
      %p96 = scmp.eq.s32.totalorder %s16, 1
      %p97 = scmp.ne.s32.totalorder %s92, %s94
      %p98 = scmp.eq.s32.totalorder %s16, 0
      %p99 = por %p97, %p98
      %p100 = scmp.ne.s32.totalorder %s92, %s94
      %p101 = scmp.eq.s32.totalorder %s21, 1
      %p102 = por %p100, %p101
      %p103 = scmp.ne.s32.totalorder %s94, %s95
      %p104 = scmp.eq.s32.totalorder %s21, 0
      %p105 = por %p103, %p104
      %p106 = scmp.ne.s32.totalorder %s94, %s95
      %p107 = scmp.eq.s32.totalorder %s22, 1
      %p108 = por %p106, %p107
      %p110 = scmp.ne.s32.totalorder %s95, %s109
      %p111 = scmp.eq.s32.totalorder %s22, 0
      %p112 = por %p110, %p111
      %s114 = sadd.s32 %s113, 1
      %p117 = scmp.eq.s32.totalorder %s16, 1
      %p118 = scmp.ne.s32.totalorder %s113, %s115
      %p119 = scmp.eq.s32.totalorder %s16, 0
      %p120 = por %p118, %p119
      %p121 = scmp.ne.s32.totalorder %s113, %s115
      %p122 = scmp.eq.s32.totalorder %s21, 1
      %p123 = por %p121, %p122
      %p124 = scmp.ne.s32.totalorder %s115, %s116
      %p125 = scmp.eq.s32.totalorder %s21, 0
      %p126 = por %p124, %p125
      %p127 = scmp.ne.s32.totalorder %s115, %s116
      %p128 = scmp.eq.s32.totalorder %s22, 1
      %p129 = por %p127, %p128
      %p131 = scmp.ne.s32.totalorder %s116, %s130
      %p132 = scmp.eq.s32.totalorder %s22, 0
      %p133 = por %p131, %p132
      %s135 = sadd.s32 %s134, 1
      %p138 = scmp.eq.s32.totalorder %s16, 1
      %p139 = scmp.ne.s32.totalorder %s134, %s136
      %p140 = scmp.eq.s32.totalorder %s16, 0
      %p141 = por %p139, %p140
      %p142 = scmp.ne.s32.totalorder %s134, %s136
      %p143 = scmp.eq.s32.totalorder %s21, 1
      %p144 = por %p142, %p143
      %p145 = scmp.ne.s32.totalorder %s136, %s137
      %p146 = scmp.eq.s32.totalorder %s21, 0
      %p147 = por %p145, %p146
      %p148 = scmp.ne.s32.totalorder %s136, %s137
      %p149 = scmp.eq.s32.totalorder %s22, 1
      %p150 = por %p148, %p149
      %p152 = scmp.ne.s32.totalorder %s137, %s151
      %p153 = scmp.eq.s32.totalorder %s22, 0
      %p154 = por %p152, %p153
      %s156 = sadd.s32 %s155, 1
      %p159 = scmp.eq.s32.totalorder %s16, 1
      %p160 = scmp.ne.s32.totalorder %s155, %s157
      %p161 = scmp.eq.s32.totalorder %s16, 0
      %p162 = por %p160, %p161
      %p163 = scmp.ne.s32.totalorder %s155, %s157
      %p164 = scmp.eq.s32.totalorder %s21, 1
      %p165 = por %p163, %p164
      %p166 = scmp.ne.s32.totalorder %s157, %s158
      %p167 = scmp.eq.s32.totalorder %s21, 0
      %p168 = por %p166, %p167
      %p169 = scmp.ne.s32.totalorder %s157, %s158
      %p170 = scmp.eq.s32.totalorder %s22, 1
      %p171 = por %p169, %p170
      %p173 = scmp.ne.s32.totalorder %s158, %s172
      %p174 = scmp.eq.s32.totalorder %s22, 0
      %p175 = por %p173, %p174
      %s176 = ssub.s32 %s16, %s23
      %p177 = scmp.eq.s32.totalorder %s176, 0
      %s179 = sadd.s32 %s178, 1
      %s180 = scalar_select %p177, %s178, %s179
      %p183 = pneg %p177
      %p184 = scmp.eq.s32.totalorder %s16, 1
      %p185 = por %p183, %p184
      %p186 = scmp.ne.s32.totalorder %s178, %s181
      %p187 = scmp.eq.s32.totalorder %s16, 0
      %p188 = por %p186, %p187
      %p189 = scmp.ne.s32.totalorder %s178, %s181
      %p190 = scmp.eq.s32.totalorder %s21, 1
      %p191 = por %p189, %p190
      %p192 = scmp.ne.s32.totalorder %s181, %s182
      %p193 = scmp.eq.s32.totalorder %s21, 0
      %p194 = por %p192, %p193
      %p195 = scmp.ne.s32.totalorder %s181, %s182
      %p196 = scmp.eq.s32.totalorder %s22, 1
      %p197 = por %p195, %p196
      %p199 = scmp.ne.s32.totalorder %s182, %s198
      %p200 = scmp.eq.s32.totalorder %s22, 0
      %p201 = por %p199, %p200
      %p202 = scmp.le.s32.totalorder 1, %s16
      %p203 = scmp.lt.s32.totalorder %s16, 3
      %p204 = pnand %p202, %p203
      %p205 = pneg %p204
      // Predicated region
      $region9: #{encoder_forward.1} parent=5 // pred_check
        _
      $region10: #{encoder_forward.1} parent=5 // pred_check_branch
        %207 = sbr.rel (%p204) target = $region12
      $region11: #{encoder_forward.1} parent=5 // pred_region
        %s208 = ssub.s32 %s16, 1
        // Predicated region
        $region13: #{encoder_forward.1} parent=11 // pred_check
          %p209 = pneg %p63
        $region14: #{encoder_forward.1} parent=11 // pred_check_branch
          %211 = sbr.rel (%p209) target = $region16
        $region15: #{encoder_forward.1} parent=11 // pred_region
          _
        $region16: #{encoder_forward.1} parent=11 // pred_fallthru
          _
        // Predicated region
        $region17: #{encoder_forward.1} parent=11 // pred_check
          %p212 = pneg %p84
        $region18: #{encoder_forward.1} parent=11 // pred_check_branch
          %214 = sbr.rel (%p212) target = $region20
        $region19: #{encoder_forward.1} parent=11 // pred_region
          _
        $region20: #{encoder_forward.1} parent=11 // pred_fallthru
          _
        // Predicated region
        $region21: #{encoder_forward.1} parent=11 // pred_check
          %p215 = pneg %p105
        $region22: #{encoder_forward.1} parent=11 // pred_check_branch
          %217 = sbr.rel (%p215) target = $region24
        $region23: #{encoder_forward.1} parent=11 // pred_region
          _
        $region24: #{encoder_forward.1} parent=11 // pred_fallthru
          _
        // Predicated region
        $region25: #{encoder_forward.1} parent=11 // pred_check
          %p218 = pneg %p126
        $region26: #{encoder_forward.1} parent=11 // pred_check_branch
          %220 = sbr.rel (%p218) target = $region28
        $region27: #{encoder_forward.1} parent=11 // pred_region
          _
        $region28: #{encoder_forward.1} parent=11 // pred_fallthru
          _
        // Predicated region
        $region29: #{encoder_forward.1} parent=11 // pred_check
          %p221 = pneg %p147
        $region30: #{encoder_forward.1} parent=11 // pred_check_branch
          %223 = sbr.rel (%p221) target = $region32
        $region31: #{encoder_forward.1} parent=11 // pred_region
          _
        $region32: #{encoder_forward.1} parent=11 // pred_fallthru
          _
        // Predicated region
        $region33: #{encoder_forward.1} parent=11 // pred_check
          %p224 = pneg %p168
        $region34: #{encoder_forward.1} parent=11 // pred_check_branch
          %226 = sbr.rel (%p224) target = $region36
        $region35: #{encoder_forward.1} parent=11 // pred_region
          _
        $region36: #{encoder_forward.1} parent=11 // pred_fallthru
          _
      $region12: #{encoder_forward.1} parent=5 // pred_fallthru
        _
      %p227 = scmp.lt.s32.totalorder %s16, 2
      // Predicated region
      $region37: #{encoder_forward.1} parent=5 // pred_check
        %p228 = pneg %p227
      $region38: #{encoder_forward.1} parent=5 // pred_check_branch
        %230 = sbr.rel (%p228) target = $region40
      $region39: #{encoder_forward.1} parent=5 // pred_region
        // Predicated region
        $region41: #{encoder_forward.1} parent=39 // pred_check
          %p231 = pneg %p36
        $region42: #{encoder_forward.1} parent=39 // pred_check_branch
          %233 = sbr.rel (%p231) target = $region44
        $region43: #{encoder_forward.1} parent=39 // pred_region
          %p234 = scmp.lt.s32.totalorder %s16, 1
          %s235 = scalar_select %p234, %s16, 1
          %s236 = smul.addr %s235, 54
          %s237 = smul.addr %s236, 8
          %s238 = scalar_lea.vmem %s0, %s237
        $region44: #{encoder_forward.1} parent=39 // pred_fallthru
          _
      $region40: #{encoder_forward.1} parent=5 // pred_fallthru
        _
      %p239 = scmp.le.s32.totalorder 1, %s16
      %p240 = scmp.lt.s32.totalorder %s16, 3
      %p241 = pnand %p239, %p240
      %p242 = pneg %p241
      // Predicated region
      $region45: #{encoder_forward.1} parent=5 // pred_check
        _
      $region46: #{encoder_forward.1} parent=5 // pred_check_branch
        %244 = sbr.rel (%p241) target = $region48
      $region47: #{encoder_forward.1} parent=5 // pred_region
        %s245 = ssub.s32 %s16, 1
        %p246 = scmp.lt.s32.totalorder %s21, 1
        %s247 = scalar_select %p246, %s21, 1
        %s248 = smul.addr %s247, 54
        %s249 = smul.addr %s248, 8
        %s250 = scalar_lea.vmem %s0, %s249
        %p251 = pneg %p42
        %p252 = pneg %p39
        %p253 = pneg %p63
        %p254 = pneg %p60
        %p255 = pneg %p84
        %p256 = pneg %p81
        %p257 = pneg %p105
        %p258 = pneg %p102
        %p259 = pneg %p126
        %p260 = pneg %p123
        %p261 = pneg %p147
        %p262 = pneg %p144
        %p263 = pneg %p168
        %p264 = pneg %p165
        %p265 = pneg %p194
        %p266 = pneg %p191
        %s267 = sand.u32 %s181, 1
        %s268 = scalar_lea.sflag [#allocation5], %s267
        %s269 = sand.u32 %s181, 1
        %s270 = scalar_lea.vmem [#allocation4], %s269
        %p271 = scmp.lt.s32.totalorder %s21, 1
        %s272 = scalar_select %p271, %s21, 1
        %s273 = smul.addr %s272, 54
        %s274 = smul.addr %s273, 8
        %s275 = scalar_lea.vmem %s0, %s274
        %v277 = vld [vmem:[%s275] sm:$0xff]
        %v278 = vld [vmem:[%s275 + $0x8] sm:$0xff]
        %v279 = vld [vmem:[%s275 + $0x18] sm:$0xff]
        %v280 = vld [vmem:[%s275 + $0x20] sm:$0xff]
        %v281 = vld [vmem:[%s275 + $0x30] sm:$0xff]
        %v282 = vld [vmem:[%s275 + $0x38] sm:$0xff]
        %v283 = vld [vmem:[%s275 + $0x48] sm:$0xff]
        %v284 = vld [vmem:[%s275 + $0x50] sm:$0xff]
        %v285 = vld [vmem:[%s275 + $0x60] sm:$0xff]
        %v286 = vld [vmem:[%s275 + $0x68] sm:$0xff]
        %v287 = vld [vmem:[%s275 + $0x78] sm:$0xff]
        %v288 = vld [vmem:[%s275 + $0x80] sm:$0xff]
        %v289 = vld [vmem:[%s275 + $0x90] sm:$0xff]
        %v290 = vld [vmem:[%s275 + $0x98] sm:$0xff]
        %v291 = vld [vmem:[%s275 + $0xa8] sm:$0xff]
        %v292 = vld [vmem:[%s275 + $0xb0] sm:$0xff]
        %v293 = vld [vmem:[%s275 + $0xc0] sm:$0xff]
        %v294 = vld [vmem:[%s275 + $0xc8] sm:$0xff]
        %v295 = vld [vmem:[%s275 + $0xd8] sm:$0xff]
        %v296 = vld [vmem:[%s275 + $0xe0] sm:$0xff]
        %v297 = vld [vmem:[%s275 + $0xf0] sm:$0xff]
        %v298 = vld [vmem:[%s275 + $0xf8] sm:$0xff]
        %v299 = vld [vmem:[%s275 + $0x108] sm:$0xff]
        %v300 = vld [vmem:[%s275 + $0x110] sm:$0xff]
        %v301 = vld [vmem:[%s275 + $0x120] sm:$0xff]
        %v302 = vld [vmem:[%s275 + $0x128] sm:$0xff]
        %v303 = vld [vmem:[%s275 + $0x138] sm:$0xff]
        %v304 = vld [vmem:[%s275 + $0x140] sm:$0xff]
        %v305 = vld [vmem:[%s275 + $0x150] sm:$0xff]
        %v306 = vld [vmem:[%s275 + $0x158] sm:$0xff]
        %v307 = vld [vmem:[%s275 + $0x168] sm:$0xff]
        %v308 = vld [vmem:[%s275 + $0x170] sm:$0xff]
        %v309 = vld [vmem:[%s275 + $0x180] sm:$0xff]
        %v310 = vld [vmem:[%s275 + $0x188] sm:$0xff]
        %v311 = vld [vmem:[%s275 + $0x198] sm:$0xff]
        %v312 = vld [vmem:[%s275 + $0x1a0] sm:$0xff]
        %v313 = vpack.c.bf16 %v278, %v277
        %v314 = vpack.c.bf16 %v280, %v279
        %v315 = vpack.c.bf16 %v282, %v281
        %v316 = vpack.c.bf16 %v284, %v283
        %v317 = vpack.c.bf16 %v286, %v285
        %v318 = vpack.c.bf16 %v288, %v287
        %v319 = vpack.c.bf16 %v290, %v289
        %v320 = vpack.c.bf16 %v292, %v291
        %v321 = vpack.c.bf16 %v294, %v293
        %v322 = vpack.c.bf16 %v296, %v295
        %v323 = vpack.c.bf16 %v298, %v297
        %v324 = vpack.c.bf16 %v300, %v299
        %v325 = vpack.c.bf16 %v302, %v301
        %v326 = vpack.c.bf16 %v304, %v303
        %v327 = vpack.c.bf16 %v306, %v305
        %v328 = vpack.c.bf16 %v308, %v307
        %v329 = vld [vmem:[%s1] sm:$0xf]
        %v330 = vpack.c.bf16 %v310, %v309
        %s331 = scalar_lea.vmem %s1, 12
        %v332 = vld [vmem:[%s331] sm:$0xf]
        %vm333 = vcmask 64512
        %v335 = vsel %vm333, %v314, 0
        %v338 = vsel %vm333, %v315, 0
        %v341 = vsel %vm333, %v316, 0
        %v344 = vsel %vm333, %v317, 0
        %v347 = vsel %vm333, %v318, 0
        %v350 = vsel %vm333, %v319, 0
        %v353 = vsel %vm333, %v320, 0
        %v356 = vsel %vm333, %v321, 0
        %v359 = vsel %vm333, %v322, 0
        %v362 = vsel %vm333, %v323, 0
        %v365 = vsel %vm333, %v324, 0
        %v368 = vsel %vm333, %v325, 0
        %v371 = vsel %vm333, %v326, 0
        %v374 = vsel %vm333, %v327, 0
        %v377 = vsel %vm333, %v328, 0
        %v380 = vsel %vm333, %v330, 0
        %vm382 = vcmask 1043456
        %v384 = vsel %vm382, %v332, 0
        %386 = vmatpush.bf16.msra.mxu0 0
        %387 = vmatpush.bf16.msra.mxu0 0
        %388 = vmatpush.bf16.msra.mxu0 0
        %389 = vmatpush.bf16.msra.mxu0 0
        %390 = vmatpush.bf16.msra.mxu0 0
        %391 = vmatpush.bf16.msra.mxu0 0
        %392 = vmatpush.bf16.msra.mxu0 0
        %393 = vmatpush.bf16.msra.mxu0 %v384
        %394 = vmatmul.bf16.gmra.mxu0 %v335
        %v395 = vpop.f32.mrf.mxu0
        %v396 = vadd.f32 0.0, %v395
        %v397 = vpop.f32.mrf.mxu0
        %v398 = vadd.f32 0.0, %v397
        %399 = vmatmul.bf16.gmra.mxu0 %v338
        %v400 = vpop.f32.mrf.mxu0
        %v401 = vadd.f32 0.0, %v400
        %v402 = vpop.f32.mrf.mxu0
        %v403 = vadd.f32 0.0, %v402
        %404 = vmatmul.bf16.gmra.mxu0 %v341
        %v405 = vpop.f32.mrf.mxu0
        %v406 = vadd.f32 0.0, %v405
        %v407 = vpop.f32.mrf.mxu0
        %v408 = vadd.f32 0.0, %v407
        %409 = vmatmul.bf16.gmra.mxu0 %v344
        %v410 = vpop.f32.mrf.mxu0
        %v411 = vadd.f32 0.0, %v410
        %v412 = vpop.f32.mrf.mxu0
        %v413 = vadd.f32 0.0, %v412
        %414 = vmatmul.bf16.gmra.mxu0 %v347
        %v415 = vpop.f32.mrf.mxu0
        %v416 = vadd.f32 0.0, %v415
        %v417 = vpop.f32.mrf.mxu0
        %v418 = vadd.f32 0.0, %v417
        %419 = vmatmul.bf16.gmra.mxu0 %v350
        %v420 = vpop.f32.mrf.mxu0
        %v421 = vadd.f32 0.0, %v420
        %v422 = vpop.f32.mrf.mxu0
        %v423 = vadd.f32 0.0, %v422
        %424 = vmatmul.bf16.gmra.mxu0 %v353
        %v425 = vpop.f32.mrf.mxu0
        %v426 = vadd.f32 0.0, %v425
        %v427 = vpop.f32.mrf.mxu0
        %v428 = vadd.f32 0.0, %v427
        %429 = vmatmul.bf16.gmra.mxu0 %v356
        %v430 = vpop.f32.mrf.mxu0
        %v431 = vadd.f32 0.0, %v430
        %v432 = vpop.f32.mrf.mxu0
        %v433 = vadd.f32 0.0, %v432
        %434 = vmatmul.bf16.gmra.mxu0 %v359
        %v435 = vpop.f32.mrf.mxu0
        %v436 = vadd.f32 0.0, %v435
        %v437 = vpop.f32.mrf.mxu0
        %v438 = vadd.f32 0.0, %v437
        %439 = vmatmul.bf16.gmra.mxu0 %v362
        %v440 = vpop.f32.mrf.mxu0
        %v441 = vadd.f32 0.0, %v440
        %v442 = vpop.f32.mrf.mxu0
        %v443 = vadd.f32 0.0, %v442
        %444 = vmatmul.bf16.gmra.mxu0 %v365
        %v445 = vpop.f32.mrf.mxu0
        %v446 = vadd.f32 0.0, %v445
        %v447 = vpop.f32.mrf.mxu0
        %v448 = vadd.f32 0.0, %v447
        %449 = vmatmul.bf16.gmra.mxu0 %v368
        %v450 = vpop.f32.mrf.mxu0
        %v451 = vadd.f32 0.0, %v450
        %v452 = vpop.f32.mrf.mxu0
        %v453 = vadd.f32 0.0, %v452
        %454 = vmatmul.bf16.gmra.mxu0 %v371
        %v455 = vpop.f32.mrf.mxu0
        %v456 = vadd.f32 0.0, %v455
        %v457 = vpop.f32.mrf.mxu0
        %v458 = vadd.f32 0.0, %v457
        %459 = vmatmul.bf16.gmra.mxu0 %v374
        %v460 = vpop.f32.mrf.mxu0
        %v461 = vadd.f32 0.0, %v460
        %v462 = vpop.f32.mrf.mxu0
        %v463 = vadd.f32 0.0, %v462
        %464 = vmatmul.bf16.gmra.mxu0 %v377
        %v465 = vpop.f32.mrf.mxu0
        %v466 = vadd.f32 0.0, %v465
        %v467 = vpop.f32.mrf.mxu0
        %v468 = vadd.f32 0.0, %v467
        %469 = vmatmul.bf16.gmra.mxu0 %v380
        %v470 = vpop.f32.mrf.mxu0
        %v471 = vadd.f32 0.0, %v470
        %v472 = vpop.f32.mrf.mxu0
        %v473 = vadd.f32 0.0, %v472
        %474 = vdwg.mxu0
        %v476 = vsel %vm333, %v313, 0
        %v479 = vsel %vm382, %v329, 0
        %481 = vmatpush.bf16.msra.mxu0 0
        %482 = vmatpush.bf16.msra.mxu0 0
        %483 = vmatpush.bf16.msra.mxu0 0
        %484 = vmatpush.bf16.msra.mxu0 0
        %485 = vmatpush.bf16.msra.mxu0 0
        %486 = vmatpush.bf16.msra.mxu0 0
        %487 = vmatpush.bf16.msra.mxu0 0
        %488 = vmatpush.bf16.msra.mxu0 %v479
        %489 = vmatmul.bf16.gmra.mxu0 %v476
        %v490 = vpop.f32.mrf.mxu0
        %v491 = vadd.f32 %v396, %v490
        %v492 = vpop.f32.mrf.mxu0
        %v493 = vadd.f32 %v398, %v492
        %494 = vmatmul.bf16.gmra.mxu0 %v335
        %v495 = vpop.f32.mrf.mxu0
        %v496 = vadd.f32 %v401, %v495
        %v497 = vpop.f32.mrf.mxu0
        %v498 = vadd.f32 %v403, %v497
        %499 = vmatmul.bf16.gmra.mxu0 %v338
        %v500 = vpop.f32.mrf.mxu0
        %v501 = vadd.f32 %v406, %v500
        %v502 = vpop.f32.mrf.mxu0
        %v503 = vadd.f32 %v408, %v502
        %504 = vmatmul.bf16.gmra.mxu0 %v341
        %v505 = vpop.f32.mrf.mxu0
        %v506 = vadd.f32 %v411, %v505
        %v507 = vpop.f32.mrf.mxu0
        %v508 = vadd.f32 %v413, %v507
        %509 = vmatmul.bf16.gmra.mxu0 %v344
        %v510 = vpop.f32.mrf.mxu0
        %v511 = vadd.f32 %v416, %v510
        %v512 = vpop.f32.mrf.mxu0
        %v513 = vadd.f32 %v418, %v512
        %514 = vmatmul.bf16.gmra.mxu0 %v347
        %v515 = vpop.f32.mrf.mxu0
        %v516 = vadd.f32 %v421, %v515
        %v517 = vpop.f32.mrf.mxu0
        %v518 = vadd.f32 %v423, %v517
        %519 = vmatmul.bf16.gmra.mxu0 %v350
        %v520 = vpop.f32.mrf.mxu0
        %v521 = vadd.f32 %v426, %v520
        %v522 = vpop.f32.mrf.mxu0
        %v523 = vadd.f32 %v428, %v522
        %524 = vmatmul.bf16.gmra.mxu0 %v353
        %v525 = vpop.f32.mrf.mxu0
        %v526 = vadd.f32 %v431, %v525
        %v527 = vpop.f32.mrf.mxu0
        %v528 = vadd.f32 %v433, %v527
        %529 = vmatmul.bf16.gmra.mxu0 %v356
        %v530 = vpop.f32.mrf.mxu0
        %v531 = vadd.f32 %v436, %v530
        %v532 = vpop.f32.mrf.mxu0
        %v533 = vadd.f32 %v438, %v532
        %534 = vmatmul.bf16.gmra.mxu0 %v359
        %v535 = vpop.f32.mrf.mxu0
        %v536 = vadd.f32 %v441, %v535
        %v537 = vpop.f32.mrf.mxu0
        %v538 = vadd.f32 %v443, %v537
        %539 = vmatmul.bf16.gmra.mxu0 %v362
        %v540 = vpop.f32.mrf.mxu0
        %v541 = vadd.f32 %v446, %v540
        %v542 = vpop.f32.mrf.mxu0
        %v543 = vadd.f32 %v448, %v542
        %544 = vmatmul.bf16.gmra.mxu0 %v365
        %v545 = vpop.f32.mrf.mxu0
        %v546 = vadd.f32 %v451, %v545
        %v547 = vpop.f32.mrf.mxu0
        %v548 = vadd.f32 %v453, %v547
        %549 = vmatmul.bf16.gmra.mxu0 %v368
        %v550 = vpop.f32.mrf.mxu0
        %v551 = vadd.f32 %v456, %v550
        %v552 = vpop.f32.mrf.mxu0
        %v553 = vadd.f32 %v458, %v552
        %554 = vmatmul.bf16.gmra.mxu0 %v371
        %v555 = vpop.f32.mrf.mxu0
        %v556 = vadd.f32 %v461, %v555
        %v557 = vpop.f32.mrf.mxu0
        %v558 = vadd.f32 %v463, %v557
        %559 = vmatmul.bf16.gmra.mxu0 %v374
        %v560 = vpop.f32.mrf.mxu0
        %v561 = vadd.f32 %v466, %v560
        %v562 = vpop.f32.mrf.mxu0
        %v563 = vadd.f32 %v468, %v562
        %564 = vmatmul.bf16.gmra.mxu0 %v377
        %v565 = vpop.f32.mrf.mxu0
        %v566 = vadd.f32 %v471, %v565
        %v567 = vpop.f32.mrf.mxu0
        %v568 = vadd.f32 %v473, %v567
        %569 = vdwg.mxu0
        %v570 = vpack.c.bf16 %v312, %v311
        %s571 = scalar_lea.vmem %s1, 24
        %v572 = vld [vmem:[%s571] sm:$0xf]
        %v574 = vsel %vm333, %v570, 0
        %v577 = vsel %vm382, %v572, 0
        %579 = vmatpush.bf16.msra.mxu0 0
        %580 = vmatpush.bf16.msra.mxu0 0
        %581 = vmatpush.bf16.msra.mxu0 0
        %582 = vmatpush.bf16.msra.mxu0 0
        %583 = vmatpush.bf16.msra.mxu0 0
        %584 = vmatpush.bf16.msra.mxu0 0
        %585 = vmatpush.bf16.msra.mxu0 0
        %586 = vmatpush.bf16.msra.mxu0 %v577
        %587 = vmatmul.bf16.gmra.mxu0 %v338
        %v588 = vpop.f32.mrf.mxu0
        %v589 = vadd.f32 0.0, %v588
        %v590 = vpop.f32.mrf.mxu0
        %v591 = vadd.f32 0.0, %v590
        %592 = vmatmul.bf16.gmra.mxu0 %v341
        %v593 = vpop.f32.mrf.mxu0
        %v594 = vadd.f32 0.0, %v593
        %v595 = vpop.f32.mrf.mxu0
        %v596 = vadd.f32 0.0, %v595
        %597 = vmatmul.bf16.gmra.mxu0 %v344
        %v598 = vpop.f32.mrf.mxu0
        %v599 = vadd.f32 0.0, %v598
        %v600 = vpop.f32.mrf.mxu0
        %v601 = vadd.f32 0.0, %v600
        %602 = vmatmul.bf16.gmra.mxu0 %v347
        %v603 = vpop.f32.mrf.mxu0
        %v604 = vadd.f32 0.0, %v603
        %v605 = vpop.f32.mrf.mxu0
        %v606 = vadd.f32 0.0, %v605
        %607 = vmatmul.bf16.gmra.mxu0 %v350
        %v608 = vpop.f32.mrf.mxu0
        %v609 = vadd.f32 0.0, %v608
        %v610 = vpop.f32.mrf.mxu0
        %v611 = vadd.f32 0.0, %v610
        %612 = vmatmul.bf16.gmra.mxu0 %v353
        %v613 = vpop.f32.mrf.mxu0
        %v614 = vadd.f32 0.0, %v613
        %v615 = vpop.f32.mrf.mxu0
        %v616 = vadd.f32 0.0, %v615
        %617 = vmatmul.bf16.gmra.mxu0 %v356
        %v618 = vpop.f32.mrf.mxu0
        %v619 = vadd.f32 0.0, %v618
        %v620 = vpop.f32.mrf.mxu0
        %v621 = vadd.f32 0.0, %v620
        %622 = vmatmul.bf16.gmra.mxu0 %v359
        %v623 = vpop.f32.mrf.mxu0
        %v624 = vadd.f32 0.0, %v623
        %v625 = vpop.f32.mrf.mxu0
        %v626 = vadd.f32 0.0, %v625
        %627 = vmatmul.bf16.gmra.mxu0 %v362
        %v628 = vpop.f32.mrf.mxu0
        %v629 = vadd.f32 0.0, %v628
        %v630 = vpop.f32.mrf.mxu0
        %v631 = vadd.f32 0.0, %v630
        %632 = vmatmul.bf16.gmra.mxu0 %v365
        %v633 = vpop.f32.mrf.mxu0
        %v634 = vadd.f32 0.0, %v633
        %v635 = vpop.f32.mrf.mxu0
        %v636 = vadd.f32 0.0, %v635
        %637 = vmatmul.bf16.gmra.mxu0 %v368
        %v638 = vpop.f32.mrf.mxu0
        %v639 = vadd.f32 0.0, %v638
        %v640 = vpop.f32.mrf.mxu0
        %v641 = vadd.f32 0.0, %v640
        %642 = vmatmul.bf16.gmra.mxu0 %v371
        %v643 = vpop.f32.mrf.mxu0
        %v644 = vadd.f32 0.0, %v643
        %v645 = vpop.f32.mrf.mxu0
        %v646 = vadd.f32 0.0, %v645
        %647 = vmatmul.bf16.gmra.mxu0 %v374
        %v648 = vpop.f32.mrf.mxu0
        %v649 = vadd.f32 0.0, %v648
        %v650 = vpop.f32.mrf.mxu0
        %v651 = vadd.f32 0.0, %v650
        %652 = vmatmul.bf16.gmra.mxu0 %v377
        %v653 = vpop.f32.mrf.mxu0
        %v654 = vadd.f32 0.0, %v653
        %v655 = vpop.f32.mrf.mxu0
        %v656 = vadd.f32 0.0, %v655
        %657 = vmatmul.bf16.gmra.mxu0 %v380
        %v658 = vpop.f32.mrf.mxu0
        %v659 = vadd.f32 0.0, %v658
        %v660 = vpop.f32.mrf.mxu0
        %v661 = vadd.f32 0.0, %v660
        %662 = vmatmul.bf16.gmra.mxu0 %v574
        %v663 = vpop.f32.mrf.mxu0
        %v664 = vadd.f32 0.0, %v663
        %v665 = vpop.f32.mrf.mxu0
        %v666 = vadd.f32 0.0, %v665
        %667 = vdwg.mxu0
        %v668 = vadd.f32 %v491, %v589
        %v669 = vadd.f32 %v493, %v591
        %v670 = vadd.f32 %v496, %v594
        %v671 = vadd.f32 %v498, %v596
        %v672 = vadd.f32 %v501, %v599
        %v673 = vadd.f32 %v503, %v601
        %v674 = vadd.f32 %v506, %v604
        %v675 = vadd.f32 %v508, %v606
        %v676 = vadd.f32 %v511, %v609
        %v677 = vadd.f32 %v513, %v611
        %v678 = vadd.f32 %v516, %v614
        %v679 = vadd.f32 %v518, %v616
        %v680 = vadd.f32 %v521, %v619
        %v681 = vadd.f32 %v523, %v621
        %v682 = vadd.f32 %v526, %v624
        %v683 = vadd.f32 %v528, %v626
        %v684 = vadd.f32 %v531, %v629
        %v685 = vadd.f32 %v533, %v631
        %v686 = vadd.f32 %v536, %v634
        %v687 = vadd.f32 %v538, %v636
        %v688 = vadd.f32 %v541, %v639
        %v689 = vadd.f32 %v543, %v641
        %v690 = vadd.f32 %v546, %v644
        %v691 = vadd.f32 %v548, %v646
        %v692 = vadd.f32 %v551, %v649
        %v693 = vadd.f32 %v553, %v651
        %v694 = vadd.f32 %v556, %v654
        %v695 = vadd.f32 %v558, %v656
        %v696 = vadd.f32 %v561, %v659
        %v697 = vadd.f32 %v563, %v661
        %v698 = vadd.f32 %v566, %v664
        %v699 = vadd.f32 %v568, %v666
        %v700 = vld [vmem:[%s275 + $0x1] sm:$0xff]
        %v701 = vld [vmem:[%s275 + $0x9] sm:$0xff]
        %v702 = vld [vmem:[%s275 + $0x19] sm:$0xff]
        %v703 = vld [vmem:[%s275 + $0x21] sm:$0xff]
        %v704 = vld [vmem:[%s275 + $0x31] sm:$0xff]
        %v705 = vld [vmem:[%s275 + $0x39] sm:$0xff]
        %v706 = vld [vmem:[%s275 + $0x49] sm:$0xff]
        %v707 = vld [vmem:[%s275 + $0x51] sm:$0xff]
        %v708 = vld [vmem:[%s275 + $0x61] sm:$0xff]
        %v709 = vld [vmem:[%s275 + $0x69] sm:$0xff]
        %v710 = vld [vmem:[%s275 + $0x79] sm:$0xff]
        %v711 = vld [vmem:[%s275 + $0x81] sm:$0xff]
        %v712 = vld [vmem:[%s275 + $0x91] sm:$0xff]
        %v713 = vld [vmem:[%s275 + $0x99] sm:$0xff]
        %v714 = vld [vmem:[%s275 + $0xa9] sm:$0xff]
        %v715 = vld [vmem:[%s275 + $0xb1] sm:$0xff]
        %v716 = vld [vmem:[%s275 + $0xc1] sm:$0xff]
        %v717 = vld [vmem:[%s275 + $0xc9] sm:$0xff]
        %v718 = vld [vmem:[%s275 + $0xd9] sm:$0xff]
        %v719 = vld [vmem:[%s275 + $0xe1] sm:$0xff]
        %v720 = vld [vmem:[%s275 + $0xf1] sm:$0xff]
        %v721 = vld [vmem:[%s275 + $0xf9] sm:$0xff]
        %v722 = vld [vmem:[%s275 + $0x109] sm:$0xff]
        %v723 = vld [vmem:[%s275 + $0x111] sm:$0xff]
        %v724 = vld [vmem:[%s275 + $0x121] sm:$0xff]
        %v725 = vld [vmem:[%s275 + $0x129] sm:$0xff]
        %v726 = vld [vmem:[%s275 + $0x139] sm:$0xff]
        %v727 = vld [vmem:[%s275 + $0x141] sm:$0xff]
        %v728 = vld [vmem:[%s275 + $0x151] sm:$0xff]
        %v729 = vld [vmem:[%s275 + $0x159] sm:$0xff]
        %v730 = vld [vmem:[%s275 + $0x169] sm:$0xff]
        %v731 = vld [vmem:[%s275 + $0x171] sm:$0xff]
        %v732 = vld [vmem:[%s275 + $0x181] sm:$0xff]
        %v733 = vld [vmem:[%s275 + $0x189] sm:$0xff]
        %v734 = vld [vmem:[%s275 + $0x199] sm:$0xff]
        %v735 = vld [vmem:[%s275 + $0x1a1] sm:$0xff]
        %v736 = vpack.c.bf16 %v701, %v700
        %v737 = vpack.c.bf16 %v703, %v702
        %v738 = vpack.c.bf16 %v705, %v704
        %v739 = vpack.c.bf16 %v707, %v706
        %v740 = vpack.c.bf16 %v709, %v708
        %v741 = vpack.c.bf16 %v711, %v710
        %v742 = vpack.c.bf16 %v713, %v712
        %v743 = vpack.c.bf16 %v715, %v714
        %v744 = vpack.c.bf16 %v717, %v716
        %v745 = vpack.c.bf16 %v719, %v718
        %v746 = vpack.c.bf16 %v721, %v720
        %v747 = vpack.c.bf16 %v723, %v722
        %v748 = vpack.c.bf16 %v725, %v724
        %v749 = vpack.c.bf16 %v727, %v726
        %v750 = vpack.c.bf16 %v729, %v728
        %v751 = vpack.c.bf16 %v731, %v730
        %s752 = scalar_lea.vmem %s1, 4
        %v753 = vld [vmem:[%s752] sm:$0xf]
        %v755 = vsel %vm333, %v736, 0
        %v758 = vsel %vm333, %v737, 0
        %v761 = vsel %vm333, %v738, 0
        %v764 = vsel %vm333, %v739, 0
        %v767 = vsel %vm333, %v740, 0
        %v770 = vsel %vm333, %v741, 0
        %v773 = vsel %vm333, %v742, 0
        %v776 = vsel %vm333, %v743, 0
        %v779 = vsel %vm333, %v744, 0
        %v782 = vsel %vm333, %v745, 0
        %v785 = vsel %vm333, %v746, 0
        %v788 = vsel %vm333, %v747, 0
        %v791 = vsel %vm333, %v748, 0
        %v794 = vsel %vm333, %v749, 0
        %v797 = vsel %vm333, %v750, 0
        %v800 = vsel %vm333, %v751, 0
        %v803 = vsel %vm382, %v753, 0
        %805 = vmatpush.bf16.msra.mxu0 0
        %806 = vmatpush.bf16.msra.mxu0 0
        %807 = vmatpush.bf16.msra.mxu0 0
        %808 = vmatpush.bf16.msra.mxu0 0
        %809 = vmatpush.bf16.msra.mxu0 0
        %810 = vmatpush.bf16.msra.mxu0 0
        %811 = vmatpush.bf16.msra.mxu0 0
        %812 = vmatpush.bf16.msra.mxu0 %v803
        %813 = vmatmul.bf16.gmra.mxu0 %v755
        %v814 = vpop.f32.mrf.mxu0
        %v815 = vadd.f32 0.0, %v814
        %v816 = vpop.f32.mrf.mxu0
        %v817 = vadd.f32 0.0, %v816
        %818 = vmatmul.bf16.gmra.mxu0 %v758
        %v819 = vpop.f32.mrf.mxu0
        %v820 = vadd.f32 0.0, %v819
        %v821 = vpop.f32.mrf.mxu0
        %v822 = vadd.f32 0.0, %v821
        %823 = vmatmul.bf16.gmra.mxu0 %v761
        %v824 = vpop.f32.mrf.mxu0
        %v825 = vadd.f32 0.0, %v824
        %v826 = vpop.f32.mrf.mxu0
        %v827 = vadd.f32 0.0, %v826
        %828 = vmatmul.bf16.gmra.mxu0 %v764
        %v829 = vpop.f32.mrf.mxu0
        %v830 = vadd.f32 0.0, %v829
        %v831 = vpop.f32.mrf.mxu0
        %v832 = vadd.f32 0.0, %v831
        %833 = vmatmul.bf16.gmra.mxu0 %v767
        %v834 = vpop.f32.mrf.mxu0
        %v835 = vadd.f32 0.0, %v834
        %v836 = vpop.f32.mrf.mxu0
        %v837 = vadd.f32 0.0, %v836
        %838 = vmatmul.bf16.gmra.mxu0 %v770
        %v839 = vpop.f32.mrf.mxu0
        %v840 = vadd.f32 0.0, %v839
        %v841 = vpop.f32.mrf.mxu0
        %v842 = vadd.f32 0.0, %v841
        %843 = vmatmul.bf16.gmra.mxu0 %v773
        %v844 = vpop.f32.mrf.mxu0
        %v845 = vadd.f32 0.0, %v844
        %v846 = vpop.f32.mrf.mxu0
        %v847 = vadd.f32 0.0, %v846
        %848 = vmatmul.bf16.gmra.mxu0 %v776
        %v849 = vpop.f32.mrf.mxu0
        %v850 = vadd.f32 0.0, %v849
        %v851 = vpop.f32.mrf.mxu0
        %v852 = vadd.f32 0.0, %v851
        %853 = vmatmul.bf16.gmra.mxu0 %v779
        %v854 = vpop.f32.mrf.mxu0
        %v855 = vadd.f32 0.0, %v854
        %v856 = vpop.f32.mrf.mxu0
        %v857 = vadd.f32 0.0, %v856
        %858 = vmatmul.bf16.gmra.mxu0 %v782
        %v859 = vpop.f32.mrf.mxu0
        %v860 = vadd.f32 0.0, %v859
        %v861 = vpop.f32.mrf.mxu0
        %v862 = vadd.f32 0.0, %v861
        %863 = vmatmul.bf16.gmra.mxu0 %v785
        %v864 = vpop.f32.mrf.mxu0
        %v865 = vadd.f32 0.0, %v864
        %v866 = vpop.f32.mrf.mxu0
        %v867 = vadd.f32 0.0, %v866
        %868 = vmatmul.bf16.gmra.mxu0 %v788
        %v869 = vpop.f32.mrf.mxu0
        %v870 = vadd.f32 0.0, %v869
        %v871 = vpop.f32.mrf.mxu0
        %v872 = vadd.f32 0.0, %v871
        %873 = vmatmul.bf16.gmra.mxu0 %v791
        %v874 = vpop.f32.mrf.mxu0
        %v875 = vadd.f32 0.0, %v874
        %v876 = vpop.f32.mrf.mxu0
        %v877 = vadd.f32 0.0, %v876
        %878 = vmatmul.bf16.gmra.mxu0 %v794
        %v879 = vpop.f32.mrf.mxu0
        %v880 = vadd.f32 0.0, %v879
        %v881 = vpop.f32.mrf.mxu0
        %v882 = vadd.f32 0.0, %v881
        %883 = vmatmul.bf16.gmra.mxu0 %v797
        %v884 = vpop.f32.mrf.mxu0
        %v885 = vadd.f32 0.0, %v884
        %v886 = vpop.f32.mrf.mxu0
        %v887 = vadd.f32 0.0, %v886
        %888 = vmatmul.bf16.gmra.mxu0 %v800
        %v889 = vpop.f32.mrf.mxu0
        %v890 = vadd.f32 0.0, %v889
        %v891 = vpop.f32.mrf.mxu0
        %v892 = vadd.f32 0.0, %v891
        %893 = vdwg.mxu0
        %v894 = vadd.f32 %v668, %v815
        %v895 = vadd.f32 %v669, %v817
        %v896 = vadd.f32 %v670, %v820
        %v897 = vadd.f32 %v671, %v822
        %v898 = vadd.f32 %v672, %v825
        %v899 = vadd.f32 %v673, %v827
        %v900 = vadd.f32 %v674, %v830
        %v901 = vadd.f32 %v675, %v832
        %v902 = vadd.f32 %v676, %v835
        %v903 = vadd.f32 %v677, %v837
        %v904 = vadd.f32 %v678, %v840
        %v905 = vadd.f32 %v679, %v842
        %v906 = vadd.f32 %v680, %v845
        %v907 = vadd.f32 %v681, %v847
        %v908 = vadd.f32 %v682, %v850
        %v909 = vadd.f32 %v683, %v852
        %v910 = vadd.f32 %v684, %v855
        %v911 = vadd.f32 %v685, %v857
        %v912 = vadd.f32 %v686, %v860
        %v913 = vadd.f32 %v687, %v862
        %v914 = vadd.f32 %v688, %v865
        %v915 = vadd.f32 %v689, %v867
        %v916 = vadd.f32 %v690, %v870
        %v917 = vadd.f32 %v691, %v872
        %v918 = vadd.f32 %v692, %v875
        %v919 = vadd.f32 %v693, %v877
        %v920 = vadd.f32 %v694, %v880
        %v921 = vadd.f32 %v695, %v882
        %v922 = vadd.f32 %v696, %v885
        %v923 = vadd.f32 %v697, %v887
        %v924 = vadd.f32 %v698, %v890
        %v925 = vadd.f32 %v699, %v892
        %v926 = vpack.c.bf16 %v733, %v732
        %s927 = scalar_lea.vmem %s1, 16
        %v928 = vld [vmem:[%s927] sm:$0xf]
        %v930 = vsel %vm333, %v926, 0
        %v933 = vsel %vm382, %v928, 0
        %935 = vmatpush.bf16.msra.mxu0 0
        %936 = vmatpush.bf16.msra.mxu0 0
        %937 = vmatpush.bf16.msra.mxu0 0
        %938 = vmatpush.bf16.msra.mxu0 0
        %939 = vmatpush.bf16.msra.mxu0 0
        %940 = vmatpush.bf16.msra.mxu0 0
        %941 = vmatpush.bf16.msra.mxu0 0
        %942 = vmatpush.bf16.msra.mxu0 %v933
        %943 = vmatmul.bf16.gmra.mxu0 %v758
        %v944 = vpop.f32.mrf.mxu0
        %v945 = vadd.f32 0.0, %v944
        %v946 = vpop.f32.mrf.mxu0
        %v947 = vadd.f32 0.0, %v946
        %948 = vmatmul.bf16.gmra.mxu0 %v761
        %v949 = vpop.f32.mrf.mxu0
        %v950 = vadd.f32 0.0, %v949
        %v951 = vpop.f32.mrf.mxu0
        %v952 = vadd.f32 0.0, %v951
        %953 = vmatmul.bf16.gmra.mxu0 %v764
        %v954 = vpop.f32.mrf.mxu0
        %v955 = vadd.f32 0.0, %v954
        %v956 = vpop.f32.mrf.mxu0
        %v957 = vadd.f32 0.0, %v956
        %958 = vmatmul.bf16.gmra.mxu0 %v767
        %v959 = vpop.f32.mrf.mxu0
        %v960 = vadd.f32 0.0, %v959
        %v961 = vpop.f32.mrf.mxu0
        %v962 = vadd.f32 0.0, %v961
        %963 = vmatmul.bf16.gmra.mxu0 %v770
        %v964 = vpop.f32.mrf.mxu0
        %v965 = vadd.f32 0.0, %v964
        %v966 = vpop.f32.mrf.mxu0
        %v967 = vadd.f32 0.0, %v966
        %968 = vmatmul.bf16.gmra.mxu0 %v773
        %v969 = vpop.f32.mrf.mxu0
        %v970 = vadd.f32 0.0, %v969
        %v971 = vpop.f32.mrf.mxu0
        %v972 = vadd.f32 0.0, %v971
        %973 = vmatmul.bf16.gmra.mxu0 %v776
        %v974 = vpop.f32.mrf.mxu0
        %v975 = vadd.f32 0.0, %v974
        %v976 = vpop.f32.mrf.mxu0
        %v977 = vadd.f32 0.0, %v976
        %978 = vmatmul.bf16.gmra.mxu0 %v779
        %v979 = vpop.f32.mrf.mxu0
        %v980 = vadd.f32 0.0, %v979
        %v981 = vpop.f32.mrf.mxu0
        %v982 = vadd.f32 0.0, %v981
        %983 = vmatmul.bf16.gmra.mxu0 %v782
        %v984 = vpop.f32.mrf.mxu0
        %v985 = vadd.f32 0.0, %v984
        %v986 = vpop.f32.mrf.mxu0
        %v987 = vadd.f32 0.0, %v986
        %988 = vmatmul.bf16.gmra.mxu0 %v785
        %v989 = vpop.f32.mrf.mxu0
        %v990 = vadd.f32 0.0, %v989
        %v991 = vpop.f32.mrf.mxu0
        %v992 = vadd.f32 0.0, %v991
        %993 = vmatmul.bf16.gmra.mxu0 %v788
        %v994 = vpop.f32.mrf.mxu0
        %v995 = vadd.f32 0.0, %v994
        %v996 = vpop.f32.mrf.mxu0
        %v997 = vadd.f32 0.0, %v996
        %998 = vmatmul.bf16.gmra.mxu0 %v791
        %v999 = vpop.f32.mrf.mxu0
        %v1000 = vadd.f32 0.0, %v999
        %v1001 = vpop.f32.mrf.mxu0
        %v1002 = vadd.f32 0.0, %v1001
        %1003 = vmatmul.bf16.gmra.mxu0 %v794
        %v1004 = vpop.f32.mrf.mxu0
        %v1005 = vadd.f32 0.0, %v1004
        %v1006 = vpop.f32.mrf.mxu0
        %v1007 = vadd.f32 0.0, %v1006
        %1008 = vmatmul.bf16.gmra.mxu0 %v797
        %v1009 = vpop.f32.mrf.mxu0
        %v1010 = vadd.f32 0.0, %v1009
        %v1011 = vpop.f32.mrf.mxu0
        %v1012 = vadd.f32 0.0, %v1011
        %1013 = vmatmul.bf16.gmra.mxu0 %v800
        %v1014 = vpop.f32.mrf.mxu0
        %v1015 = vadd.f32 0.0, %v1014
        %v1016 = vpop.f32.mrf.mxu0
        %v1017 = vadd.f32 0.0, %v1016
        %1018 = vmatmul.bf16.gmra.mxu0 %v930
        %v1019 = vpop.f32.mrf.mxu0
        %v1020 = vadd.f32 0.0, %v1019
        %v1021 = vpop.f32.mrf.mxu0
        %v1022 = vadd.f32 0.0, %v1021
        %1023 = vdwg.mxu0
        %v1024 = vadd.f32 %v894, %v945
        %v1025 = vadd.f32 %v895, %v947
        %v1026 = vadd.f32 %v896, %v950
        %v1027 = vadd.f32 %v897, %v952
        %v1028 = vadd.f32 %v898, %v955
        %v1029 = vadd.f32 %v899, %v957
        %v1030 = vadd.f32 %v900, %v960
        %v1031 = vadd.f32 %v901, %v962
        %v1032 = vadd.f32 %v902, %v965
        %v1033 = vadd.f32 %v903, %v967
        %v1034 = vadd.f32 %v904, %v970
        %v1035 = vadd.f32 %v905, %v972
        %v1036 = vadd.f32 %v906, %v975
        %v1037 = vadd.f32 %v907, %v977
        %v1038 = vadd.f32 %v908, %v980
        %v1039 = vadd.f32 %v909, %v982
        %v1040 = vadd.f32 %v910, %v985
        %v1041 = vadd.f32 %v911, %v987
        %v1042 = vadd.f32 %v912, %v990
        %v1043 = vadd.f32 %v913, %v992
        %v1044 = vadd.f32 %v914, %v995
        %v1045 = vadd.f32 %v915, %v997
        %v1046 = vadd.f32 %v916, %v1000
        %v1047 = vadd.f32 %v917, %v1002
        %v1048 = vadd.f32 %v918, %v1005
        %v1049 = vadd.f32 %v919, %v1007
        %v1050 = vadd.f32 %v920, %v1010
        %v1051 = vadd.f32 %v921, %v1012
        %v1052 = vadd.f32 %v922, %v1015
        %v1053 = vadd.f32 %v923, %v1017
        %v1054 = vadd.f32 %v924, %v1020
        %v1055 = vadd.f32 %v925, %v1022
        %v1056 = vpack.c.bf16 %v735, %v734
        %s1057 = scalar_lea.vmem %s1, 28
        %v1058 = vld [vmem:[%s1057] sm:$0xf]
        %v1060 = vsel %vm333, %v1056, 0
        %v1063 = vsel %vm382, %v1058, 0
        %1065 = vmatpush.bf16.msra.mxu0 0
        %1066 = vmatpush.bf16.msra.mxu0 0
        %1067 = vmatpush.bf16.msra.mxu0 0
        %1068 = vmatpush.bf16.msra.mxu0 0
        %1069 = vmatpush.bf16.msra.mxu0 0
        %1070 = vmatpush.bf16.msra.mxu0 0
        %1071 = vmatpush.bf16.msra.mxu0 0
        %1072 = vmatpush.bf16.msra.mxu0 %v1063
        %1073 = vmatmul.bf16.gmra.mxu0 %v761
        %v1074 = vpop.f32.mrf.mxu0
        %v1075 = vadd.f32 0.0, %v1074
        %v1076 = vpop.f32.mrf.mxu0
        %v1077 = vadd.f32 0.0, %v1076
        %1078 = vmatmul.bf16.gmra.mxu0 %v764
        %v1079 = vpop.f32.mrf.mxu0
        %v1080 = vadd.f32 0.0, %v1079
        %v1081 = vpop.f32.mrf.mxu0
        %v1082 = vadd.f32 0.0, %v1081
        %1083 = vmatmul.bf16.gmra.mxu0 %v767
        %v1084 = vpop.f32.mrf.mxu0
        %v1085 = vadd.f32 0.0, %v1084
        %v1086 = vpop.f32.mrf.mxu0
        %v1087 = vadd.f32 0.0, %v1086
        %1088 = vmatmul.bf16.gmra.mxu0 %v770
        %v1089 = vpop.f32.mrf.mxu0
        %v1090 = vadd.f32 0.0, %v1089
        %v1091 = vpop.f32.mrf.mxu0
        %v1092 = vadd.f32 0.0, %v1091
        %1093 = vmatmul.bf16.gmra.mxu0 %v773
        %v1094 = vpop.f32.mrf.mxu0
        %v1095 = vadd.f32 0.0, %v1094
        %v1096 = vpop.f32.mrf.mxu0
        %v1097 = vadd.f32 0.0, %v1096
        %1098 = vmatmul.bf16.gmra.mxu0 %v776
        %v1099 = vpop.f32.mrf.mxu0
        %v1100 = vadd.f32 0.0, %v1099
        %v1101 = vpop.f32.mrf.mxu0
        %v1102 = vadd.f32 0.0, %v1101
        %1103 = vmatmul.bf16.gmra.mxu0 %v779
        %v1104 = vpop.f32.mrf.mxu0
        %v1105 = vadd.f32 0.0, %v1104
        %v1106 = vpop.f32.mrf.mxu0
        %v1107 = vadd.f32 0.0, %v1106
        %1108 = vmatmul.bf16.gmra.mxu0 %v782
        %v1109 = vpop.f32.mrf.mxu0
        %v1110 = vadd.f32 0.0, %v1109
        %v1111 = vpop.f32.mrf.mxu0
        %v1112 = vadd.f32 0.0, %v1111
        %1113 = vmatmul.bf16.gmra.mxu0 %v785
        %v1114 = vpop.f32.mrf.mxu0
        %v1115 = vadd.f32 0.0, %v1114
        %v1116 = vpop.f32.mrf.mxu0
        %v1117 = vadd.f32 0.0, %v1116
        %1118 = vmatmul.bf16.gmra.mxu0 %v788
        %v1119 = vpop.f32.mrf.mxu0
        %v1120 = vadd.f32 0.0, %v1119
        %v1121 = vpop.f32.mrf.mxu0
        %v1122 = vadd.f32 0.0, %v1121
        %1123 = vmatmul.bf16.gmra.mxu0 %v791
        %v1124 = vpop.f32.mrf.mxu0
        %v1125 = vadd.f32 0.0, %v1124
        %v1126 = vpop.f32.mrf.mxu0
        %v1127 = vadd.f32 0.0, %v1126
        %1128 = vmatmul.bf16.gmra.mxu0 %v794
        %v1129 = vpop.f32.mrf.mxu0
        %v1130 = vadd.f32 0.0, %v1129
        %v1131 = vpop.f32.mrf.mxu0
        %v1132 = vadd.f32 0.0, %v1131
        %1133 = vmatmul.bf16.gmra.mxu0 %v797
        %v1134 = vpop.f32.mrf.mxu0
        %v1135 = vadd.f32 0.0, %v1134
        %v1136 = vpop.f32.mrf.mxu0
        %v1137 = vadd.f32 0.0, %v1136
        %1138 = vmatmul.bf16.gmra.mxu0 %v800
        %v1139 = vpop.f32.mrf.mxu0
        %v1140 = vadd.f32 0.0, %v1139
        %v1141 = vpop.f32.mrf.mxu0
        %v1142 = vadd.f32 0.0, %v1141
        %1143 = vmatmul.bf16.gmra.mxu0 %v930
        %v1144 = vpop.f32.mrf.mxu0
        %v1145 = vadd.f32 0.0, %v1144
        %v1146 = vpop.f32.mrf.mxu0
        %v1147 = vadd.f32 0.0, %v1146
        %1148 = vmatmul.bf16.gmra.mxu0 %v1060
        %v1149 = vpop.f32.mrf.mxu0
        %v1150 = vadd.f32 0.0, %v1149
        %v1151 = vpop.f32.mrf.mxu0
        %v1152 = vadd.f32 0.0, %v1151
        %1153 = vdwg.mxu0
        %v1154 = vadd.f32 %v1024, %v1075
        %v1155 = vadd.f32 %v1025, %v1077
        %v1156 = vadd.f32 %v1026, %v1080
        %v1157 = vadd.f32 %v1027, %v1082
        %v1158 = vadd.f32 %v1028, %v1085
        %v1159 = vadd.f32 %v1029, %v1087
        %v1160 = vadd.f32 %v1030, %v1090
        %v1161 = vadd.f32 %v1031, %v1092
        %v1162 = vadd.f32 %v1032, %v1095
        %v1163 = vadd.f32 %v1033, %v1097
        %v1164 = vadd.f32 %v1034, %v1100
        %v1165 = vadd.f32 %v1035, %v1102
        %v1166 = vadd.f32 %v1036, %v1105
        %v1167 = vadd.f32 %v1037, %v1107
        %v1168 = vadd.f32 %v1038, %v1110
        %v1169 = vadd.f32 %v1039, %v1112
        %v1170 = vadd.f32 %v1040, %v1115
        %v1171 = vadd.f32 %v1041, %v1117
        %v1172 = vadd.f32 %v1042, %v1120
        %v1173 = vadd.f32 %v1043, %v1122
        %v1174 = vadd.f32 %v1044, %v1125
        %v1175 = vadd.f32 %v1045, %v1127
        %v1176 = vadd.f32 %v1046, %v1130
        %v1177 = vadd.f32 %v1047, %v1132
        %v1178 = vadd.f32 %v1048, %v1135
        %v1179 = vadd.f32 %v1049, %v1137
        %v1180 = vadd.f32 %v1050, %v1140
        %v1181 = vadd.f32 %v1051, %v1142
        %v1182 = vadd.f32 %v1052, %v1145
        %v1183 = vadd.f32 %v1053, %v1147
        %v1184 = vadd.f32 %v1054, %v1150
        %v1185 = vadd.f32 %v1055, %v1152
        %v1186 = vld [vmem:[%s275 + $0x2] sm:$0xff]
        %v1187 = vld [vmem:[%s275 + $0xa] sm:$0xff]
        %v1188 = vld [vmem:[%s275 + $0x1a] sm:$0xff]
        %v1189 = vld [vmem:[%s275 + $0x22] sm:$0xff]
        %v1190 = vld [vmem:[%s275 + $0x32] sm:$0xff]
        %v1191 = vld [vmem:[%s275 + $0x3a] sm:$0xff]
        %v1192 = vld [vmem:[%s275 + $0x4a] sm:$0xff]
        %v1193 = vld [vmem:[%s275 + $0x52] sm:$0xff]
        %v1194 = vld [vmem:[%s275 + $0x62] sm:$0xff]
        %v1195 = vld [vmem:[%s275 + $0x6a] sm:$0xff]
        %v1196 = vld [vmem:[%s275 + $0x7a] sm:$0xff]
        %v1197 = vld [vmem:[%s275 + $0x82] sm:$0xff]
        %v1198 = vld [vmem:[%s275 + $0x92] sm:$0xff]
        %v1199 = vld [vmem:[%s275 + $0x9a] sm:$0xff]
        %v1200 = vld [vmem:[%s275 + $0xaa] sm:$0xff]
        %v1201 = vld [vmem:[%s275 + $0xb2] sm:$0xff]
        %v1202 = vld [vmem:[%s275 + $0xc2] sm:$0xff]
        %v1203 = vld [vmem:[%s275 + $0xca] sm:$0xff]
        %v1204 = vld [vmem:[%s275 + $0xda] sm:$0xff]
        %v1205 = vld [vmem:[%s275 + $0xe2] sm:$0xff]
        %v1206 = vld [vmem:[%s275 + $0xf2] sm:$0xff]
        %v1207 = vld [vmem:[%s275 + $0xfa] sm:$0xff]
        %v1208 = vld [vmem:[%s275 + $0x10a] sm:$0xff]
        %v1209 = vld [vmem:[%s275 + $0x112] sm:$0xff]
        %v1210 = vld [vmem:[%s275 + $0x122] sm:$0xff]
        %v1211 = vld [vmem:[%s275 + $0x12a] sm:$0xff]
        %v1212 = vld [vmem:[%s275 + $0x13a] sm:$0xff]
        %v1213 = vld [vmem:[%s275 + $0x142] sm:$0xff]
        %v1214 = vld [vmem:[%s275 + $0x152] sm:$0xff]
        %v1215 = vld [vmem:[%s275 + $0x15a] sm:$0xff]
        %v1216 = vld [vmem:[%s275 + $0x16a] sm:$0xff]
        %v1217 = vld [vmem:[%s275 + $0x172] sm:$0xff]
        %v1218 = vld [vmem:[%s275 + $0x182] sm:$0xff]
        %v1219 = vld [vmem:[%s275 + $0x18a] sm:$0xff]
        %v1220 = vld [vmem:[%s275 + $0x19a] sm:$0xff]
        %v1221 = vld [vmem:[%s275 + $0x1a2] sm:$0xff]
        %v1222 = vpack.c.bf16 %v1187, %v1186
        %v1223 = vpack.c.bf16 %v1189, %v1188
        %v1224 = vpack.c.bf16 %v1191, %v1190
        %v1225 = vpack.c.bf16 %v1193, %v1192
        %v1226 = vpack.c.bf16 %v1195, %v1194
        %v1227 = vpack.c.bf16 %v1197, %v1196
        %v1228 = vpack.c.bf16 %v1199, %v1198
        %v1229 = vpack.c.bf16 %v1201, %v1200
        %v1230 = vpack.c.bf16 %v1203, %v1202
        %v1231 = vpack.c.bf16 %v1205, %v1204
        %v1232 = vpack.c.bf16 %v1207, %v1206
        %v1233 = vpack.c.bf16 %v1209, %v1208
        %v1234 = vpack.c.bf16 %v1211, %v1210
        %v1235 = vpack.c.bf16 %v1213, %v1212
        %v1236 = vpack.c.bf16 %v1215, %v1214
        %v1237 = vpack.c.bf16 %v1217, %v1216
        %s1238 = scalar_lea.vmem %s1, 8
        %v1239 = vld [vmem:[%s1238] sm:$0xf]
        %v1241 = vsel %vm333, %v1222, 0
        %v1244 = vsel %vm333, %v1223, 0
        %v1247 = vsel %vm333, %v1224, 0
        %v1250 = vsel %vm333, %v1225, 0
        %v1253 = vsel %vm333, %v1226, 0
        %v1256 = vsel %vm333, %v1227, 0
        %v1259 = vsel %vm333, %v1228, 0
        %v1262 = vsel %vm333, %v1229, 0
        %v1265 = vsel %vm333, %v1230, 0
        %v1268 = vsel %vm333, %v1231, 0
        %v1271 = vsel %vm333, %v1232, 0
        %v1274 = vsel %vm333, %v1233, 0
        %v1277 = vsel %vm333, %v1234, 0
        %v1280 = vsel %vm333, %v1235, 0
        %v1283 = vsel %vm333, %v1236, 0
        %v1286 = vsel %vm333, %v1237, 0
        %v1289 = vsel %vm382, %v1239, 0
        %1291 = vmatpush.bf16.msra.mxu0 0
        %1292 = vmatpush.bf16.msra.mxu0 0
        %1293 = vmatpush.bf16.msra.mxu0 0
        %1294 = vmatpush.bf16.msra.mxu0 0
        %1295 = vmatpush.bf16.msra.mxu0 0
        %1296 = vmatpush.bf16.msra.mxu0 0
        %1297 = vmatpush.bf16.msra.mxu0 0
        %1298 = vmatpush.bf16.msra.mxu0 %v1289
        %1299 = vmatmul.bf16.gmra.mxu0 %v1241
        %v1300 = vpop.f32.mrf.mxu0
        %v1301 = vadd.f32 0.0, %v1300
        %v1302 = vpop.f32.mrf.mxu0
        %v1303 = vadd.f32 0.0, %v1302
        %1304 = vmatmul.bf16.gmra.mxu0 %v1244
        %v1305 = vpop.f32.mrf.mxu0
        %v1306 = vadd.f32 0.0, %v1305
        %v1307 = vpop.f32.mrf.mxu0
        %v1308 = vadd.f32 0.0, %v1307
        %1309 = vmatmul.bf16.gmra.mxu0 %v1247
        %v1310 = vpop.f32.mrf.mxu0
        %v1311 = vadd.f32 0.0, %v1310
        %v1312 = vpop.f32.mrf.mxu0
        %v1313 = vadd.f32 0.0, %v1312
        %1314 = vmatmul.bf16.gmra.mxu0 %v1250
        %v1315 = vpop.f32.mrf.mxu0
        %v1316 = vadd.f32 0.0, %v1315
        %v1317 = vpop.f32.mrf.mxu0
        %v1318 = vadd.f32 0.0, %v1317
        %1319 = vmatmul.bf16.gmra.mxu0 %v1253
        %v1320 = vpop.f32.mrf.mxu0
        %v1321 = vadd.f32 0.0, %v1320
        %v1322 = vpop.f32.mrf.mxu0
        %v1323 = vadd.f32 0.0, %v1322
        %1324 = vmatmul.bf16.gmra.mxu0 %v1256
        %v1325 = vpop.f32.mrf.mxu0
        %v1326 = vadd.f32 0.0, %v1325
        %v1327 = vpop.f32.mrf.mxu0
        %v1328 = vadd.f32 0.0, %v1327
        %1329 = vmatmul.bf16.gmra.mxu0 %v1259
        %v1330 = vpop.f32.mrf.mxu0
        %v1331 = vadd.f32 0.0, %v1330
        %v1332 = vpop.f32.mrf.mxu0
        %v1333 = vadd.f32 0.0, %v1332
        %1334 = vmatmul.bf16.gmra.mxu0 %v1262
        %v1335 = vpop.f32.mrf.mxu0
        %v1336 = vadd.f32 0.0, %v1335
        %v1337 = vpop.f32.mrf.mxu0
        %v1338 = vadd.f32 0.0, %v1337
        %1339 = vmatmul.bf16.gmra.mxu0 %v1265
        %v1340 = vpop.f32.mrf.mxu0
        %v1341 = vadd.f32 0.0, %v1340
        %v1342 = vpop.f32.mrf.mxu0
        %v1343 = vadd.f32 0.0, %v1342
        %1344 = vmatmul.bf16.gmra.mxu0 %v1268
        %v1345 = vpop.f32.mrf.mxu0
        %v1346 = vadd.f32 0.0, %v1345
        %v1347 = vpop.f32.mrf.mxu0
        %v1348 = vadd.f32 0.0, %v1347
        %1349 = vmatmul.bf16.gmra.mxu0 %v1271
        %v1350 = vpop.f32.mrf.mxu0
        %v1351 = vadd.f32 0.0, %v1350
        %v1352 = vpop.f32.mrf.mxu0
        %v1353 = vadd.f32 0.0, %v1352
        %1354 = vmatmul.bf16.gmra.mxu0 %v1274
        %v1355 = vpop.f32.mrf.mxu0
        %v1356 = vadd.f32 0.0, %v1355
        %v1357 = vpop.f32.mrf.mxu0
        %v1358 = vadd.f32 0.0, %v1357
        %1359 = vmatmul.bf16.gmra.mxu0 %v1277
        %v1360 = vpop.f32.mrf.mxu0
        %v1361 = vadd.f32 0.0, %v1360
        %v1362 = vpop.f32.mrf.mxu0
        %v1363 = vadd.f32 0.0, %v1362
        %1364 = vmatmul.bf16.gmra.mxu0 %v1280
        %v1365 = vpop.f32.mrf.mxu0
        %v1366 = vadd.f32 0.0, %v1365
        %v1367 = vpop.f32.mrf.mxu0
        %v1368 = vadd.f32 0.0, %v1367
        %1369 = vmatmul.bf16.gmra.mxu0 %v1283
        %v1370 = vpop.f32.mrf.mxu0
        %v1371 = vadd.f32 0.0, %v1370
        %v1372 = vpop.f32.mrf.mxu0
        %v1373 = vadd.f32 0.0, %v1372
        %1374 = vmatmul.bf16.gmra.mxu0 %v1286
        %v1375 = vpop.f32.mrf.mxu0
        %v1376 = vadd.f32 0.0, %v1375
        %v1377 = vpop.f32.mrf.mxu0
        %v1378 = vadd.f32 0.0, %v1377
        %1379 = vdwg.mxu0
        %v1380 = vadd.f32 %v1154, %v1301
        %v1381 = vadd.f32 %v1155, %v1303
        %v1382 = vadd.f32 %v1156, %v1306
        %v1383 = vadd.f32 %v1157, %v1308
        %v1384 = vadd.f32 %v1158, %v1311
        %v1385 = vadd.f32 %v1159, %v1313
        %v1386 = vadd.f32 %v1160, %v1316
        %v1387 = vadd.f32 %v1161, %v1318
        %v1388 = vadd.f32 %v1162, %v1321
        %v1389 = vadd.f32 %v1163, %v1323
        %v1390 = vadd.f32 %v1164, %v1326
        %v1391 = vadd.f32 %v1165, %v1328
        %v1392 = vadd.f32 %v1166, %v1331
        %v1393 = vadd.f32 %v1167, %v1333
        %v1394 = vadd.f32 %v1168, %v1336
        %v1395 = vadd.f32 %v1169, %v1338
        %v1396 = vadd.f32 %v1170, %v1341
        %v1397 = vadd.f32 %v1171, %v1343
        %v1398 = vadd.f32 %v1172, %v1346
        %v1399 = vadd.f32 %v1173, %v1348
        %v1400 = vadd.f32 %v1174, %v1351
        %v1401 = vadd.f32 %v1175, %v1353
        %v1402 = vadd.f32 %v1176, %v1356
        %v1403 = vadd.f32 %v1177, %v1358
        %v1404 = vadd.f32 %v1178, %v1361
        %v1405 = vadd.f32 %v1179, %v1363
        %v1406 = vadd.f32 %v1180, %v1366
        %v1407 = vadd.f32 %v1181, %v1368
        %v1408 = vadd.f32 %v1182, %v1371
        %v1409 = vadd.f32 %v1183, %v1373
        %v1410 = vadd.f32 %v1184, %v1376
        %v1411 = vadd.f32 %v1185, %v1378
        %v1412 = vpack.c.bf16 %v1219, %v1218
        %s1413 = scalar_lea.vmem %s1, 20
        %v1414 = vld [vmem:[%s1413] sm:$0xf]
        %v1416 = vsel %vm333, %v1412, 0
        %v1419 = vsel %vm382, %v1414, 0
        %1421 = vmatpush.bf16.msra.mxu0 0
        %1422 = vmatpush.bf16.msra.mxu0 0
        %1423 = vmatpush.bf16.msra.mxu0 0
        %1424 = vmatpush.bf16.msra.mxu0 0
        %1425 = vmatpush.bf16.msra.mxu0 0
        %1426 = vmatpush.bf16.msra.mxu0 0
        %1427 = vmatpush.bf16.msra.mxu0 0
        %1428 = vmatpush.bf16.msra.mxu0 %v1419
        %1429 = vmatmul.bf16.gmra.mxu0 %v1244
        %v1430 = vpop.f32.mrf.mxu0
        %v1431 = vadd.f32 0.0, %v1430
        %v1432 = vpop.f32.mrf.mxu0
        %v1433 = vadd.f32 0.0, %v1432
        %1434 = vmatmul.bf16.gmra.mxu0 %v1247
        %v1435 = vpop.f32.mrf.mxu0
        %v1436 = vadd.f32 0.0, %v1435
        %v1437 = vpop.f32.mrf.mxu0
        %v1438 = vadd.f32 0.0, %v1437
        %1439 = vmatmul.bf16.gmra.mxu0 %v1250
        %v1440 = vpop.f32.mrf.mxu0
        %v1441 = vadd.f32 0.0, %v1440
        %v1442 = vpop.f32.mrf.mxu0
        %v1443 = vadd.f32 0.0, %v1442
        %1444 = vmatmul.bf16.gmra.mxu0 %v1253
        %v1445 = vpop.f32.mrf.mxu0
        %v1446 = vadd.f32 0.0, %v1445
        %v1447 = vpop.f32.mrf.mxu0
        %v1448 = vadd.f32 0.0, %v1447
        %1449 = vmatmul.bf16.gmra.mxu0 %v1256
        %v1450 = vpop.f32.mrf.mxu0
        %v1451 = vadd.f32 0.0, %v1450
        %v1452 = vpop.f32.mrf.mxu0
        %v1453 = vadd.f32 0.0, %v1452
        %1454 = vmatmul.bf16.gmra.mxu0 %v1259
        %v1455 = vpop.f32.mrf.mxu0
        %v1456 = vadd.f32 0.0, %v1455
        %v1457 = vpop.f32.mrf.mxu0
        %v1458 = vadd.f32 0.0, %v1457
        %1459 = vmatmul.bf16.gmra.mxu0 %v1262
        %v1460 = vpop.f32.mrf.mxu0
        %v1461 = vadd.f32 0.0, %v1460
        %v1462 = vpop.f32.mrf.mxu0
        %v1463 = vadd.f32 0.0, %v1462
        %1464 = vmatmul.bf16.gmra.mxu0 %v1265
        %v1465 = vpop.f32.mrf.mxu0
        %v1466 = vadd.f32 0.0, %v1465
        %v1467 = vpop.f32.mrf.mxu0
        %v1468 = vadd.f32 0.0, %v1467
        %1469 = vmatmul.bf16.gmra.mxu0 %v1268
        %v1470 = vpop.f32.mrf.mxu0
        %v1471 = vadd.f32 0.0, %v1470
        %v1472 = vpop.f32.mrf.mxu0
        %v1473 = vadd.f32 0.0, %v1472
        %1474 = vmatmul.bf16.gmra.mxu0 %v1271
        %v1475 = vpop.f32.mrf.mxu0
        %v1476 = vadd.f32 0.0, %v1475
        %v1477 = vpop.f32.mrf.mxu0
        %v1478 = vadd.f32 0.0, %v1477
        %1479 = vmatmul.bf16.gmra.mxu0 %v1274
        %v1480 = vpop.f32.mrf.mxu0
        %v1481 = vadd.f32 0.0, %v1480
        %v1482 = vpop.f32.mrf.mxu0
        %v1483 = vadd.f32 0.0, %v1482
        %1484 = vmatmul.bf16.gmra.mxu0 %v1277
        %v1485 = vpop.f32.mrf.mxu0
        %v1486 = vadd.f32 0.0, %v1485
        %v1487 = vpop.f32.mrf.mxu0
        %v1488 = vadd.f32 0.0, %v1487
        %1489 = vmatmul.bf16.gmra.mxu0 %v1280
        %v1490 = vpop.f32.mrf.mxu0
        %v1491 = vadd.f32 0.0, %v1490
        %v1492 = vpop.f32.mrf.mxu0
        %v1493 = vadd.f32 0.0, %v1492
        %1494 = vmatmul.bf16.gmra.mxu0 %v1283
        %v1495 = vpop.f32.mrf.mxu0
        %v1496 = vadd.f32 0.0, %v1495
        %v1497 = vpop.f32.mrf.mxu0
        %v1498 = vadd.f32 0.0, %v1497
        %1499 = vmatmul.bf16.gmra.mxu0 %v1286
        %v1500 = vpop.f32.mrf.mxu0
        %v1501 = vadd.f32 0.0, %v1500
        %v1502 = vpop.f32.mrf.mxu0
        %v1503 = vadd.f32 0.0, %v1502
        %1504 = vmatmul.bf16.gmra.mxu0 %v1416
        %v1505 = vpop.f32.mrf.mxu0
        %v1506 = vadd.f32 0.0, %v1505
        %v1507 = vpop.f32.mrf.mxu0
        %v1508 = vadd.f32 0.0, %v1507
        %1509 = vdwg.mxu0
        %v1510 = vadd.f32 %v1380, %v1431
        %v1511 = vadd.f32 %v1381, %v1433
        %v1512 = vadd.f32 %v1382, %v1436
        %v1513 = vadd.f32 %v1383, %v1438
        %v1514 = vadd.f32 %v1384, %v1441
        %v1515 = vadd.f32 %v1385, %v1443
        %v1516 = vadd.f32 %v1386, %v1446
        %v1517 = vadd.f32 %v1387, %v1448
        %v1518 = vadd.f32 %v1388, %v1451
        %v1519 = vadd.f32 %v1389, %v1453
        %v1520 = vadd.f32 %v1390, %v1456
        %v1521 = vadd.f32 %v1391, %v1458
        %v1522 = vadd.f32 %v1392, %v1461
        %v1523 = vadd.f32 %v1393, %v1463
        %v1524 = vadd.f32 %v1394, %v1466
        %v1525 = vadd.f32 %v1395, %v1468
        %v1526 = vadd.f32 %v1396, %v1471
        %v1527 = vadd.f32 %v1397, %v1473
        %v1528 = vadd.f32 %v1398, %v1476
        %v1529 = vadd.f32 %v1399, %v1478
        %v1530 = vadd.f32 %v1400, %v1481
        %v1531 = vadd.f32 %v1401, %v1483
        %v1532 = vadd.f32 %v1402, %v1486
        %v1533 = vadd.f32 %v1403, %v1488
        %v1534 = vadd.f32 %v1404, %v1491
        %v1535 = vadd.f32 %v1405, %v1493
        %v1536 = vadd.f32 %v1406, %v1496
        %v1537 = vadd.f32 %v1407, %v1498
        %v1538 = vadd.f32 %v1408, %v1501
        %v1539 = vadd.f32 %v1409, %v1503
        %v1540 = vadd.f32 %v1410, %v1506
        %v1541 = vadd.f32 %v1411, %v1508
        %v1542 = vpack.c.bf16 %v1221, %v1220
        %s1543 = scalar_lea.vmem %s1, 32
        %v1544 = vld [vmem:[%s1543] sm:$0xf]
        %v1546 = vsel %vm333, %v1542, 0
        %v1549 = vsel %vm382, %v1544, 0
        %1551 = vmatpush.bf16.msra.mxu0 0
        %1552 = vmatpush.bf16.msra.mxu0 0
        %1553 = vmatpush.bf16.msra.mxu0 0
        %1554 = vmatpush.bf16.msra.mxu0 0
        %1555 = vmatpush.bf16.msra.mxu0 0
        %1556 = vmatpush.bf16.msra.mxu0 0
        %1557 = vmatpush.bf16.msra.mxu0 0
        %1558 = vmatpush.bf16.msra.mxu0 %v1549
        %1559 = vmatmul.bf16.gmra.mxu0 %v1247
        %v1560 = vpop.f32.mrf.mxu0
        %v1561 = vadd.f32 0.0, %v1560
        %v1562 = vpop.f32.mrf.mxu0
        %v1563 = vadd.f32 0.0, %v1562
        %1564 = vmatmul.bf16.gmra.mxu0 %v1250
        %v1565 = vpop.f32.mrf.mxu0
        %v1566 = vadd.f32 0.0, %v1565
        %v1567 = vpop.f32.mrf.mxu0
        %v1568 = vadd.f32 0.0, %v1567
        %1569 = vmatmul.bf16.gmra.mxu0 %v1253
        %v1570 = vpop.f32.mrf.mxu0
        %v1571 = vadd.f32 0.0, %v1570
        %v1572 = vpop.f32.mrf.mxu0
        %v1573 = vadd.f32 0.0, %v1572
        %1574 = vmatmul.bf16.gmra.mxu0 %v1256
        %v1575 = vpop.f32.mrf.mxu0
        %v1576 = vadd.f32 0.0, %v1575
        %v1577 = vpop.f32.mrf.mxu0
        %v1578 = vadd.f32 0.0, %v1577
        %1579 = vmatmul.bf16.gmra.mxu0 %v1259
        %v1580 = vpop.f32.mrf.mxu0
        %v1581 = vadd.f32 0.0, %v1580
        %v1582 = vpop.f32.mrf.mxu0
        %v1583 = vadd.f32 0.0, %v1582
        %1584 = vmatmul.bf16.gmra.mxu0 %v1262
        %v1585 = vpop.f32.mrf.mxu0
        %v1586 = vadd.f32 0.0, %v1585
        %v1587 = vpop.f32.mrf.mxu0
        %v1588 = vadd.f32 0.0, %v1587
        %1589 = vmatmul.bf16.gmra.mxu0 %v1265
        %v1590 = vpop.f32.mrf.mxu0
        %v1591 = vadd.f32 0.0, %v1590
        %v1592 = vpop.f32.mrf.mxu0
        %v1593 = vadd.f32 0.0, %v1592
        %1594 = vmatmul.bf16.gmra.mxu0 %v1268
        %v1595 = vpop.f32.mrf.mxu0
        %v1596 = vadd.f32 0.0, %v1595
        %v1597 = vpop.f32.mrf.mxu0
        %v1598 = vadd.f32 0.0, %v1597
        %1599 = vmatmul.bf16.gmra.mxu0 %v1271
        %v1600 = vpop.f32.mrf.mxu0
        %v1601 = vadd.f32 0.0, %v1600
        %v1602 = vpop.f32.mrf.mxu0
        %v1603 = vadd.f32 0.0, %v1602
        %1604 = vmatmul.bf16.gmra.mxu0 %v1274
        %v1605 = vpop.f32.mrf.mxu0
        %v1606 = vadd.f32 0.0, %v1605
        %v1607 = vpop.f32.mrf.mxu0
        %v1608 = vadd.f32 0.0, %v1607
        %1609 = vmatmul.bf16.gmra.mxu0 %v1277
        %v1610 = vpop.f32.mrf.mxu0
        %v1611 = vadd.f32 0.0, %v1610
        %v1612 = vpop.f32.mrf.mxu0
        %v1613 = vadd.f32 0.0, %v1612
        %1614 = vmatmul.bf16.gmra.mxu0 %v1280
        %v1615 = vpop.f32.mrf.mxu0
        %v1616 = vadd.f32 0.0, %v1615
        %v1617 = vpop.f32.mrf.mxu0
        %v1618 = vadd.f32 0.0, %v1617
        %1619 = vmatmul.bf16.gmra.mxu0 %v1283
        %v1620 = vpop.f32.mrf.mxu0
        %v1621 = vadd.f32 0.0, %v1620
        %v1622 = vpop.f32.mrf.mxu0
        %v1623 = vadd.f32 0.0, %v1622
        %1624 = vmatmul.bf16.gmra.mxu0 %v1286
        %v1625 = vpop.f32.mrf.mxu0
        %v1626 = vadd.f32 0.0, %v1625
        %v1627 = vpop.f32.mrf.mxu0
        %v1628 = vadd.f32 0.0, %v1627
        %1629 = vmatmul.bf16.gmra.mxu0 %v1416
        %v1630 = vpop.f32.mrf.mxu0
        %v1631 = vadd.f32 0.0, %v1630
        %v1632 = vpop.f32.mrf.mxu0
        %v1633 = vadd.f32 0.0, %v1632
        %1634 = vmatmul.bf16.gmra.mxu0 %v1546
        %v1635 = vpop.f32.mrf.mxu0
        %v1636 = vadd.f32 0.0, %v1635
        %v1637 = vpop.f32.mrf.mxu0
        %v1638 = vadd.f32 0.0, %v1637
        %1639 = vdwg.mxu0
        %v1640 = vadd.f32 %v1510, %v1561
        %v1641 = vadd.f32 %v1511, %v1563
        %v1642 = vadd.f32 %v1512, %v1566
        %v1643 = vadd.f32 %v1513, %v1568
        %v1644 = vadd.f32 %v1514, %v1571
        %v1645 = vadd.f32 %v1515, %v1573
        %v1646 = vadd.f32 %v1516, %v1576
        %v1647 = vadd.f32 %v1517, %v1578
        %v1648 = vadd.f32 %v1518, %v1581
        %v1649 = vadd.f32 %v1519, %v1583
        %v1650 = vadd.f32 %v1520, %v1586
        %v1651 = vadd.f32 %v1521, %v1588
        %v1652 = vadd.f32 %v1522, %v1591
        %v1653 = vadd.f32 %v1523, %v1593
        %v1654 = vadd.f32 %v1524, %v1596
        %v1655 = vadd.f32 %v1525, %v1598
        %v1656 = vadd.f32 %v1526, %v1601
        %v1657 = vadd.f32 %v1527, %v1603
        %v1658 = vadd.f32 %v1528, %v1606
        %v1659 = vadd.f32 %v1529, %v1608
        %v1660 = vadd.f32 %v1530, %v1611
        %v1661 = vadd.f32 %v1531, %v1613
        %v1662 = vadd.f32 %v1532, %v1616
        %v1663 = vadd.f32 %v1533, %v1618
        %v1664 = vadd.f32 %v1534, %v1621
        %v1665 = vadd.f32 %v1535, %v1623
        %v1666 = vadd.f32 %v1536, %v1626
        %v1667 = vadd.f32 %v1537, %v1628
        %v1668 = vadd.f32 %v1538, %v1631
        %v1669 = vadd.f32 %v1539, %v1633
        %v1670 = vadd.f32 %v1540, %v1636
        %v1671 = vadd.f32 %v1541, %v1638
        %v1672 = vld [vmem:[%s2] sm:$0x1]
        %v1674 = vperm.slane %v1672, 0
        %v1676 = vadd.f32 %v1640, %v1674
        %v1677 = vadd.f32 %v1641, %v1674
        %v1678 = vadd.f32 %v1642, %v1674
        %v1679 = vadd.f32 %v1643, %v1674
        %v1680 = vadd.f32 %v1644, %v1674
        %v1681 = vadd.f32 %v1645, %v1674
        %v1682 = vadd.f32 %v1646, %v1674
        %v1683 = vadd.f32 %v1647, %v1674
        %v1684 = vadd.f32 %v1648, %v1674
        %v1685 = vadd.f32 %v1649, %v1674
        %v1686 = vadd.f32 %v1650, %v1674
        %v1687 = vadd.f32 %v1651, %v1674
        %v1688 = vadd.f32 %v1652, %v1674
        %v1689 = vadd.f32 %v1653, %v1674
        %v1690 = vadd.f32 %v1654, %v1674
        %v1691 = vadd.f32 %v1655, %v1674
        %v1692 = vadd.f32 %v1656, %v1674
        %v1693 = vadd.f32 %v1657, %v1674
        %v1694 = vadd.f32 %v1658, %v1674
        %v1695 = vadd.f32 %v1659, %v1674
        %v1696 = vadd.f32 %v1660, %v1674
        %v1697 = vadd.f32 %v1661, %v1674
        %v1698 = vadd.f32 %v1662, %v1674
        %v1699 = vadd.f32 %v1663, %v1674
        %v1700 = vadd.f32 %v1664, %v1674
        %v1701 = vadd.f32 %v1665, %v1674
        %v1702 = vadd.f32 %v1666, %v1674
        %v1703 = vadd.f32 %v1667, %v1674
        %v1704 = vadd.f32 %v1668, %v1674
        %v1705 = vadd.f32 %v1669, %v1674
        %v1706 = vadd.f32 %v1670, %v1674
        %v1707 = vadd.f32 %v1671, %v1674
        %v1708 = vmax.f32 %v1676, 0.0
        %v1709 = vmax.f32 %v1677, 0.0
        %v1710 = vmax.f32 %v1678, 0.0
        %v1711 = vmax.f32 %v1679, 0.0
        %v1712 = vmax.f32 %v1680, 0.0
        %v1713 = vmax.f32 %v1681, 0.0
        %v1714 = vmax.f32 %v1682, 0.0
        %v1715 = vmax.f32 %v1683, 0.0
        %v1716 = vmax.f32 %v1684, 0.0
        %v1717 = vmax.f32 %v1685, 0.0
        %v1718 = vmax.f32 %v1686, 0.0
        %v1719 = vmax.f32 %v1687, 0.0
        %v1720 = vmax.f32 %v1688, 0.0
        %v1721 = vmax.f32 %v1689, 0.0
        %v1722 = vmax.f32 %v1690, 0.0
        %v1723 = vmax.f32 %v1691, 0.0
        %v1724 = vmax.f32 %v1692, 0.0
        %v1725 = vmax.f32 %v1693, 0.0
        %v1726 = vmax.f32 %v1694, 0.0
        %v1727 = vmax.f32 %v1695, 0.0
        %v1728 = vmax.f32 %v1696, 0.0
        %v1729 = vmax.f32 %v1697, 0.0
        %v1730 = vmax.f32 %v1698, 0.0
        %v1731 = vmax.f32 %v1699, 0.0
        %v1732 = vmax.f32 %v1700, 0.0
        %v1733 = vmax.f32 %v1701, 0.0
        %v1734 = vmax.f32 %v1702, 0.0
        %v1735 = vmax.f32 %v1703, 0.0
        %v1736 = vmax.f32 %v1704, 0.0
        %v1737 = vmax.f32 %v1705, 0.0
        %v1738 = vmax.f32 %v1706, 0.0
        %v1739 = vmax.f32 %v1707, 0.0
        %v1740 = vmax.f32 %v1708, %v1710
        %v1741 = vmax.f32 %v1709, %v1711
        %v1742 = vmax.f32 %v1712, %v1714
        %v1743 = vmax.f32 %v1713, %v1715
        %v1744 = vmax.f32 %v1716, %v1718
        %v1745 = vmax.f32 %v1717, %v1719
        %v1746 = vmax.f32 %v1720, %v1722
        %v1747 = vmax.f32 %v1721, %v1723
        %v1748 = vmax.f32 %v1724, %v1726
        %v1749 = vmax.f32 %v1725, %v1727
        %v1750 = vmax.f32 %v1728, %v1730
        %v1751 = vmax.f32 %v1729, %v1731
        %v1752 = vmax.f32 %v1732, %v1734
        %v1753 = vmax.f32 %v1733, %v1735
        %v1754 = vmax.f32 %v1736, %v1738
        %v1755 = vmax.f32 %v1737, %v1739
        %vm1756 = vcmask 523264
        %1757 = vst.msk [vmem:[#allocation2] sm:$0xff] %vm1756, %v1740
        %1758 = vst.msk [vmem:[#allocation2 + $0x8] sm:$0xff] %vm1756, %v1741
        %1759 = vst.msk [vmem:[#allocation2 + $0x10] sm:$0xff] %vm1756, %v1742
        %1760 = vst.msk [vmem:[#allocation2 + $0x18] sm:$0xff] %vm1756, %v1743
        %1761 = vst.msk [vmem:[#allocation2 + $0x20] sm:$0xff] %vm1756, %v1744
        %1762 = vst.msk [vmem:[#allocation2 + $0x28] sm:$0xff] %vm1756, %v1745
        %1763 = vst.msk [vmem:[#allocation2 + $0x30] sm:$0xff] %vm1756, %v1746
        %1764 = vst.msk [vmem:[#allocation2 + $0x38] sm:$0xff] %vm1756, %v1747
        %1765 = vst.msk [vmem:[#allocation2 + $0x40] sm:$0xff] %vm1756, %v1748
        %1766 = vst.msk [vmem:[#allocation2 + $0x48] sm:$0xff] %vm1756, %v1749
        %1767 = vst.msk [vmem:[#allocation2 + $0x50] sm:$0xff] %vm1756, %v1750
        %1768 = vst.msk [vmem:[#allocation2 + $0x58] sm:$0xff] %vm1756, %v1751
        %1769 = vst.msk [vmem:[#allocation2 + $0x60] sm:$0xff] %vm1756, %v1752
        %1770 = vst.msk [vmem:[#allocation2 + $0x68] sm:$0xff] %vm1756, %v1753
        %1771 = vst.msk [vmem:[#allocation2 + $0x70] sm:$0xff] %vm1756, %v1754
        %1772 = vst.msk [vmem:[#allocation2 + $0x78] sm:$0xff] %vm1756, %v1755
        %v1773 = vld [vmem:[#allocation2] ss:$2 sm:$0xff]
        %s1774 = scalar_lea.vmem [#allocation2], 16
        %v1775 = vld [vmem:[%s1774] ss:$2 sm:$0xff]
        %s1776 = scalar_lea.vmem [#allocation2], 32
        %v1777 = vld [vmem:[%s1776] ss:$2 sm:$0xff]
        %s1778 = scalar_lea.vmem [#allocation2], 48
        %v1779 = vld [vmem:[%s1778] ss:$2 sm:$0xff]
        %s1780 = scalar_lea.vmem [#allocation2], 64
        %v1781 = vld [vmem:[%s1780] ss:$2 sm:$0xff]
        %s1782 = scalar_lea.vmem [#allocation2], 80
        %v1783 = vld [vmem:[%s1782] ss:$2 sm:$0xff]
        %s1784 = scalar_lea.vmem [#allocation2], 96
        %v1785 = vld [vmem:[%s1784] ss:$2 sm:$0xff]
        %s1786 = scalar_lea.vmem [#allocation2], 112
        %v1787 = vld [vmem:[%s1786] ss:$2 sm:$0xff]
        %s1788 = scalar_lea.vmem [#allocation2], 1
        %v1789 = vld [vmem:[%s1788] ss:$2 sm:$0xff]
        %s1790 = scalar_lea.vmem [#allocation2], 17
        %v1791 = vld [vmem:[%s1790] ss:$2 sm:$0xff]
        %s1792 = scalar_lea.vmem [#allocation2], 33
        %v1793 = vld [vmem:[%s1792] ss:$2 sm:$0xff]
        %s1794 = scalar_lea.vmem [#allocation2], 49
        %v1795 = vld [vmem:[%s1794] ss:$2 sm:$0xff]
        %s1796 = scalar_lea.vmem [#allocation2], 65
        %v1797 = vld [vmem:[%s1796] ss:$2 sm:$0xff]
        %s1798 = scalar_lea.vmem [#allocation2], 81
        %v1799 = vld [vmem:[%s1798] ss:$2 sm:$0xff]
        %s1800 = scalar_lea.vmem [#allocation2], 97
        %v1801 = vld [vmem:[%s1800] ss:$2 sm:$0xff]
        %s1802 = scalar_lea.vmem [#allocation2], 113
        %v1803 = vld [vmem:[%s1802] ss:$2 sm:$0xff]
        %v1804 = vmax.f32 %v1773, %v1789
        %v1805 = vmax.f32 %v1775, %v1791
        %v1806 = vmax.f32 %v1777, %v1793
        %v1807 = vmax.f32 %v1779, %v1795
        %v1808 = vmax.f32 %v1781, %v1797
        %v1809 = vmax.f32 %v1783, %v1799
        %v1810 = vmax.f32 %v1785, %v1801
        %v1811 = vmax.f32 %v1787, %v1803
        %1812 = vst.msk [vmem:[#allocation3] sm:$0xff] %vm1756, 0.0
        %vm1813 = vcmask 517120
        %1814 = vst.msk [vmem:[#allocation3 + $0x8] sm:$0x3] %vm1813, 0.0
        %1815 = vst.msk [vmem:[#allocation3 + $0x10] sm:$0xff] %vm1756, 0.0
        %1816 = vst.msk [vmem:[#allocation3 + $0x18] sm:$0x3] %vm1813, 0.0
        %1817 = vst.msk [vmem:[#allocation3 + $0x20] sm:$0xff] %vm1756, 0.0
        %1818 = vst.msk [vmem:[#allocation3 + $0x28] sm:$0x3] %vm1813, 0.0
        %1819 = vst.msk [vmem:[#allocation3 + $0x30] sm:$0xff] %vm1756, 0.0
        %1820 = vst.msk [vmem:[#allocation3 + $0x38] sm:$0x3] %vm1813, 0.0
        %1821 = vst.msk [vmem:[#allocation3 + $0x40] sm:$0xff] %vm1756, 0.0
        %1822 = vst.msk [vmem:[#allocation3 + $0x48] sm:$0x3] %vm1813, 0.0
        %1823 = vst.msk [vmem:[#allocation3 + $0x50] sm:$0xff] %vm1756, 0.0
        %1824 = vst.msk [vmem:[#allocation3 + $0x58] sm:$0x3] %vm1813, 0.0
        %1825 = vst.msk [vmem:[#allocation3 + $0x60] sm:$0xff] %vm1756, 0.0
        %1826 = vst.msk [vmem:[#allocation3 + $0x68] sm:$0x3] %vm1813, 0.0
        %1827 = vst.msk [vmem:[#allocation3 + $0x70] sm:$0xff] %vm1756, 0.0
        %1828 = vst.msk [vmem:[#allocation3 + $0x78] sm:$0x3] %vm1813, 0.0
        %1829 = vst.msk [vmem:[#allocation3 + $0x80] sm:$0xff] %vm1756, 0.0
        %1830 = vst.msk [vmem:[#allocation3 + $0x88] sm:$0x3] %vm1813, 0.0
        %1831 = vst.msk [vmem:[#allocation3 + $0x90] sm:$0xff] %vm1756, 0.0
        %1832 = vst.msk [vmem:[#allocation3 + $0x98] sm:$0x3] %vm1813, 0.0
        %s1833 = scalar_lea.vmem [#allocation3], 16
        %1834 = vst.msk [vmem:[%s1833 + $0x1] sm:$0xff] %vm1756, %v1804
        %1835 = vst.msk [vmem:[%s1833 + $0x11] sm:$0xff] %vm1756, %v1805
        %1836 = vst.msk [vmem:[%s1833 + $0x21] sm:$0xff] %vm1756, %v1806
        %1837 = vst.msk [vmem:[%s1833 + $0x31] sm:$0xff] %vm1756, %v1807
        %1838 = vst.msk [vmem:[%s1833 + $0x41] sm:$0xff] %vm1756, %v1808
        %1839 = vst.msk [vmem:[%s1833 + $0x51] sm:$0xff] %vm1756, %v1809
        %1840 = vst.msk [vmem:[%s1833 + $0x61] sm:$0xff] %vm1756, %v1810
        %1841 = vst.msk [vmem:[%s1833 + $0x71] sm:$0xff] %vm1756, %v1811
        %v1842 = vld [vmem:[#allocation3] sm:$0xff]
        %v1843 = vld [vmem:[#allocation3 + $0x10] sm:$0xff]
        %v1844 = vld [vmem:[#allocation3 + $0x20] sm:$0xff]
        %v1845 = vld [vmem:[#allocation3 + $0x30] sm:$0xff]
        %v1846 = vld [vmem:[#allocation3 + $0x40] sm:$0xff]
        %v1847 = vld [vmem:[#allocation3 + $0x50] sm:$0xff]
        %v1848 = vld [vmem:[#allocation3 + $0x60] sm:$0xff]
        %v1849 = vld [vmem:[#allocation3 + $0x70] sm:$0xff]
        %v1850 = vld [vmem:[#allocation3 + $0x80] sm:$0xff]
        %v1851 = vld [vmem:[#allocation3 + $0x90] sm:$0xff]
        %v1852 = vpack.c.bf16 %v1843, %v1842
        %v1853 = vpack.c.bf16 %v1845, %v1844
        %v1854 = vpack.c.bf16 %v1847, %v1846
        %v1855 = vpack.c.bf16 %v1849, %v1848
        %v1856 = vld [vmem:[%s3] sm:$0xf]
        %v1857 = vld [vmem:[%s3 + $0x4] sm:$0xf]
        %v1858 = vld [vmem:[%s3 + $0x8] sm:$0xf]
        %v1859 = vld [vmem:[%s3 + $0xc] sm:$0xf]
        %v1860 = vld [vmem:[%s3 + $0x10] sm:$0xf]
        %v1861 = vld [vmem:[%s3 + $0x14] sm:$0xf]
        %v1862 = vld [vmem:[%s3 + $0x18] sm:$0xf]
        %v1863 = vld [vmem:[%s3 + $0x1c] sm:$0xf]
        %v1864 = vpack.c.bf16 %v1844, %v1843
        %v1865 = vpack.c.bf16 %v1846, %v1845
        %v1866 = vpack.c.bf16 %v1848, %v1847
        %v1867 = vpack.c.bf16 %v1850, %v1849
        %s1868 = scalar_lea.vmem %s3, 96
        %v1869 = vld [vmem:[%s1868] sm:$0xf]
        %v1870 = vld [vmem:[%s1868 + $0x4] sm:$0xf]
        %v1871 = vld [vmem:[%s1868 + $0x8] sm:$0xf]
        %v1872 = vld [vmem:[%s1868 + $0xc] sm:$0xf]
        %v1873 = vld [vmem:[%s1868 + $0x10] sm:$0xf]
        %v1874 = vld [vmem:[%s1868 + $0x14] sm:$0xf]
        %v1875 = vld [vmem:[%s1868 + $0x18] sm:$0xf]
        %v1876 = vld [vmem:[%s1868 + $0x1c] sm:$0xf]
        %v1885 = vunpack.c.l.b16 %v1869
        %v1886 = vunpack.c.l.b16 %v1870
        %v1887 = vunpack.c.l.b16 %v1871
        %v1888 = vunpack.c.l.b16 %v1872
        %v1889 = vunpack.c.l.b16 %v1873
        %v1890 = vunpack.c.l.b16 %v1874
        %v1891 = vunpack.c.l.b16 %v1875
        %v1892 = vunpack.c.l.b16 %v1876
        %v1893 = vpack.c.b16 %v1886, %v1885
        %v1894 = vpack.c.b16 %v1888, %v1887
        %v1895 = vpack.c.b16 %v1890, %v1889
        %v1896 = vpack.c.b16 %v1892, %v1891
        %v1902 = vsel %vm1756, %v1864, 0
        %v1905 = vsel %vm1756, %v1865, 0
        %v1908 = vsel %vm1756, %v1866, 0
        %v1911 = vsel %vm1756, %v1867, 0
        %1913 = vmatpush.bf16.msra.mxu0 0
        %1914 = vmatpush.bf16.msra.mxu0 0
        %1915 = vmatpush.bf16.msra.mxu0 0
        %1916 = vmatpush.bf16.msra.mxu0 0
        %1917 = vmatpush.bf16.msra.mxu0 %v1896
        %1918 = vmatpush.bf16.msra.mxu0 %v1895
        %1919 = vmatpush.bf16.msra.mxu0 %v1894
        %1920 = vmatpush.bf16.msra.mxu0 %v1893
        %1921 = vmatmul.bf16.gmra.mxu0 %v1902
        %v1922 = vpop.f32.mrf.mxu0
        %v1923 = vadd.f32 0.0, %v1922
        %v1924 = vpop.f32.mrf.mxu0
        %v1925 = vadd.f32 0.0, %v1924
        %1926 = vmatmul.bf16.gmra.mxu0 %v1905
        %v1927 = vpop.f32.mrf.mxu0
        %v1928 = vadd.f32 0.0, %v1927
        %v1929 = vpop.f32.mrf.mxu0
        %v1930 = vadd.f32 0.0, %v1929
        %1931 = vmatmul.bf16.gmra.mxu0 %v1908
        %v1932 = vpop.f32.mrf.mxu0
        %v1933 = vadd.f32 0.0, %v1932
        %v1934 = vpop.f32.mrf.mxu0
        %v1935 = vadd.f32 0.0, %v1934
        %1936 = vmatmul.bf16.gmra.mxu0 %v1911
        %v1937 = vpop.f32.mrf.mxu0
        %v1938 = vadd.f32 0.0, %v1937
        %v1939 = vpop.f32.mrf.mxu0
        %v1940 = vadd.f32 0.0, %v1939
        %1941 = vdwg.mxu0
        %v1950 = vunpack.c.l.b16 %v1856
        %v1951 = vunpack.c.l.b16 %v1857
        %v1952 = vunpack.c.l.b16 %v1858
        %v1953 = vunpack.c.l.b16 %v1859
        %v1954 = vunpack.c.l.b16 %v1860
        %v1955 = vunpack.c.l.b16 %v1861
        %v1956 = vunpack.c.l.b16 %v1862
        %v1957 = vunpack.c.l.b16 %v1863
        %v1958 = vpack.c.b16 %v1951, %v1950
        %v1959 = vpack.c.b16 %v1953, %v1952
        %v1960 = vpack.c.b16 %v1955, %v1954
        %v1961 = vpack.c.b16 %v1957, %v1956
        %v1967 = vsel %vm1756, %v1852, 0
        %v1970 = vsel %vm1756, %v1853, 0
        %v1973 = vsel %vm1756, %v1854, 0
        %v1976 = vsel %vm1756, %v1855, 0
        %1978 = vmatpush.bf16.msra.mxu0 0
        %1979 = vmatpush.bf16.msra.mxu0 0
        %1980 = vmatpush.bf16.msra.mxu0 0
        %1981 = vmatpush.bf16.msra.mxu0 0
        %1982 = vmatpush.bf16.msra.mxu0 %v1961
        %1983 = vmatpush.bf16.msra.mxu0 %v1960
        %1984 = vmatpush.bf16.msra.mxu0 %v1959
        %1985 = vmatpush.bf16.msra.mxu0 %v1958
        %1986 = vmatmul.bf16.gmra.mxu0 %v1967
        %v1987 = vpop.f32.mrf.mxu0
        %v1988 = vadd.f32 %v1923, %v1987
        %v1989 = vpop.f32.mrf.mxu0
        %v1990 = vadd.f32 %v1925, %v1989
        %1991 = vmatmul.bf16.gmra.mxu0 %v1970
        %v1992 = vpop.f32.mrf.mxu0
        %v1993 = vadd.f32 %v1928, %v1992
        %v1994 = vpop.f32.mrf.mxu0
        %v1995 = vadd.f32 %v1930, %v1994
        %1996 = vmatmul.bf16.gmra.mxu0 %v1973
        %v1997 = vpop.f32.mrf.mxu0
        %v1998 = vadd.f32 %v1933, %v1997
        %v1999 = vpop.f32.mrf.mxu0
        %v2000 = vadd.f32 %v1935, %v1999
        %2001 = vmatmul.bf16.gmra.mxu0 %v1976
        %v2002 = vpop.f32.mrf.mxu0
        %v2003 = vadd.f32 %v1938, %v2002
        %v2004 = vpop.f32.mrf.mxu0
        %v2005 = vadd.f32 %v1940, %v2004
        %2006 = vdwg.mxu0
        %v2007 = vpack.c.bf16 %v1851, %v1850
        %s2008 = scalar_lea.vmem %s3, 192
        %v2009 = vld [vmem:[%s2008] sm:$0xf]
        %v2010 = vld [vmem:[%s2008 + $0x4] sm:$0xf]
        %v2011 = vld [vmem:[%s2008 + $0x8] sm:$0xf]
        %v2012 = vld [vmem:[%s2008 + $0xc] sm:$0xf]
        %v2013 = vld [vmem:[%s2008 + $0x10] sm:$0xf]
        %v2014 = vld [vmem:[%s2008 + $0x14] sm:$0xf]
        %v2015 = vld [vmem:[%s2008 + $0x18] sm:$0xf]
        %v2016 = vld [vmem:[%s2008 + $0x1c] sm:$0xf]
        %v2025 = vunpack.c.l.b16 %v2009
        %v2026 = vunpack.c.l.b16 %v2010
        %v2027 = vunpack.c.l.b16 %v2011
        %v2028 = vunpack.c.l.b16 %v2012
        %v2029 = vunpack.c.l.b16 %v2013
        %v2030 = vunpack.c.l.b16 %v2014
        %v2031 = vunpack.c.l.b16 %v2015
        %v2032 = vunpack.c.l.b16 %v2016
        %v2033 = vpack.c.b16 %v2026, %v2025
        %v2034 = vpack.c.b16 %v2028, %v2027
        %v2035 = vpack.c.b16 %v2030, %v2029
        %v2036 = vpack.c.b16 %v2032, %v2031
        %v2042 = vsel %vm1756, %v2007, 0
        %2044 = vmatpush.bf16.msra.mxu0 0
        %2045 = vmatpush.bf16.msra.mxu0 0
        %2046 = vmatpush.bf16.msra.mxu0 0
        %2047 = vmatpush.bf16.msra.mxu0 0
        %2048 = vmatpush.bf16.msra.mxu0 %v2036
        %2049 = vmatpush.bf16.msra.mxu0 %v2035
        %2050 = vmatpush.bf16.msra.mxu0 %v2034
        %2051 = vmatpush.bf16.msra.mxu0 %v2033
        %2052 = vmatmul.bf16.gmra.mxu0 %v1970
        %v2053 = vpop.f32.mrf.mxu0
        %v2054 = vadd.f32 0.0, %v2053
        %v2055 = vpop.f32.mrf.mxu0
        %v2056 = vadd.f32 0.0, %v2055
        %2057 = vmatmul.bf16.gmra.mxu0 %v1973
        %v2058 = vpop.f32.mrf.mxu0
        %v2059 = vadd.f32 0.0, %v2058
        %v2060 = vpop.f32.mrf.mxu0
        %v2061 = vadd.f32 0.0, %v2060
        %2062 = vmatmul.bf16.gmra.mxu0 %v1976
        %v2063 = vpop.f32.mrf.mxu0
        %v2064 = vadd.f32 0.0, %v2063
        %v2065 = vpop.f32.mrf.mxu0
        %v2066 = vadd.f32 0.0, %v2065
        %2067 = vmatmul.bf16.gmra.mxu0 %v2042
        %v2068 = vpop.f32.mrf.mxu0
        %v2069 = vadd.f32 0.0, %v2068
        %v2070 = vpop.f32.mrf.mxu0
        %v2071 = vadd.f32 0.0, %v2070
        %2072 = vdwg.mxu0
        %v2073 = vadd.f32 %v1988, %v2054
        %v2074 = vadd.f32 %v1990, %v2056
        %v2075 = vadd.f32 %v1993, %v2059
        %v2076 = vadd.f32 %v1995, %v2061
        %v2077 = vadd.f32 %v1998, %v2064
        %v2078 = vadd.f32 %v2000, %v2066
        %v2079 = vadd.f32 %v2003, %v2069
        %v2080 = vadd.f32 %v2005, %v2071
        %v2081 = vld [vmem:[#allocation3 + $0x1] sm:$0xff]
        %v2082 = vld [vmem:[#allocation3 + $0x11] sm:$0xff]
        %v2083 = vld [vmem:[#allocation3 + $0x21] sm:$0xff]
        %v2084 = vld [vmem:[#allocation3 + $0x31] sm:$0xff]
        %v2085 = vld [vmem:[#allocation3 + $0x41] sm:$0xff]
        %v2086 = vld [vmem:[#allocation3 + $0x51] sm:$0xff]
        %v2087 = vld [vmem:[#allocation3 + $0x61] sm:$0xff]
        %v2088 = vld [vmem:[#allocation3 + $0x71] sm:$0xff]
        %v2089 = vld [vmem:[#allocation3 + $0x81] sm:$0xff]
        %v2090 = vld [vmem:[#allocation3 + $0x91] sm:$0xff]
        %v2091 = vpack.c.bf16 %v2082, %v2081
        %v2092 = vpack.c.bf16 %v2084, %v2083
        %v2093 = vpack.c.bf16 %v2086, %v2085
        %v2094 = vpack.c.bf16 %v2088, %v2087
        %s2095 = scalar_lea.vmem %s3, 32
        %v2096 = vld [vmem:[%s2095] sm:$0xf]
        %v2097 = vld [vmem:[%s2095 + $0x4] sm:$0xf]
        %v2098 = vld [vmem:[%s2095 + $0x8] sm:$0xf]
        %v2099 = vld [vmem:[%s2095 + $0xc] sm:$0xf]
        %v2100 = vld [vmem:[%s2095 + $0x10] sm:$0xf]
        %v2101 = vld [vmem:[%s2095 + $0x14] sm:$0xf]
        %v2102 = vld [vmem:[%s2095 + $0x18] sm:$0xf]
        %v2103 = vld [vmem:[%s2095 + $0x1c] sm:$0xf]
        %v2112 = vunpack.c.l.b16 %v2096
        %v2113 = vunpack.c.l.b16 %v2097
        %v2114 = vunpack.c.l.b16 %v2098
        %v2115 = vunpack.c.l.b16 %v2099
        %v2116 = vunpack.c.l.b16 %v2100
        %v2117 = vunpack.c.l.b16 %v2101
        %v2118 = vunpack.c.l.b16 %v2102
        %v2119 = vunpack.c.l.b16 %v2103
        %v2120 = vpack.c.b16 %v2113, %v2112
        %v2121 = vpack.c.b16 %v2115, %v2114
        %v2122 = vpack.c.b16 %v2117, %v2116
        %v2123 = vpack.c.b16 %v2119, %v2118
        %v2129 = vsel %vm1756, %v2091, 0
        %v2132 = vsel %vm1756, %v2092, 0
        %v2135 = vsel %vm1756, %v2093, 0
        %v2138 = vsel %vm1756, %v2094, 0
        %2140 = vmatpush.bf16.msra.mxu0 0
        %2141 = vmatpush.bf16.msra.mxu0 0
        %2142 = vmatpush.bf16.msra.mxu0 0
        %2143 = vmatpush.bf16.msra.mxu0 0
        %2144 = vmatpush.bf16.msra.mxu0 %v2123
        %2145 = vmatpush.bf16.msra.mxu0 %v2122
        %2146 = vmatpush.bf16.msra.mxu0 %v2121
        %2147 = vmatpush.bf16.msra.mxu0 %v2120
        %2148 = vmatmul.bf16.gmra.mxu0 %v2129
        %v2149 = vpop.f32.mrf.mxu0
        %v2150 = vadd.f32 0.0, %v2149
        %v2151 = vpop.f32.mrf.mxu0
        %v2152 = vadd.f32 0.0, %v2151
        %2153 = vmatmul.bf16.gmra.mxu0 %v2132
        %v2154 = vpop.f32.mrf.mxu0
        %v2155 = vadd.f32 0.0, %v2154
        %v2156 = vpop.f32.mrf.mxu0
        %v2157 = vadd.f32 0.0, %v2156
        %2158 = vmatmul.bf16.gmra.mxu0 %v2135
        %v2159 = vpop.f32.mrf.mxu0
        %v2160 = vadd.f32 0.0, %v2159
        %v2161 = vpop.f32.mrf.mxu0
        %v2162 = vadd.f32 0.0, %v2161
        %2163 = vmatmul.bf16.gmra.mxu0 %v2138
        %v2164 = vpop.f32.mrf.mxu0
        %v2165 = vadd.f32 0.0, %v2164
        %v2166 = vpop.f32.mrf.mxu0
        %v2167 = vadd.f32 0.0, %v2166
        %2168 = vdwg.mxu0
        %v2169 = vadd.f32 %v2073, %v2150
        %v2170 = vadd.f32 %v2074, %v2152
        %v2171 = vadd.f32 %v2075, %v2155
        %v2172 = vadd.f32 %v2076, %v2157
        %v2173 = vadd.f32 %v2077, %v2160
        %v2174 = vadd.f32 %v2078, %v2162
        %v2175 = vadd.f32 %v2079, %v2165
        %v2176 = vadd.f32 %v2080, %v2167
        %v2177 = vpack.c.bf16 %v2083, %v2082
        %v2178 = vpack.c.bf16 %v2085, %v2084
        %v2179 = vpack.c.bf16 %v2087, %v2086
        %v2180 = vpack.c.bf16 %v2089, %v2088
        %s2181 = scalar_lea.vmem %s3, 128
        %v2182 = vld [vmem:[%s2181] sm:$0xf]
        %v2183 = vld [vmem:[%s2181 + $0x4] sm:$0xf]
        %v2184 = vld [vmem:[%s2181 + $0x8] sm:$0xf]
        %v2185 = vld [vmem:[%s2181 + $0xc] sm:$0xf]
        %v2186 = vld [vmem:[%s2181 + $0x10] sm:$0xf]
        %v2187 = vld [vmem:[%s2181 + $0x14] sm:$0xf]
        %v2188 = vld [vmem:[%s2181 + $0x18] sm:$0xf]
        %v2189 = vld [vmem:[%s2181 + $0x1c] sm:$0xf]
        %v2198 = vunpack.c.l.b16 %v2182
        %v2199 = vunpack.c.l.b16 %v2183
        %v2200 = vunpack.c.l.b16 %v2184
        %v2201 = vunpack.c.l.b16 %v2185
        %v2202 = vunpack.c.l.b16 %v2186
        %v2203 = vunpack.c.l.b16 %v2187
        %v2204 = vunpack.c.l.b16 %v2188
        %v2205 = vunpack.c.l.b16 %v2189
        %v2206 = vpack.c.b16 %v2199, %v2198
        %v2207 = vpack.c.b16 %v2201, %v2200
        %v2208 = vpack.c.b16 %v2203, %v2202
        %v2209 = vpack.c.b16 %v2205, %v2204
        %v2215 = vsel %vm1756, %v2177, 0
        %v2218 = vsel %vm1756, %v2178, 0
        %v2221 = vsel %vm1756, %v2179, 0
        %v2224 = vsel %vm1756, %v2180, 0
        %2226 = vmatpush.bf16.msra.mxu0 0
        %2227 = vmatpush.bf16.msra.mxu0 0
        %2228 = vmatpush.bf16.msra.mxu0 0
        %2229 = vmatpush.bf16.msra.mxu0 0
        %2230 = vmatpush.bf16.msra.mxu0 %v2209
        %2231 = vmatpush.bf16.msra.mxu0 %v2208
        %2232 = vmatpush.bf16.msra.mxu0 %v2207
        %2233 = vmatpush.bf16.msra.mxu0 %v2206
        %2234 = vmatmul.bf16.gmra.mxu0 %v2215
        %v2235 = vpop.f32.mrf.mxu0
        %v2236 = vadd.f32 0.0, %v2235
        %v2237 = vpop.f32.mrf.mxu0
        %v2238 = vadd.f32 0.0, %v2237
        %2239 = vmatmul.bf16.gmra.mxu0 %v2218
        %v2240 = vpop.f32.mrf.mxu0
        %v2241 = vadd.f32 0.0, %v2240
        %v2242 = vpop.f32.mrf.mxu0
        %v2243 = vadd.f32 0.0, %v2242
        %2244 = vmatmul.bf16.gmra.mxu0 %v2221
        %v2245 = vpop.f32.mrf.mxu0
        %v2246 = vadd.f32 0.0, %v2245
        %v2247 = vpop.f32.mrf.mxu0
        %v2248 = vadd.f32 0.0, %v2247
        %2249 = vmatmul.bf16.gmra.mxu0 %v2224
        %v2250 = vpop.f32.mrf.mxu0
        %v2251 = vadd.f32 0.0, %v2250
        %v2252 = vpop.f32.mrf.mxu0
        %v2253 = vadd.f32 0.0, %v2252
        %2254 = vdwg.mxu0
        %v2255 = vadd.f32 %v2169, %v2236
        %v2256 = vadd.f32 %v2170, %v2238
        %v2257 = vadd.f32 %v2171, %v2241
        %v2258 = vadd.f32 %v2172, %v2243
        %v2259 = vadd.f32 %v2173, %v2246
        %v2260 = vadd.f32 %v2174, %v2248
        %v2261 = vadd.f32 %v2175, %v2251
        %v2262 = vadd.f32 %v2176, %v2253
        %v2263 = vpack.c.bf16 %v2090, %v2089
        %s2264 = scalar_lea.vmem %s3, 224
        %v2265 = vld [vmem:[%s2264] sm:$0xf]
        %v2266 = vld [vmem:[%s2264 + $0x4] sm:$0xf]
        %v2267 = vld [vmem:[%s2264 + $0x8] sm:$0xf]
        %v2268 = vld [vmem:[%s2264 + $0xc] sm:$0xf]
        %v2269 = vld [vmem:[%s2264 + $0x10] sm:$0xf]
        %v2270 = vld [vmem:[%s2264 + $0x14] sm:$0xf]
        %v2271 = vld [vmem:[%s2264 + $0x18] sm:$0xf]
        %v2272 = vld [vmem:[%s2264 + $0x1c] sm:$0xf]
        %v2281 = vunpack.c.l.b16 %v2265
        %v2282 = vunpack.c.l.b16 %v2266
        %v2283 = vunpack.c.l.b16 %v2267
        %v2284 = vunpack.c.l.b16 %v2268
        %v2285 = vunpack.c.l.b16 %v2269
        %v2286 = vunpack.c.l.b16 %v2270
        %v2287 = vunpack.c.l.b16 %v2271
        %v2288 = vunpack.c.l.b16 %v2272
        %v2289 = vpack.c.b16 %v2282, %v2281
        %v2290 = vpack.c.b16 %v2284, %v2283
        %v2291 = vpack.c.b16 %v2286, %v2285
        %v2292 = vpack.c.b16 %v2288, %v2287
        %v2298 = vsel %vm1756, %v2263, 0
        %2300 = vmatpush.bf16.msra.mxu0 0
        %2301 = vmatpush.bf16.msra.mxu0 0
        %2302 = vmatpush.bf16.msra.mxu0 0
        %2303 = vmatpush.bf16.msra.mxu0 0
        %2304 = vmatpush.bf16.msra.mxu0 %v2292
        %2305 = vmatpush.bf16.msra.mxu0 %v2291
        %2306 = vmatpush.bf16.msra.mxu0 %v2290
        %2307 = vmatpush.bf16.msra.mxu0 %v2289
        %2308 = vmatmul.bf16.gmra.mxu0 %v2132
        %v2309 = vpop.f32.mrf.mxu0
        %v2310 = vadd.f32 0.0, %v2309
        %v2311 = vpop.f32.mrf.mxu0
        %v2312 = vadd.f32 0.0, %v2311
        %2313 = vmatmul.bf16.gmra.mxu0 %v2135
        %v2314 = vpop.f32.mrf.mxu0
        %v2315 = vadd.f32 0.0, %v2314
        %v2316 = vpop.f32.mrf.mxu0
        %v2317 = vadd.f32 0.0, %v2316
        %2318 = vmatmul.bf16.gmra.mxu0 %v2138
        %v2319 = vpop.f32.mrf.mxu0
        %v2320 = vadd.f32 0.0, %v2319
        %v2321 = vpop.f32.mrf.mxu0
        %v2322 = vadd.f32 0.0, %v2321
        %2323 = vmatmul.bf16.gmra.mxu0 %v2298
        %v2324 = vpop.f32.mrf.mxu0
        %v2325 = vadd.f32 0.0, %v2324
        %v2326 = vpop.f32.mrf.mxu0
        %v2327 = vadd.f32 0.0, %v2326
        %2328 = vdwg.mxu0
        %v2329 = vadd.f32 %v2255, %v2310
        %v2330 = vadd.f32 %v2256, %v2312
        %v2331 = vadd.f32 %v2257, %v2315
        %v2332 = vadd.f32 %v2258, %v2317
        %v2333 = vadd.f32 %v2259, %v2320
        %v2334 = vadd.f32 %v2260, %v2322
        %v2335 = vadd.f32 %v2261, %v2325
        %v2336 = vadd.f32 %v2262, %v2327
        %v2337 = vld [vmem:[#allocation3 + $0x2] sm:$0xff]
        %v2338 = vld [vmem:[#allocation3 + $0x12] sm:$0xff]
        %v2339 = vld [vmem:[#allocation3 + $0x22] sm:$0xff]
        %v2340 = vld [vmem:[#allocation3 + $0x32] sm:$0xff]
        %v2341 = vld [vmem:[#allocation3 + $0x42] sm:$0xff]
        %v2342 = vld [vmem:[#allocation3 + $0x52] sm:$0xff]
        %v2343 = vld [vmem:[#allocation3 + $0x62] sm:$0xff]
        %v2344 = vld [vmem:[#allocation3 + $0x72] sm:$0xff]
        %v2345 = vld [vmem:[#allocation3 + $0x82] sm:$0xff]
        %v2346 = vld [vmem:[#allocation3 + $0x92] sm:$0xff]
        %v2347 = vpack.c.bf16 %v2338, %v2337
        %v2348 = vpack.c.bf16 %v2340, %v2339
        %v2349 = vpack.c.bf16 %v2342, %v2341
        %v2350 = vpack.c.bf16 %v2344, %v2343
        %s2351 = scalar_lea.vmem %s3, 64
        %v2352 = vld [vmem:[%s2351] sm:$0xf]
        %v2353 = vld [vmem:[%s2351 + $0x4] sm:$0xf]
        %v2354 = vld [vmem:[%s2351 + $0x8] sm:$0xf]
        %v2355 = vld [vmem:[%s2351 + $0xc] sm:$0xf]
        %v2356 = vld [vmem:[%s2351 + $0x10] sm:$0xf]
        %v2357 = vld [vmem:[%s2351 + $0x14] sm:$0xf]
        %v2358 = vld [vmem:[%s2351 + $0x18] sm:$0xf]
        %v2359 = vld [vmem:[%s2351 + $0x1c] sm:$0xf]
        %v2368 = vunpack.c.l.b16 %v2352
        %v2369 = vunpack.c.l.b16 %v2353
        %v2370 = vunpack.c.l.b16 %v2354
        %v2371 = vunpack.c.l.b16 %v2355
        %v2372 = vunpack.c.l.b16 %v2356
        %v2373 = vunpack.c.l.b16 %v2357
        %v2374 = vunpack.c.l.b16 %v2358
        %v2375 = vunpack.c.l.b16 %v2359
        %v2376 = vpack.c.b16 %v2369, %v2368
        %v2377 = vpack.c.b16 %v2371, %v2370
        %v2378 = vpack.c.b16 %v2373, %v2372
        %v2379 = vpack.c.b16 %v2375, %v2374
        %v2385 = vsel %vm1756, %v2347, 0
        %v2388 = vsel %vm1756, %v2348, 0
        %v2391 = vsel %vm1756, %v2349, 0
        %v2394 = vsel %vm1756, %v2350, 0
        %2396 = vmatpush.bf16.msra.mxu0 0
        %2397 = vmatpush.bf16.msra.mxu0 0
        %2398 = vmatpush.bf16.msra.mxu0 0
        %2399 = vmatpush.bf16.msra.mxu0 0
        %2400 = vmatpush.bf16.msra.mxu0 %v2379
        %2401 = vmatpush.bf16.msra.mxu0 %v2378
        %2402 = vmatpush.bf16.msra.mxu0 %v2377
        %2403 = vmatpush.bf16.msra.mxu0 %v2376
        %2404 = vmatmul.bf16.gmra.mxu0 %v2385
        %v2405 = vpop.f32.mrf.mxu0
        %v2406 = vadd.f32 0.0, %v2405
        %v2407 = vpop.f32.mrf.mxu0
        %v2408 = vadd.f32 0.0, %v2407
        %2409 = vmatmul.bf16.gmra.mxu0 %v2388
        %v2410 = vpop.f32.mrf.mxu0
        %v2411 = vadd.f32 0.0, %v2410
        %v2412 = vpop.f32.mrf.mxu0
        %v2413 = vadd.f32 0.0, %v2412
        %2414 = vmatmul.bf16.gmra.mxu0 %v2391
        %v2415 = vpop.f32.mrf.mxu0
        %v2416 = vadd.f32 0.0, %v2415
        %v2417 = vpop.f32.mrf.mxu0
        %v2418 = vadd.f32 0.0, %v2417
        %2419 = vmatmul.bf16.gmra.mxu0 %v2394
        %v2420 = vpop.f32.mrf.mxu0
        %v2421 = vadd.f32 0.0, %v2420
        %v2422 = vpop.f32.mrf.mxu0
        %v2423 = vadd.f32 0.0, %v2422
        %2424 = vdwg.mxu0
        %v2425 = vadd.f32 %v2329, %v2406
        %v2426 = vadd.f32 %v2330, %v2408
        %v2427 = vadd.f32 %v2331, %v2411
        %v2428 = vadd.f32 %v2332, %v2413
        %v2429 = vadd.f32 %v2333, %v2416
        %v2430 = vadd.f32 %v2334, %v2418
        %v2431 = vadd.f32 %v2335, %v2421
        %v2432 = vadd.f32 %v2336, %v2423
        %v2433 = vpack.c.bf16 %v2339, %v2338
        %v2434 = vpack.c.bf16 %v2341, %v2340
        %v2435 = vpack.c.bf16 %v2343, %v2342
        %v2436 = vpack.c.bf16 %v2345, %v2344
        %s2437 = scalar_lea.vmem %s3, 160
        %v2438 = vld [vmem:[%s2437] sm:$0xf]
        %v2439 = vld [vmem:[%s2437 + $0x4] sm:$0xf]
        %v2440 = vld [vmem:[%s2437 + $0x8] sm:$0xf]
        %v2441 = vld [vmem:[%s2437 + $0xc] sm:$0xf]
        %v2442 = vld [vmem:[%s2437 + $0x10] sm:$0xf]
        %v2443 = vld [vmem:[%s2437 + $0x14] sm:$0xf]
        %v2444 = vld [vmem:[%s2437 + $0x18] sm:$0xf]
        %v2445 = vld [vmem:[%s2437 + $0x1c] sm:$0xf]
        %v2454 = vunpack.c.l.b16 %v2438
        %v2455 = vunpack.c.l.b16 %v2439
        %v2456 = vunpack.c.l.b16 %v2440
        %v2457 = vunpack.c.l.b16 %v2441
        %v2458 = vunpack.c.l.b16 %v2442
        %v2459 = vunpack.c.l.b16 %v2443
        %v2460 = vunpack.c.l.b16 %v2444
        %v2461 = vunpack.c.l.b16 %v2445
        %v2462 = vpack.c.b16 %v2455, %v2454
        %v2463 = vpack.c.b16 %v2457, %v2456
        %v2464 = vpack.c.b16 %v2459, %v2458
        %v2465 = vpack.c.b16 %v2461, %v2460
        %v2471 = vsel %vm1756, %v2433, 0
        %v2474 = vsel %vm1756, %v2434, 0
        %v2477 = vsel %vm1756, %v2435, 0
        %v2480 = vsel %vm1756, %v2436, 0
        %2482 = vmatpush.bf16.msra.mxu0 0
        %2483 = vmatpush.bf16.msra.mxu0 0
        %2484 = vmatpush.bf16.msra.mxu0 0
        %2485 = vmatpush.bf16.msra.mxu0 0
        %2486 = vmatpush.bf16.msra.mxu0 %v2465
        %2487 = vmatpush.bf16.msra.mxu0 %v2464
        %2488 = vmatpush.bf16.msra.mxu0 %v2463
        %2489 = vmatpush.bf16.msra.mxu0 %v2462
        %2490 = vmatmul.bf16.gmra.mxu0 %v2471
        %v2491 = vpop.f32.mrf.mxu0
        %v2492 = vadd.f32 0.0, %v2491
        %v2493 = vpop.f32.mrf.mxu0
        %v2494 = vadd.f32 0.0, %v2493
        %2495 = vmatmul.bf16.gmra.mxu0 %v2474
        %v2496 = vpop.f32.mrf.mxu0
        %v2497 = vadd.f32 0.0, %v2496
        %v2498 = vpop.f32.mrf.mxu0
        %v2499 = vadd.f32 0.0, %v2498
        %2500 = vmatmul.bf16.gmra.mxu0 %v2477
        %v2501 = vpop.f32.mrf.mxu0
        %v2502 = vadd.f32 0.0, %v2501
        %v2503 = vpop.f32.mrf.mxu0
        %v2504 = vadd.f32 0.0, %v2503
        %2505 = vmatmul.bf16.gmra.mxu0 %v2480
        %v2506 = vpop.f32.mrf.mxu0
        %v2507 = vadd.f32 0.0, %v2506
        %v2508 = vpop.f32.mrf.mxu0
        %v2509 = vadd.f32 0.0, %v2508
        %2510 = vdwg.mxu0
        %v2511 = vadd.f32 %v2425, %v2492
        %v2512 = vadd.f32 %v2426, %v2494
        %v2513 = vadd.f32 %v2427, %v2497
        %v2514 = vadd.f32 %v2428, %v2499
        %v2515 = vadd.f32 %v2429, %v2502
        %v2516 = vadd.f32 %v2430, %v2504
        %v2517 = vadd.f32 %v2431, %v2507
        %v2518 = vadd.f32 %v2432, %v2509
        %v2519 = vpack.c.bf16 %v2346, %v2345
        %s2520 = scalar_lea.vmem %s3, 256
        %v2521 = vld [vmem:[%s2520] sm:$0xf]
        %v2522 = vld [vmem:[%s2520 + $0x4] sm:$0xf]
        %v2523 = vld [vmem:[%s2520 + $0x8] sm:$0xf]
        %v2524 = vld [vmem:[%s2520 + $0xc] sm:$0xf]
        %v2525 = vld [vmem:[%s2520 + $0x10] sm:$0xf]
        %v2526 = vld [vmem:[%s2520 + $0x14] sm:$0xf]
        %v2527 = vld [vmem:[%s2520 + $0x18] sm:$0xf]
        %v2528 = vld [vmem:[%s2520 + $0x1c] sm:$0xf]
        %v2537 = vunpack.c.l.b16 %v2521
        %v2538 = vunpack.c.l.b16 %v2522
        %v2539 = vunpack.c.l.b16 %v2523
        %v2540 = vunpack.c.l.b16 %v2524
        %v2541 = vunpack.c.l.b16 %v2525
        %v2542 = vunpack.c.l.b16 %v2526
        %v2543 = vunpack.c.l.b16 %v2527
        %v2544 = vunpack.c.l.b16 %v2528
        %v2545 = vpack.c.b16 %v2538, %v2537
        %v2546 = vpack.c.b16 %v2540, %v2539
        %v2547 = vpack.c.b16 %v2542, %v2541
        %v2548 = vpack.c.b16 %v2544, %v2543
        %v2554 = vsel %vm1756, %v2519, 0
        %2556 = vmatpush.bf16.msra.mxu0 0
        %2557 = vmatpush.bf16.msra.mxu0 0
        %2558 = vmatpush.bf16.msra.mxu0 0
        %2559 = vmatpush.bf16.msra.mxu0 0
        %2560 = vmatpush.bf16.msra.mxu0 %v2548
        %2561 = vmatpush.bf16.msra.mxu0 %v2547
        %2562 = vmatpush.bf16.msra.mxu0 %v2546
        %2563 = vmatpush.bf16.msra.mxu0 %v2545
        %2564 = vmatmul.bf16.gmra.mxu0 %v2388
        %v2565 = vpop.f32.mrf.mxu0
        %v2566 = vadd.f32 0.0, %v2565
        %v2567 = vpop.f32.mrf.mxu0
        %v2568 = vadd.f32 0.0, %v2567
        %2569 = vmatmul.bf16.gmra.mxu0 %v2391
        %v2570 = vpop.f32.mrf.mxu0
        %v2571 = vadd.f32 0.0, %v2570
        %v2572 = vpop.f32.mrf.mxu0
        %v2573 = vadd.f32 0.0, %v2572
        %2574 = vmatmul.bf16.gmra.mxu0 %v2394
        %v2575 = vpop.f32.mrf.mxu0
        %v2576 = vadd.f32 0.0, %v2575
        %v2577 = vpop.f32.mrf.mxu0
        %v2578 = vadd.f32 0.0, %v2577
        %2579 = vmatmul.bf16.gmra.mxu0 %v2554
        %v2580 = vpop.f32.mrf.mxu0
        %v2581 = vadd.f32 0.0, %v2580
        %v2582 = vpop.f32.mrf.mxu0
        %v2583 = vadd.f32 0.0, %v2582
        %2584 = vdwg.mxu0
        %v2585 = vadd.f32 %v2511, %v2566
        %v2586 = vadd.f32 %v2512, %v2568
        %v2587 = vadd.f32 %v2513, %v2571
        %v2588 = vadd.f32 %v2514, %v2573
        %v2589 = vadd.f32 %v2515, %v2576
        %v2590 = vadd.f32 %v2516, %v2578
        %v2591 = vadd.f32 %v2517, %v2581
        %v2592 = vadd.f32 %v2518, %v2583
        %v2593 = vld [vmem:[%s4] sm:$0x1]
        %v2595 = vperm.slane %v2593, 0
        %v2597 = vadd.f32 %v2585, %v2595
        %v2598 = vadd.f32 %v2586, %v2595
        %v2599 = vadd.f32 %v2587, %v2595
        %v2600 = vadd.f32 %v2588, %v2595
        %v2601 = vadd.f32 %v2589, %v2595
        %v2602 = vadd.f32 %v2590, %v2595
        %v2603 = vadd.f32 %v2591, %v2595
        %v2604 = vadd.f32 %v2592, %v2595
        %v2605 = vmax.f32 %v2597, 0.0
        %v2606 = vmax.f32 %v2598, 0.0
        %v2607 = vmax.f32 %v2599, 0.0
        %v2608 = vmax.f32 %v2600, 0.0
        %v2609 = vmax.f32 %v2601, 0.0
        %v2610 = vmax.f32 %v2602, 0.0
        %v2611 = vmax.f32 %v2603, 0.0
        %v2612 = vmax.f32 %v2604, 0.0
        %2613 = vst.msk [vmem:[%s1833 + $0x1] sm:$0xff] %vm1756, %v2605
        %2614 = vst.msk [vmem:[%s1833 + $0x11] sm:$0xff] %vm1756, %v2606
        %2615 = vst.msk [vmem:[%s1833 + $0x21] sm:$0xff] %vm1756, %v2607
        %2616 = vst.msk [vmem:[%s1833 + $0x31] sm:$0xff] %vm1756, %v2608
        %2617 = vst.msk [vmem:[%s1833 + $0x41] sm:$0xff] %vm1756, %v2609
        %2618 = vst.msk [vmem:[%s1833 + $0x51] sm:$0xff] %vm1756, %v2610
        %2619 = vst.msk [vmem:[%s1833 + $0x61] sm:$0xff] %vm1756, %v2611
        %2620 = vst.msk [vmem:[%s1833 + $0x71] sm:$0xff] %vm1756, %v2612
        %v2621 = vld [vmem:[#allocation3] sm:$0xff]
        %v2622 = vld [vmem:[#allocation3 + $0x10] sm:$0xff]
        %v2623 = vld [vmem:[#allocation3 + $0x20] sm:$0xff]
        %v2624 = vld [vmem:[#allocation3 + $0x30] sm:$0xff]
        %v2625 = vld [vmem:[#allocation3 + $0x40] sm:$0xff]
        %v2626 = vld [vmem:[#allocation3 + $0x50] sm:$0xff]
        %v2627 = vld [vmem:[#allocation3 + $0x60] sm:$0xff]
        %v2628 = vld [vmem:[#allocation3 + $0x70] sm:$0xff]
        %v2629 = vld [vmem:[#allocation3 + $0x80] sm:$0xff]
        %v2630 = vld [vmem:[#allocation3 + $0x90] sm:$0xff]
        %v2631 = vpack.c.bf16 %v2622, %v2621
        %v2632 = vpack.c.bf16 %v2624, %v2623
        %v2633 = vpack.c.bf16 %v2626, %v2625
        %v2634 = vpack.c.bf16 %v2628, %v2627
        %v2635 = vld [vmem:[%s5] sm:$0xf]
        %v2636 = vld [vmem:[%s5 + $0x4] sm:$0xf]
        %v2637 = vld [vmem:[%s5 + $0x8] sm:$0xf]
        %v2638 = vld [vmem:[%s5 + $0xc] sm:$0xf]
        %v2639 = vld [vmem:[%s5 + $0x10] sm:$0xf]
        %v2640 = vld [vmem:[%s5 + $0x14] sm:$0xf]
        %v2641 = vld [vmem:[%s5 + $0x18] sm:$0xf]
        %v2642 = vld [vmem:[%s5 + $0x1c] sm:$0xf]
        %v2643 = vpack.c.bf16 %v2623, %v2622
        %v2644 = vpack.c.bf16 %v2625, %v2624
        %v2645 = vpack.c.bf16 %v2627, %v2626
        %v2646 = vpack.c.bf16 %v2629, %v2628
        %s2647 = scalar_lea.vmem %s5, 96
        %v2648 = vld [vmem:[%s2647] sm:$0xf]
        %v2649 = vld [vmem:[%s2647 + $0x4] sm:$0xf]
        %v2650 = vld [vmem:[%s2647 + $0x8] sm:$0xf]
        %v2651 = vld [vmem:[%s2647 + $0xc] sm:$0xf]
        %v2652 = vld [vmem:[%s2647 + $0x10] sm:$0xf]
        %v2653 = vld [vmem:[%s2647 + $0x14] sm:$0xf]
        %v2654 = vld [vmem:[%s2647 + $0x18] sm:$0xf]
        %v2655 = vld [vmem:[%s2647 + $0x1c] sm:$0xf]
        %v2664 = vunpack.c.l.b16 %v2648
        %v2665 = vunpack.c.l.b16 %v2649
        %v2666 = vunpack.c.l.b16 %v2650
        %v2667 = vunpack.c.l.b16 %v2651
        %v2668 = vunpack.c.l.b16 %v2652
        %v2669 = vunpack.c.l.b16 %v2653
        %v2670 = vunpack.c.l.b16 %v2654
        %v2671 = vunpack.c.l.b16 %v2655
        %v2672 = vpack.c.b16 %v2665, %v2664
        %v2673 = vpack.c.b16 %v2667, %v2666
        %v2674 = vpack.c.b16 %v2669, %v2668
        %v2675 = vpack.c.b16 %v2671, %v2670
        %v2681 = vsel %vm1756, %v2643, 0
        %v2684 = vsel %vm1756, %v2644, 0
        %v2687 = vsel %vm1756, %v2645, 0
        %v2690 = vsel %vm1756, %v2646, 0
        %2692 = vmatpush.bf16.msra.mxu0 0
        %2693 = vmatpush.bf16.msra.mxu0 0
        %2694 = vmatpush.bf16.msra.mxu0 0
        %2695 = vmatpush.bf16.msra.mxu0 0
        %2696 = vmatpush.bf16.msra.mxu0 %v2675
        %2697 = vmatpush.bf16.msra.mxu0 %v2674
        %2698 = vmatpush.bf16.msra.mxu0 %v2673
        %2699 = vmatpush.bf16.msra.mxu0 %v2672
        %2700 = vmatmul.bf16.gmra.mxu0 %v2681
        %v2701 = vpop.f32.mrf.mxu0
        %v2702 = vadd.f32 0.0, %v2701
        %v2703 = vpop.f32.mrf.mxu0
        %v2704 = vadd.f32 0.0, %v2703
        %2705 = vmatmul.bf16.gmra.mxu0 %v2684
        %v2706 = vpop.f32.mrf.mxu0
        %v2707 = vadd.f32 0.0, %v2706
        %v2708 = vpop.f32.mrf.mxu0
        %v2709 = vadd.f32 0.0, %v2708
        %2710 = vmatmul.bf16.gmra.mxu0 %v2687
        %v2711 = vpop.f32.mrf.mxu0
        %v2712 = vadd.f32 0.0, %v2711
        %v2713 = vpop.f32.mrf.mxu0
        %v2714 = vadd.f32 0.0, %v2713
        %2715 = vmatmul.bf16.gmra.mxu0 %v2690
        %v2716 = vpop.f32.mrf.mxu0
        %v2717 = vadd.f32 0.0, %v2716
        %v2718 = vpop.f32.mrf.mxu0
        %v2719 = vadd.f32 0.0, %v2718
        %2720 = vdwg.mxu0
        %v2729 = vunpack.c.l.b16 %v2635
        %v2730 = vunpack.c.l.b16 %v2636
        %v2731 = vunpack.c.l.b16 %v2637
        %v2732 = vunpack.c.l.b16 %v2638
        %v2733 = vunpack.c.l.b16 %v2639
        %v2734 = vunpack.c.l.b16 %v2640
        %v2735 = vunpack.c.l.b16 %v2641
        %v2736 = vunpack.c.l.b16 %v2642
        %v2737 = vpack.c.b16 %v2730, %v2729
        %v2738 = vpack.c.b16 %v2732, %v2731
        %v2739 = vpack.c.b16 %v2734, %v2733
        %v2740 = vpack.c.b16 %v2736, %v2735
        %v2746 = vsel %vm1756, %v2631, 0
        %v2749 = vsel %vm1756, %v2632, 0
        %v2752 = vsel %vm1756, %v2633, 0
        %v2755 = vsel %vm1756, %v2634, 0
        %2757 = vmatpush.bf16.msra.mxu0 0
        %2758 = vmatpush.bf16.msra.mxu0 0
        %2759 = vmatpush.bf16.msra.mxu0 0
        %2760 = vmatpush.bf16.msra.mxu0 0
        %2761 = vmatpush.bf16.msra.mxu0 %v2740
        %2762 = vmatpush.bf16.msra.mxu0 %v2739
        %2763 = vmatpush.bf16.msra.mxu0 %v2738
        %2764 = vmatpush.bf16.msra.mxu0 %v2737
        %2765 = vmatmul.bf16.gmra.mxu0 %v2746
        %v2766 = vpop.f32.mrf.mxu0
        %v2767 = vadd.f32 %v2702, %v2766
        %v2768 = vpop.f32.mrf.mxu0
        %v2769 = vadd.f32 %v2704, %v2768
        %2770 = vmatmul.bf16.gmra.mxu0 %v2749
        %v2771 = vpop.f32.mrf.mxu0
        %v2772 = vadd.f32 %v2707, %v2771
        %v2773 = vpop.f32.mrf.mxu0
        %v2774 = vadd.f32 %v2709, %v2773
        %2775 = vmatmul.bf16.gmra.mxu0 %v2752
        %v2776 = vpop.f32.mrf.mxu0
        %v2777 = vadd.f32 %v2712, %v2776
        %v2778 = vpop.f32.mrf.mxu0
        %v2779 = vadd.f32 %v2714, %v2778
        %2780 = vmatmul.bf16.gmra.mxu0 %v2755
        %v2781 = vpop.f32.mrf.mxu0
        %v2782 = vadd.f32 %v2717, %v2781
        %v2783 = vpop.f32.mrf.mxu0
        %v2784 = vadd.f32 %v2719, %v2783
        %2785 = vdwg.mxu0
        %v2786 = vpack.c.bf16 %v2630, %v2629
        %s2787 = scalar_lea.vmem %s5, 192
        %v2788 = vld [vmem:[%s2787] sm:$0xf]
        %v2789 = vld [vmem:[%s2787 + $0x4] sm:$0xf]
        %v2790 = vld [vmem:[%s2787 + $0x8] sm:$0xf]
        %v2791 = vld [vmem:[%s2787 + $0xc] sm:$0xf]
        %v2792 = vld [vmem:[%s2787 + $0x10] sm:$0xf]
        %v2793 = vld [vmem:[%s2787 + $0x14] sm:$0xf]
        %v2794 = vld [vmem:[%s2787 + $0x18] sm:$0xf]
        %v2795 = vld [vmem:[%s2787 + $0x1c] sm:$0xf]
        %v2804 = vunpack.c.l.b16 %v2788
        %v2805 = vunpack.c.l.b16 %v2789
        %v2806 = vunpack.c.l.b16 %v2790
        %v2807 = vunpack.c.l.b16 %v2791
        %v2808 = vunpack.c.l.b16 %v2792
        %v2809 = vunpack.c.l.b16 %v2793
        %v2810 = vunpack.c.l.b16 %v2794
        %v2811 = vunpack.c.l.b16 %v2795
        %v2812 = vpack.c.b16 %v2805, %v2804
        %v2813 = vpack.c.b16 %v2807, %v2806
        %v2814 = vpack.c.b16 %v2809, %v2808
        %v2815 = vpack.c.b16 %v2811, %v2810
        %v2821 = vsel %vm1756, %v2786, 0
        %2823 = vmatpush.bf16.msra.mxu0 0
        %2824 = vmatpush.bf16.msra.mxu0 0
        %2825 = vmatpush.bf16.msra.mxu0 0
        %2826 = vmatpush.bf16.msra.mxu0 0
        %2827 = vmatpush.bf16.msra.mxu0 %v2815
        %2828 = vmatpush.bf16.msra.mxu0 %v2814
        %2829 = vmatpush.bf16.msra.mxu0 %v2813
        %2830 = vmatpush.bf16.msra.mxu0 %v2812
        %2831 = vmatmul.bf16.gmra.mxu0 %v2749
        %v2832 = vpop.f32.mrf.mxu0
        %v2833 = vadd.f32 0.0, %v2832
        %v2834 = vpop.f32.mrf.mxu0
        %v2835 = vadd.f32 0.0, %v2834
        %2836 = vmatmul.bf16.gmra.mxu0 %v2752
        %v2837 = vpop.f32.mrf.mxu0
        %v2838 = vadd.f32 0.0, %v2837
        %v2839 = vpop.f32.mrf.mxu0
        %v2840 = vadd.f32 0.0, %v2839
        %2841 = vmatmul.bf16.gmra.mxu0 %v2755
        %v2842 = vpop.f32.mrf.mxu0
        %v2843 = vadd.f32 0.0, %v2842
        %v2844 = vpop.f32.mrf.mxu0
        %v2845 = vadd.f32 0.0, %v2844
        %2846 = vmatmul.bf16.gmra.mxu0 %v2821
        %v2847 = vpop.f32.mrf.mxu0
        %v2848 = vadd.f32 0.0, %v2847
        %v2849 = vpop.f32.mrf.mxu0
        %v2850 = vadd.f32 0.0, %v2849
        %2851 = vdwg.mxu0
        %v2852 = vadd.f32 %v2767, %v2833
        %v2853 = vadd.f32 %v2769, %v2835
        %v2854 = vadd.f32 %v2772, %v2838
        %v2855 = vadd.f32 %v2774, %v2840
        %v2856 = vadd.f32 %v2777, %v2843
        %v2857 = vadd.f32 %v2779, %v2845
        %v2858 = vadd.f32 %v2782, %v2848
        %v2859 = vadd.f32 %v2784, %v2850
        %v2860 = vld [vmem:[#allocation3 + $0x1] sm:$0xff]
        %v2861 = vld [vmem:[#allocation3 + $0x11] sm:$0xff]
        %v2862 = vld [vmem:[#allocation3 + $0x21] sm:$0xff]
        %v2863 = vld [vmem:[#allocation3 + $0x31] sm:$0xff]
        %v2864 = vld [vmem:[#allocation3 + $0x41] sm:$0xff]
        %v2865 = vld [vmem:[#allocation3 + $0x51] sm:$0xff]
        %v2866 = vld [vmem:[#allocation3 + $0x61] sm:$0xff]
        %v2867 = vld [vmem:[#allocation3 + $0x71] sm:$0xff]
        %v2868 = vld [vmem:[#allocation3 + $0x81] sm:$0xff]
        %v2869 = vld [vmem:[#allocation3 + $0x91] sm:$0xff]
        %v2870 = vpack.c.bf16 %v2861, %v2860
        %v2871 = vpack.c.bf16 %v2863, %v2862
        %v2872 = vpack.c.bf16 %v2865, %v2864
        %v2873 = vpack.c.bf16 %v2867, %v2866
        %s2874 = scalar_lea.vmem %s5, 32
        %v2875 = vld [vmem:[%s2874] sm:$0xf]
        %v2876 = vld [vmem:[%s2874 + $0x4] sm:$0xf]
        %v2877 = vld [vmem:[%s2874 + $0x8] sm:$0xf]
        %v2878 = vld [vmem:[%s2874 + $0xc] sm:$0xf]
        %v2879 = vld [vmem:[%s2874 + $0x10] sm:$0xf]
        %v2880 = vld [vmem:[%s2874 + $0x14] sm:$0xf]
        %v2881 = vld [vmem:[%s2874 + $0x18] sm:$0xf]
        %v2882 = vld [vmem:[%s2874 + $0x1c] sm:$0xf]
        %v2891 = vunpack.c.l.b16 %v2875
        %v2892 = vunpack.c.l.b16 %v2876
        %v2893 = vunpack.c.l.b16 %v2877
        %v2894 = vunpack.c.l.b16 %v2878
        %v2895 = vunpack.c.l.b16 %v2879
        %v2896 = vunpack.c.l.b16 %v2880
        %v2897 = vunpack.c.l.b16 %v2881
        %v2898 = vunpack.c.l.b16 %v2882
        %v2899 = vpack.c.b16 %v2892, %v2891
        %v2900 = vpack.c.b16 %v2894, %v2893
        %v2901 = vpack.c.b16 %v2896, %v2895
        %v2902 = vpack.c.b16 %v2898, %v2897
        %v2908 = vsel %vm1756, %v2870, 0
        %v2911 = vsel %vm1756, %v2871, 0
        %v2914 = vsel %vm1756, %v2872, 0
        %v2917 = vsel %vm1756, %v2873, 0
        %2919 = vmatpush.bf16.msra.mxu0 0
        %2920 = vmatpush.bf16.msra.mxu0 0
        %2921 = vmatpush.bf16.msra.mxu0 0
        %2922 = vmatpush.bf16.msra.mxu0 0
        %2923 = vmatpush.bf16.msra.mxu0 %v2902
        %2924 = vmatpush.bf16.msra.mxu0 %v2901
        %2925 = vmatpush.bf16.msra.mxu0 %v2900
        %2926 = vmatpush.bf16.msra.mxu0 %v2899
        %2927 = vmatmul.bf16.gmra.mxu0 %v2908
        %v2928 = vpop.f32.mrf.mxu0
        %v2929 = vadd.f32 0.0, %v2928
        %v2930 = vpop.f32.mrf.mxu0
        %v2931 = vadd.f32 0.0, %v2930
        %2932 = vmatmul.bf16.gmra.mxu0 %v2911
        %v2933 = vpop.f32.mrf.mxu0
        %v2934 = vadd.f32 0.0, %v2933
        %v2935 = vpop.f32.mrf.mxu0
        %v2936 = vadd.f32 0.0, %v2935
        %2937 = vmatmul.bf16.gmra.mxu0 %v2914
        %v2938 = vpop.f32.mrf.mxu0
        %v2939 = vadd.f32 0.0, %v2938
        %v2940 = vpop.f32.mrf.mxu0
        %v2941 = vadd.f32 0.0, %v2940
        %2942 = vmatmul.bf16.gmra.mxu0 %v2917
        %v2943 = vpop.f32.mrf.mxu0
        %v2944 = vadd.f32 0.0, %v2943
        %v2945 = vpop.f32.mrf.mxu0
        %v2946 = vadd.f32 0.0, %v2945
        %2947 = vdwg.mxu0
        %v2948 = vadd.f32 %v2852, %v2929
        %v2949 = vadd.f32 %v2853, %v2931
        %v2950 = vadd.f32 %v2854, %v2934
        %v2951 = vadd.f32 %v2855, %v2936
        %v2952 = vadd.f32 %v2856, %v2939
        %v2953 = vadd.f32 %v2857, %v2941
        %v2954 = vadd.f32 %v2858, %v2944
        %v2955 = vadd.f32 %v2859, %v2946
        %v2956 = vpack.c.bf16 %v2862, %v2861
        %v2957 = vpack.c.bf16 %v2864, %v2863
        %v2958 = vpack.c.bf16 %v2866, %v2865
        %v2959 = vpack.c.bf16 %v2868, %v2867
        %s2960 = scalar_lea.vmem %s5, 128
        %v2961 = vld [vmem:[%s2960] sm:$0xf]
        %v2962 = vld [vmem:[%s2960 + $0x4] sm:$0xf]
        %v2963 = vld [vmem:[%s2960 + $0x8] sm:$0xf]
        %v2964 = vld [vmem:[%s2960 + $0xc] sm:$0xf]
        %v2965 = vld [vmem:[%s2960 + $0x10] sm:$0xf]
        %v2966 = vld [vmem:[%s2960 + $0x14] sm:$0xf]
        %v2967 = vld [vmem:[%s2960 + $0x18] sm:$0xf]
        %v2968 = vld [vmem:[%s2960 + $0x1c] sm:$0xf]
        %v2977 = vunpack.c.l.b16 %v2961
        %v2978 = vunpack.c.l.b16 %v2962
        %v2979 = vunpack.c.l.b16 %v2963
        %v2980 = vunpack.c.l.b16 %v2964
        %v2981 = vunpack.c.l.b16 %v2965
        %v2982 = vunpack.c.l.b16 %v2966
        %v2983 = vunpack.c.l.b16 %v2967
        %v2984 = vunpack.c.l.b16 %v2968
        %v2985 = vpack.c.b16 %v2978, %v2977
        %v2986 = vpack.c.b16 %v2980, %v2979
        %v2987 = vpack.c.b16 %v2982, %v2981
        %v2988 = vpack.c.b16 %v2984, %v2983
        %v2994 = vsel %vm1756, %v2956, 0
        %v2997 = vsel %vm1756, %v2957, 0
        %v3000 = vsel %vm1756, %v2958, 0
        %v3003 = vsel %vm1756, %v2959, 0
        %3005 = vmatpush.bf16.msra.mxu0 0
        %3006 = vmatpush.bf16.msra.mxu0 0
        %3007 = vmatpush.bf16.msra.mxu0 0
        %3008 = vmatpush.bf16.msra.mxu0 0
        %3009 = vmatpush.bf16.msra.mxu0 %v2988
        %3010 = vmatpush.bf16.msra.mxu0 %v2987
        %3011 = vmatpush.bf16.msra.mxu0 %v2986
        %3012 = vmatpush.bf16.msra.mxu0 %v2985
        %3013 = vmatmul.bf16.gmra.mxu0 %v2994
        %v3014 = vpop.f32.mrf.mxu0
        %v3015 = vadd.f32 0.0, %v3014
        %v3016 = vpop.f32.mrf.mxu0
        %v3017 = vadd.f32 0.0, %v3016
        %3018 = vmatmul.bf16.gmra.mxu0 %v2997
        %v3019 = vpop.f32.mrf.mxu0
        %v3020 = vadd.f32 0.0, %v3019
        %v3021 = vpop.f32.mrf.mxu0
        %v3022 = vadd.f32 0.0, %v3021
        %3023 = vmatmul.bf16.gmra.mxu0 %v3000
        %v3024 = vpop.f32.mrf.mxu0
        %v3025 = vadd.f32 0.0, %v3024
        %v3026 = vpop.f32.mrf.mxu0
        %v3027 = vadd.f32 0.0, %v3026
        %3028 = vmatmul.bf16.gmra.mxu0 %v3003
        %v3029 = vpop.f32.mrf.mxu0
        %v3030 = vadd.f32 0.0, %v3029
        %v3031 = vpop.f32.mrf.mxu0
        %v3032 = vadd.f32 0.0, %v3031
        %3033 = vdwg.mxu0
        %v3034 = vadd.f32 %v2948, %v3015
        %v3035 = vadd.f32 %v2949, %v3017
        %v3036 = vadd.f32 %v2950, %v3020
        %v3037 = vadd.f32 %v2951, %v3022
        %v3038 = vadd.f32 %v2952, %v3025
        %v3039 = vadd.f32 %v2953, %v3027
        %v3040 = vadd.f32 %v2954, %v3030
        %v3041 = vadd.f32 %v2955, %v3032
        %v3042 = vpack.c.bf16 %v2869, %v2868
        %s3043 = scalar_lea.vmem %s5, 224
        %v3044 = vld [vmem:[%s3043] sm:$0xf]
        %v3045 = vld [vmem:[%s3043 + $0x4] sm:$0xf]
        %v3046 = vld [vmem:[%s3043 + $0x8] sm:$0xf]
        %v3047 = vld [vmem:[%s3043 + $0xc] sm:$0xf]
        %v3048 = vld [vmem:[%s3043 + $0x10] sm:$0xf]
        %v3049 = vld [vmem:[%s3043 + $0x14] sm:$0xf]
        %v3050 = vld [vmem:[%s3043 + $0x18] sm:$0xf]
        %v3051 = vld [vmem:[%s3043 + $0x1c] sm:$0xf]
        %v3060 = vunpack.c.l.b16 %v3044
        %v3061 = vunpack.c.l.b16 %v3045
        %v3062 = vunpack.c.l.b16 %v3046
        %v3063 = vunpack.c.l.b16 %v3047
        %v3064 = vunpack.c.l.b16 %v3048
        %v3065 = vunpack.c.l.b16 %v3049
        %v3066 = vunpack.c.l.b16 %v3050
        %v3067 = vunpack.c.l.b16 %v3051
        %v3068 = vpack.c.b16 %v3061, %v3060
        %v3069 = vpack.c.b16 %v3063, %v3062
        %v3070 = vpack.c.b16 %v3065, %v3064
        %v3071 = vpack.c.b16 %v3067, %v3066
        %v3077 = vsel %vm1756, %v3042, 0
        %3079 = vmatpush.bf16.msra.mxu0 0
        %3080 = vmatpush.bf16.msra.mxu0 0
        %3081 = vmatpush.bf16.msra.mxu0 0
        %3082 = vmatpush.bf16.msra.mxu0 0
        %3083 = vmatpush.bf16.msra.mxu0 %v3071
        %3084 = vmatpush.bf16.msra.mxu0 %v3070
        %3085 = vmatpush.bf16.msra.mxu0 %v3069
        %3086 = vmatpush.bf16.msra.mxu0 %v3068
        %3087 = vmatmul.bf16.gmra.mxu0 %v2911
        %v3088 = vpop.f32.mrf.mxu0
        %v3089 = vadd.f32 0.0, %v3088
        %v3090 = vpop.f32.mrf.mxu0
        %v3091 = vadd.f32 0.0, %v3090
        %3092 = vmatmul.bf16.gmra.mxu0 %v2914
        %v3093 = vpop.f32.mrf.mxu0
        %v3094 = vadd.f32 0.0, %v3093
        %v3095 = vpop.f32.mrf.mxu0
        %v3096 = vadd.f32 0.0, %v3095
        %3097 = vmatmul.bf16.gmra.mxu0 %v2917
        %v3098 = vpop.f32.mrf.mxu0
        %v3099 = vadd.f32 0.0, %v3098
        %v3100 = vpop.f32.mrf.mxu0
        %v3101 = vadd.f32 0.0, %v3100
        %3102 = vmatmul.bf16.gmra.mxu0 %v3077
        %v3103 = vpop.f32.mrf.mxu0
        %v3104 = vadd.f32 0.0, %v3103
        %v3105 = vpop.f32.mrf.mxu0
        %v3106 = vadd.f32 0.0, %v3105
        %3107 = vdwg.mxu0
        %v3108 = vadd.f32 %v3034, %v3089
        %v3109 = vadd.f32 %v3035, %v3091
        %v3110 = vadd.f32 %v3036, %v3094
        %v3111 = vadd.f32 %v3037, %v3096
        %v3112 = vadd.f32 %v3038, %v3099
        %v3113 = vadd.f32 %v3039, %v3101
        %v3114 = vadd.f32 %v3040, %v3104
        %v3115 = vadd.f32 %v3041, %v3106
        %v3116 = vld [vmem:[#allocation3 + $0x2] sm:$0xff]
        %v3117 = vld [vmem:[#allocation3 + $0x12] sm:$0xff]
        %v3118 = vld [vmem:[#allocation3 + $0x22] sm:$0xff]
        %v3119 = vld [vmem:[#allocation3 + $0x32] sm:$0xff]
        %v3120 = vld [vmem:[#allocation3 + $0x42] sm:$0xff]
        %v3121 = vld [vmem:[#allocation3 + $0x52] sm:$0xff]
        %v3122 = vld [vmem:[#allocation3 + $0x62] sm:$0xff]
        %v3123 = vld [vmem:[#allocation3 + $0x72] sm:$0xff]
        %v3124 = vld [vmem:[#allocation3 + $0x82] sm:$0xff]
        %v3125 = vld [vmem:[#allocation3 + $0x92] sm:$0xff]
        %v3126 = vpack.c.bf16 %v3117, %v3116
        %v3127 = vpack.c.bf16 %v3119, %v3118
        %v3128 = vpack.c.bf16 %v3121, %v3120
        %v3129 = vpack.c.bf16 %v3123, %v3122
        %s3130 = scalar_lea.vmem %s5, 64
        %v3131 = vld [vmem:[%s3130] sm:$0xf]
        %v3132 = vld [vmem:[%s3130 + $0x4] sm:$0xf]
        %v3133 = vld [vmem:[%s3130 + $0x8] sm:$0xf]
        %v3134 = vld [vmem:[%s3130 + $0xc] sm:$0xf]
        %v3135 = vld [vmem:[%s3130 + $0x10] sm:$0xf]
        %v3136 = vld [vmem:[%s3130 + $0x14] sm:$0xf]
        %v3137 = vld [vmem:[%s3130 + $0x18] sm:$0xf]
        %v3138 = vld [vmem:[%s3130 + $0x1c] sm:$0xf]
        %v3147 = vunpack.c.l.b16 %v3131
        %v3148 = vunpack.c.l.b16 %v3132
        %v3149 = vunpack.c.l.b16 %v3133
        %v3150 = vunpack.c.l.b16 %v3134
        %v3151 = vunpack.c.l.b16 %v3135
        %v3152 = vunpack.c.l.b16 %v3136
        %v3153 = vunpack.c.l.b16 %v3137
        %v3154 = vunpack.c.l.b16 %v3138
        %v3155 = vpack.c.b16 %v3148, %v3147
        %v3156 = vpack.c.b16 %v3150, %v3149
        %v3157 = vpack.c.b16 %v3152, %v3151
        %v3158 = vpack.c.b16 %v3154, %v3153
        %v3164 = vsel %vm1756, %v3126, 0
        %v3167 = vsel %vm1756, %v3127, 0
        %v3170 = vsel %vm1756, %v3128, 0
        %v3173 = vsel %vm1756, %v3129, 0
        %3175 = vmatpush.bf16.msra.mxu0 0
        %3176 = vmatpush.bf16.msra.mxu0 0
        %3177 = vmatpush.bf16.msra.mxu0 0
        %3178 = vmatpush.bf16.msra.mxu0 0
        %3179 = vmatpush.bf16.msra.mxu0 %v3158
        %3180 = vmatpush.bf16.msra.mxu0 %v3157
        %3181 = vmatpush.bf16.msra.mxu0 %v3156
        %3182 = vmatpush.bf16.msra.mxu0 %v3155
        %3183 = vmatmul.bf16.gmra.mxu0 %v3164
        %v3184 = vpop.f32.mrf.mxu0
        %v3185 = vadd.f32 0.0, %v3184
        %v3186 = vpop.f32.mrf.mxu0
        %v3187 = vadd.f32 0.0, %v3186
        %3188 = vmatmul.bf16.gmra.mxu0 %v3167
        %v3189 = vpop.f32.mrf.mxu0
        %v3190 = vadd.f32 0.0, %v3189
        %v3191 = vpop.f32.mrf.mxu0
        %v3192 = vadd.f32 0.0, %v3191
        %3193 = vmatmul.bf16.gmra.mxu0 %v3170
        %v3194 = vpop.f32.mrf.mxu0
        %v3195 = vadd.f32 0.0, %v3194
        %v3196 = vpop.f32.mrf.mxu0
        %v3197 = vadd.f32 0.0, %v3196
        %3198 = vmatmul.bf16.gmra.mxu0 %v3173
        %v3199 = vpop.f32.mrf.mxu0
        %v3200 = vadd.f32 0.0, %v3199
        %v3201 = vpop.f32.mrf.mxu0
        %v3202 = vadd.f32 0.0, %v3201
        %3203 = vdwg.mxu0
        %v3204 = vadd.f32 %v3108, %v3185
        %v3205 = vadd.f32 %v3109, %v3187
        %v3206 = vadd.f32 %v3110, %v3190
        %v3207 = vadd.f32 %v3111, %v3192
        %v3208 = vadd.f32 %v3112, %v3195
        %v3209 = vadd.f32 %v3113, %v3197
        %v3210 = vadd.f32 %v3114, %v3200
        %v3211 = vadd.f32 %v3115, %v3202
        %v3212 = vpack.c.bf16 %v3118, %v3117
        %v3213 = vpack.c.bf16 %v3120, %v3119
        %v3214 = vpack.c.bf16 %v3122, %v3121
        %v3215 = vpack.c.bf16 %v3124, %v3123
        %s3216 = scalar_lea.vmem %s5, 160
        %v3217 = vld [vmem:[%s3216] sm:$0xf]
        %v3218 = vld [vmem:[%s3216 + $0x4] sm:$0xf]
        %v3219 = vld [vmem:[%s3216 + $0x8] sm:$0xf]
        %v3220 = vld [vmem:[%s3216 + $0xc] sm:$0xf]
        %v3221 = vld [vmem:[%s3216 + $0x10] sm:$0xf]
        %v3222 = vld [vmem:[%s3216 + $0x14] sm:$0xf]
        %v3223 = vld [vmem:[%s3216 + $0x18] sm:$0xf]
        %v3224 = vld [vmem:[%s3216 + $0x1c] sm:$0xf]
        %v3233 = vunpack.c.l.b16 %v3217
        %v3234 = vunpack.c.l.b16 %v3218
        %v3235 = vunpack.c.l.b16 %v3219
        %v3236 = vunpack.c.l.b16 %v3220
        %v3237 = vunpack.c.l.b16 %v3221
        %v3238 = vunpack.c.l.b16 %v3222
        %v3239 = vunpack.c.l.b16 %v3223
        %v3240 = vunpack.c.l.b16 %v3224
        %v3241 = vpack.c.b16 %v3234, %v3233
        %v3242 = vpack.c.b16 %v3236, %v3235
        %v3243 = vpack.c.b16 %v3238, %v3237
        %v3244 = vpack.c.b16 %v3240, %v3239
        %v3250 = vsel %vm1756, %v3212, 0
        %v3253 = vsel %vm1756, %v3213, 0
        %v3256 = vsel %vm1756, %v3214, 0
        %v3259 = vsel %vm1756, %v3215, 0
        %3261 = vmatpush.bf16.msra.mxu0 0
        %3262 = vmatpush.bf16.msra.mxu0 0
        %3263 = vmatpush.bf16.msra.mxu0 0
        %3264 = vmatpush.bf16.msra.mxu0 0
        %3265 = vmatpush.bf16.msra.mxu0 %v3244
        %3266 = vmatpush.bf16.msra.mxu0 %v3243
        %3267 = vmatpush.bf16.msra.mxu0 %v3242
        %3268 = vmatpush.bf16.msra.mxu0 %v3241
        %3269 = vmatmul.bf16.gmra.mxu0 %v3250
        %v3270 = vpop.f32.mrf.mxu0
        %v3271 = vadd.f32 0.0, %v3270
        %v3272 = vpop.f32.mrf.mxu0
        %v3273 = vadd.f32 0.0, %v3272
        %3274 = vmatmul.bf16.gmra.mxu0 %v3253
        %v3275 = vpop.f32.mrf.mxu0
        %v3276 = vadd.f32 0.0, %v3275
        %v3277 = vpop.f32.mrf.mxu0
        %v3278 = vadd.f32 0.0, %v3277
        %3279 = vmatmul.bf16.gmra.mxu0 %v3256
        %v3280 = vpop.f32.mrf.mxu0
        %v3281 = vadd.f32 0.0, %v3280
        %v3282 = vpop.f32.mrf.mxu0
        %v3283 = vadd.f32 0.0, %v3282
        %3284 = vmatmul.bf16.gmra.mxu0 %v3259
        %v3285 = vpop.f32.mrf.mxu0
        %v3286 = vadd.f32 0.0, %v3285
        %v3287 = vpop.f32.mrf.mxu0
        %v3288 = vadd.f32 0.0, %v3287
        %3289 = vdwg.mxu0
        %v3290 = vadd.f32 %v3204, %v3271
        %v3291 = vadd.f32 %v3205, %v3273
        %v3292 = vadd.f32 %v3206, %v3276
        %v3293 = vadd.f32 %v3207, %v3278
        %v3294 = vadd.f32 %v3208, %v3281
        %v3295 = vadd.f32 %v3209, %v3283
        %v3296 = vadd.f32 %v3210, %v3286
        %v3297 = vadd.f32 %v3211, %v3288
        %v3298 = vpack.c.bf16 %v3125, %v3124
        %s3299 = scalar_lea.vmem %s5, 256
        %v3300 = vld [vmem:[%s3299] sm:$0xf]
        %v3301 = vld [vmem:[%s3299 + $0x4] sm:$0xf]
        %v3302 = vld [vmem:[%s3299 + $0x8] sm:$0xf]
        %v3303 = vld [vmem:[%s3299 + $0xc] sm:$0xf]
        %v3304 = vld [vmem:[%s3299 + $0x10] sm:$0xf]
        %v3305 = vld [vmem:[%s3299 + $0x14] sm:$0xf]
        %v3306 = vld [vmem:[%s3299 + $0x18] sm:$0xf]
        %v3307 = vld [vmem:[%s3299 + $0x1c] sm:$0xf]
        %v3316 = vunpack.c.l.b16 %v3300
        %v3317 = vunpack.c.l.b16 %v3301
        %v3318 = vunpack.c.l.b16 %v3302
        %v3319 = vunpack.c.l.b16 %v3303
        %v3320 = vunpack.c.l.b16 %v3304
        %v3321 = vunpack.c.l.b16 %v3305
        %v3322 = vunpack.c.l.b16 %v3306
        %v3323 = vunpack.c.l.b16 %v3307
        %v3324 = vpack.c.b16 %v3317, %v3316
        %v3325 = vpack.c.b16 %v3319, %v3318
        %v3326 = vpack.c.b16 %v3321, %v3320
        %v3327 = vpack.c.b16 %v3323, %v3322
        %v3333 = vsel %vm1756, %v3298, 0
        %3335 = vmatpush.bf16.msra.mxu0 0
        %3336 = vmatpush.bf16.msra.mxu0 0
        %3337 = vmatpush.bf16.msra.mxu0 0
        %3338 = vmatpush.bf16.msra.mxu0 0
        %3339 = vmatpush.bf16.msra.mxu0 %v3327
        %3340 = vmatpush.bf16.msra.mxu0 %v3326
        %3341 = vmatpush.bf16.msra.mxu0 %v3325
        %3342 = vmatpush.bf16.msra.mxu0 %v3324
        %3343 = vmatmul.bf16.gmra.mxu0 %v3167
        %v3344 = vpop.f32.mrf.mxu0
        %v3345 = vadd.f32 0.0, %v3344
        %v3346 = vpop.f32.mrf.mxu0
        %v3347 = vadd.f32 0.0, %v3346
        %3348 = vmatmul.bf16.gmra.mxu0 %v3170
        %v3349 = vpop.f32.mrf.mxu0
        %v3350 = vadd.f32 0.0, %v3349
        %v3351 = vpop.f32.mrf.mxu0
        %v3352 = vadd.f32 0.0, %v3351
        %3353 = vmatmul.bf16.gmra.mxu0 %v3173
        %v3354 = vpop.f32.mrf.mxu0
        %v3355 = vadd.f32 0.0, %v3354
        %v3356 = vpop.f32.mrf.mxu0
        %v3357 = vadd.f32 0.0, %v3356
        %3358 = vmatmul.bf16.gmra.mxu0 %v3333
        %v3359 = vpop.f32.mrf.mxu0
        %v3360 = vadd.f32 0.0, %v3359
        %v3361 = vpop.f32.mrf.mxu0
        %v3362 = vadd.f32 0.0, %v3361
        %3363 = vdwg.mxu0
        %v3364 = vadd.f32 %v3290, %v3345
        %v3365 = vadd.f32 %v3291, %v3347
        %v3366 = vadd.f32 %v3292, %v3350
        %v3367 = vadd.f32 %v3293, %v3352
        %v3368 = vadd.f32 %v3294, %v3355
        %v3369 = vadd.f32 %v3295, %v3357
        %v3370 = vadd.f32 %v3296, %v3360
        %v3371 = vadd.f32 %v3297, %v3362
        %v3372 = vld [vmem:[%s6] sm:$0x1]
        %v3374 = vperm.slane %v3372, 0
        %v3376 = vadd.f32 %v3364, %v3374
        %v3377 = vadd.f32 %v3365, %v3374
        %v3378 = vadd.f32 %v3366, %v3374
        %v3379 = vadd.f32 %v3367, %v3374
        %v3380 = vadd.f32 %v3368, %v3374
        %v3381 = vadd.f32 %v3369, %v3374
        %v3382 = vadd.f32 %v3370, %v3374
        %v3383 = vadd.f32 %v3371, %v3374
        %v3384 = vadd.f32 %v3376, %v1804
        %v3385 = vadd.f32 %v3377, %v1805
        %v3386 = vadd.f32 %v3378, %v1806
        %v3387 = vadd.f32 %v3379, %v1807
        %v3388 = vadd.f32 %v3380, %v1808
        %v3389 = vadd.f32 %v3381, %v1809
        %v3390 = vadd.f32 %v3382, %v1810
        %v3391 = vadd.f32 %v3383, %v1811
        %v3392 = vmax.f32 %v3384, 0.0
        %v3393 = vmax.f32 %v3385, 0.0
        %v3394 = vmax.f32 %v3386, 0.0
        %v3395 = vmax.f32 %v3387, 0.0
        %v3396 = vmax.f32 %v3388, 0.0
        %v3397 = vmax.f32 %v3389, 0.0
        %v3398 = vmax.f32 %v3390, 0.0
        %v3399 = vmax.f32 %v3391, 0.0
        %v3400 = vsel %vm1756, %v3392, 0.0
        %v3401 = vsel %vm1756, %v3393, 0.0
        %v3402 = vadd.f32 %v3400, %v3401
        %v3403 = vsel %vm1756, %v3394, 0.0
        %v3404 = vadd.f32 %v3402, %v3403
        %v3405 = vsel %vm1756, %v3395, 0.0
        %v3406 = vadd.f32 %v3404, %v3405
        %v3407 = vsel %vm1756, %v3396, 0.0
        %v3408 = vadd.f32 %v3406, %v3407
        %v3409 = vsel %vm1756, %v3397, 0.0
        %v3410 = vadd.f32 %v3408, %v3409
        %v3411 = vsel %vm1756, %v3398, 0.0
        %v3412 = vadd.f32 %v3410, %v3411
        %v3413 = vsel %vm1756, %v3399, 0.0
        %v3414 = vadd.f32 %v3412, %v3413
        %v3415 = vrot.slane %v3414, 4
        %v3416 = vadd.f32 %v3414, %v3415
        %v3417 = vrot.slane %v3416, 2
        %v3418 = vadd.f32 %v3416, %v3417
        %v3419 = vrot.slane %v3418, 1
        %v3420 = vadd.f32 %v3418, %v3419
        %v3421 = vrcp.pop 64.0
        %v3422 = vmul.f32 64.0, %v3421
        %v3423 = vsub.f32 1.0, %v3422
        %v3424 = vmul.f32 %v3421, %v3423
        %v3425 = vadd.f32 %v3421, %v3424
        %vm3426 = vweird.f32 %v3421
        %v3427 = vsel %vm3426, %v3421, %v3425
        %v3428 = vmul.f32 %v3420, %v3427
        %vm3429 = vcmask 516096
        %3430 = vst.msk [vmem:[%s270] sm:$0x1] %vm3429, %v3428
        %s3431 = sand.u32 %s181, 1
        %s3432 = scalar_lea.sflag [#allocation5], %s3431
        %s3433 = sand.u32 %s181, 1
        %s3434 = scalar_lea.vmem [#allocation4], %s3433
        // Predicated region
        $region49: #{encoder_forward.1} parent=47 // pred_check
          %p3435 = pneg %p191
        $region50: #{encoder_forward.1} parent=47 // pred_check_branch
          %3437 = sbr.rel (%p3435) target = $region52
        $region51: #{encoder_forward.1} parent=47 // pred_region
          %3439 = vsyncadd %s3432, 0
          %s3440 = scalar_lea.hbm %s7, %s21
          %s3442 = sshll.u32 %s3434, 4
          %s3443 = int_to_ptr.vmem [resolvable:$true] %s3442
          %s3444 = sshll.u32 %s3440, 4
          %s3445 = int_to_ptr.hbm [resolvable:$true] %s3444
          %3447 = dma.vmem_to_hbm [thread:$0]  %s3443, 16, %s3445, %s3432
        $region52: #{encoder_forward.1} parent=47 // pred_fallthru
          _
      $region48: #{encoder_forward.1} parent=5 // pred_fallthru
        _
      %p3448 = scmp.le.s32.totalorder 2, %s16
      // Predicated region
      $region53: #{encoder_forward.1} parent=5 // pred_check
        %p3449 = pneg %p3448
      $region54: #{encoder_forward.1} parent=5 // pred_check_branch
        %3451 = sbr.rel (%p3449) target = $region56
      $region55: #{encoder_forward.1} parent=5 // pred_region
        %s3452 = ssub.s32 %s16, 2
        // Predicated region
        $region57: #{encoder_forward.1} parent=55 // pred_check
          %p3453 = pneg %p197
        $region58: #{encoder_forward.1} parent=55 // pred_check_branch
          %3455 = sbr.rel (%p3453) target = $region60
        $region59: #{encoder_forward.1} parent=55 // pred_region
          %s3456 = sand.u32 %s182, 1
          %s3457 = scalar_lea.sflag [#allocation5], %s3456
          %s3458 = sand.u32 %s182, 1
          %s3459 = scalar_lea.vmem [#allocation4], %s3458
          %3461 = dma.done %s3457, 16
        $region60: #{encoder_forward.1} parent=55 // pred_fallthru
          _
      $region56: #{encoder_forward.1} parent=5 // pred_fallthru
        _
    $region6: #{encoder_forward.1} parent=1 // loop_footer
      %s20 = sadd.s32 1, %s16
    $region7: #{encoder_forward.1} parent=1 // loop_footer_branch
      %15 = sbr.rel target = $region3
    $region8: #{encoder_forward.1} parent=1 // loop_exit
      _
    %3462 = vsyncpa [#allocation5], 1
    %s3463 = scalar_lea.sflag [#allocation5], 1
    %3464 = vsyncpa %s3463, 1

</llo_original>
